<compile_context>
chip_gen: v7x
topology: tpu7x:2x2x1
jax: 0.10.0
libtpu: 0.0.40
codegen_flags: <defaults>
</compile_context>

<pallas_src>
import functools
import math

import jax
import jax.numpy as jnp
from jax.experimental import pallas as pl
from jax.experimental.pallas import tpu as pltpu

BN_EPS = 1e-5
GRAM_SIZE = 256
STEM_CIN = 8          # stem input channels zero-padded 3 -> 8


def _round_up(x, m):
    return (x + m - 1) // m * m


# ----------------------------- Pallas kernels ------------------------------

def _mm_bn_kernel(*refs, relu, res_mode):
    """acc = (x@w)*s + b  [+ residual | + (rx@rw)*rs + rb]  [; relu]."""
    if res_mode == "conv":
        x_ref, w_ref, s_ref, b_ref, rx_ref, rw_ref, rs_ref, rb_ref, o_ref = refs
    elif res_mode == "add":
        x_ref, w_ref, s_ref, b_ref, r_ref, o_ref = refs
    else:
        x_ref, w_ref, s_ref, b_ref, o_ref = refs

    acc = jnp.dot(x_ref[...], w_ref[...], preferred_element_type=jnp.float32)
    acc = acc * s_ref[...] + b_ref[...]
    if res_mode == "conv":
        r = jnp.dot(rx_ref[...], rw_ref[...], preferred_element_type=jnp.float32)
        acc = acc + (r * rs_ref[...] + rb_ref[...])
    elif res_mode == "add":
        acc = acc + r_ref[...]
    if relu:
        acc = jnp.maximum(acc, 0.0)
    o_ref[...] = acc


def fused_matmul_bn(x, w, scale, bias, *, relu=False, residual=None,
                    res_x=None, res_w=None, res_scale=None, res_bias=None):
    """o = act((x@w)*scale + bias [+ res | + (res_x@res_w)*res_s + res_b]).

    x:(M,K) f32 -> bf16, w:(K,N) f32 -> bf16, scale/bias:(N,) f32.
    The M dimension is tiled with a parallel grid axis.
    """
    M, K = x.shape
    N = w.shape[1]
    if res_x is not None:
        res_mode = "conv"
    elif residual is not None:
        res_mode = "add"
    else:
        res_mode = "none"

    if M >= 2048:
        TM = 512
    elif M >= 256:
        TM = 256
    else:
        TM = _round_up(M, 8)
    Mp = _round_up(M, TM)

    def pad_m(a):
        if a.shape[0] == Mp:
            return a
        return jnp.pad(a, ((0, Mp - a.shape[0]), (0, 0)))

    inputs = [pad_m(x.astype(jnp.bfloat16)),
              w.astype(jnp.bfloat16),
              scale.reshape(1, N).astype(jnp.float32),
              bias.reshape(1, N).astype(jnp.float32)]
    in_specs = [pl.BlockSpec((TM, K), lambda i: (i, 0)),
                pl.BlockSpec((K, N), lambda i: (0, 0)),
                pl.BlockSpec((1, N), lambda i: (0, 0)),
                pl.BlockSpec((1, N), lambda i: (0, 0))]

    if res_mode == "add":
        inputs.append(pad_m(residual.astype(jnp.float32)))
        in_specs.append(pl.BlockSpec((TM, N), lambda i: (i, 0)))
    elif res_mode == "conv":
        Kr = res_w.shape[0]
        inputs += [pad_m(res_x.astype(jnp.bfloat16)),
                   res_w.astype(jnp.bfloat16),
                   res_scale.reshape(1, N).astype(jnp.float32),
                   res_bias.reshape(1, N).astype(jnp.float32)]
        in_specs += [pl.BlockSpec((TM, Kr), lambda i: (i, 0)),
                     pl.BlockSpec((Kr, N), lambda i: (0, 0)),
                     pl.BlockSpec((1, N), lambda i: (0, 0)),
                     pl.BlockSpec((1, N), lambda i: (0, 0))]

    kern = functools.partial(_mm_bn_kernel, relu=relu, res_mode=res_mode)
    out = pl.pallas_call(
        kern,
        out_shape=jax.ShapeDtypeStruct((Mp, N), jnp.float32),
        grid=(Mp // TM,),
        in_specs=in_specs,
        out_specs=pl.BlockSpec((TM, N), lambda i: (i, 0)),
        compiler_params=pltpu.CompilerParams(
            dimension_semantics=("parallel",)),
    )(*inputs)
    return out if Mp == M else out[:M]


def _gram_heads_kernel(x_ref, wh_ref, bh_ref, wl_ref, bl_ref, hw_ref, lin_ref):
    """Per-batch: Gram = x@x.T/L (kept in VMEM), merged conv1d heads
    W_h @ Gram + b_h, pooled-Gram (row mean; Gram is symmetric) and the merged
    Linear heads pool @ W_l + b_l."""
    x = x_ref[0]                                        # (C, L) bf16
    L = x.shape[1]
    gram = jax.lax.dot_general(
        x, x, (((1,), (1,)), ((), ())),
        preferred_element_type=jnp.float32) * (1.0 / L)  # (C, C) f32, symmetric

    # merged Conv1d(k=1) heads: (CoutP, C) @ (C, C) -> lane-dense (CoutP, C)
    gb = gram.astype(jnp.bfloat16)
    hw = jnp.dot(wh_ref[...], gb, preferred_element_type=jnp.float32)
    hw_ref[0] = hw + bh_ref[...]

    # pooled Gram (AdaptiveAvgPool1d(1)); symmetry => row mean == column mean,
    # computed as a column mean to land directly in a (1, C) row vector.
    pool = jnp.mean(gram, axis=0, keepdims=True)         # (1, C) f32
    lin = jnp.dot(pool.astype(jnp.bfloat16), wl_ref[...],
                  preferred_element_type=jnp.float32) + bl_ref[...]
    lin_ref[0] = lin


def gram_heads(feat, wh, bh, wl, bl):
    """feat:(B,C,L) f32 -> (hyper weights (B,CoutP,C), linear heads (B,NlinP))."""
    B, C, L = feat.shape
    CoutP = wh.shape[0]
    NlinP = wl.shape[1]
    hw, lin = pl.pallas_call(
        _gram_heads_kernel,
        out_shape=(jax.ShapeDtypeStruct((B, CoutP, C), jnp.float32),
                   jax.ShapeDtypeStruct((B, 1, NlinP), jnp.float32)),
        grid=(B,),
        in_specs=[pl.BlockSpec((1, C, L), lambda b: (b, 0, 0)),
                  pl.BlockSpec((CoutP, C), lambda b: (0, 0)),
                  pl.BlockSpec((CoutP, 1), lambda b: (0, 0)),
                  pl.BlockSpec((C, NlinP), lambda b: (0, 0)),
                  pl.BlockSpec((1, NlinP), lambda b: (0, 0))],
        out_specs=(pl.BlockSpec((1, CoutP, C), lambda b: (b, 0, 0)),
                   pl.BlockSpec((1, 1, NlinP), lambda b: (b, 0, 0))),
        compiler_params=pltpu.CompilerParams(
            dimension_semantics=("parallel",)),
    )(feat.astype(jnp.bfloat16), wh.astype(jnp.bfloat16),
      bh.astype(jnp.float32), wl.astype(jnp.bfloat16), bl.astype(jnp.float32))
    return hw, lin[:, 0, :]


# ------------------------------ JAX glue ------------------------------------

def im2col(x, kh, kw, stride, pad):
    """x:(B,H,W,C) NHWC -> ((B*Ho*Wo, kh*kw*C), (B,Ho,Wo))."""
    B, H, W, C = x.shape
    xp = jnp.pad(x, ((0, 0), (pad, pad), (pad, pad), (0, 0)))
    Ho = (H + 2 * pad - kh) // stride + 1
    Wo = (W + 2 * pad - kw) // stride + 1
    cols = []
    for i in range(kh):
        for j in range(kw):
            cols.append(xp[:, i:i + stride * Ho:stride,
                           j:j + stride * Wo:stride, :])
    patches = jnp.concatenate(cols, axis=-1)
    return patches.reshape(B * Ho * Wo, kh * kw * C), (B, Ho, Wo)


def maxpool_3x3_s2_p1(x):
    B, H, W, C = x.shape
    xp = jnp.pad(x, ((0, 0), (1, 1), (1, 1), (0, 0)),
                 constant_values=-jnp.inf)
    Ho = (H + 2 - 3) // 2 + 1
    Wo = (W + 2 - 3) // 2 + 1
    out = None
    for i in range(3):
        for j in range(3):
            s = xp[:, i:i + 2 * Ho:2, j:j + 2 * Wo:2, :]
            out = s if out is None else jnp.maximum(out, s)
    return out


def bottleneck(x, bp, has_down):
    """One ResNet bottleneck; residual add (or downsample conv+BN) + final ReLU
    are fused into the conv3 matmul kernel."""
    B, H, W, Cin = x.shape
    M = B * H * W
    x2d = x.reshape(M, Cin)

    a = fused_matmul_bn(x2d, bp['w1'], bp['bn1_s'], bp['bn1_b'], relu=True)
    patches, _ = im2col(a.reshape(B, H, W, a.shape[1]), 3, 3, 1, 1)
    b = fused_matmul_bn(patches, bp['w2'], bp['bn2_s'], bp['bn2_b'], relu=True)

    if has_down:
        y = fused_matmul_bn(b, bp['w3'], bp['bn3_s'], bp['bn3_b'], relu=True,
                            res_x=x2d, res_w=bp['wd'],
                            res_scale=bp['bnd_s'], res_bias=bp['bnd_b'])
    else:
        y = fused_matmul_bn(b, bp['w3'], bp['bn3_s'], bp['bn3_b'], relu=True,
                            residual=x2d)
    return y.reshape(B, H, W, y.shape[1])


# --------------------------- parameter init --------------------------------

def _bn_fold(c):
    # eval-mode BN with gamma=1, beta=0, running_mean=0, running_var=1
    scale = jnp.full((c,), 1.0 / math.sqrt(1.0 + BN_EPS), jnp.float32)
    bias = jnp.zeros((c,), jnp.float32)
    return scale, bias


def _conv_w2d(key, co, ci, kh, kw, pad_ci_to=None):
    """ResNetBackbone init N(0, sqrt(2/(kh*kw*co))) -> (kh*kw*ci, co) matmul weight."""
    n = kh * kw * co
    w = jax.random.normal(key, (co, ci, kh, kw), jnp.float32) * math.sqrt(2.0 / n)
    if pad_ci_to is not None and pad_ci_to > ci:
        w = jnp.pad(w, ((0, 0), (0, pad_ci_to - ci), (0, 0), (0, 0)))
    ci2 = w.shape[1]
    return jnp.transpose(w, (2, 3, 1, 0)).reshape(kh * kw * ci2, co)


def init_params(key, cfg):
    keys = iter(jax.random.split(key, 64))
    p = {}

    # --- ResNet-50 stem + layer1 (only part OVT_Net's outputs depend on)
    p['stem_w'] = _conv_w2d(next(keys), 64, 3, 7, 7, pad_ci_to=STEM_CIN)
    p['stem_bn_s'], p['stem_bn_b'] = _bn_fold(64)
    layer1 = []
    inplanes = 64
    for i in range(3):
        bp = {}
        bp['w1'] = _conv_w2d(next(keys), 64, inplanes, 1, 1)
        bp['bn1_s'], bp['bn1_b'] = _bn_fold(64)
        bp['w2'] = _conv_w2d(next(keys), 64, 64, 3, 3)
        bp['bn2_s'], bp['bn2_b'] = _bn_fold(64)
        bp['w3'] = _conv_w2d(next(keys), 256, 64, 1, 1)
        bp['bn3_s'], bp['bn3_b'] = _bn_fold(256)
        if i == 0:
            bp['wd'] = _conv_w2d(next(keys), 256, inplanes, 1, 1)
            bp['bnd_s'], bp['bnd_b'] = _bn_fold(256)
        layer1.append(bp)
        inplanes = 256
    p['layer1'] = layer1

    # --- hyper-network heads (merged / padded layouts)
    gs = GRAM_SIZE
    tin, f1, f2, f3, f4 = (cfg['target_in_size'], cfg['f1'], cfg['f2'],
                           cfg['f3'], cfg['f4'])
    c1, c2, c3, c4 = (tin * f1 // gs, f1 * f2 // gs, f2 * f3 // gs,
                      f3 * f4 // gs)

    def lin(out_dim, in_dim):
        w = (jax.random.normal(next(keys), (out_dim, in_dim), jnp.float32)
             / math.sqrt(in_dim))
        b = jax.random.normal(next(keys), (out_dim,), jnp.float32) * 0.01
        return w, b

    # Conv1d(k=1) heads -> one (Cout_total, 256) matrix (padded to mult of 8)
    hw_ws, hw_bs = [], []
    for cout in (c1, c2, c3, c4):
        w, b = lin(cout, gs)
        hw_ws.append(w)
        hw_bs.append(b)
    wh = jnp.concatenate(hw_ws, axis=0)                 # (170, 256)
    bh = jnp.concatenate(hw_bs, axis=0)                 # (170,)
    cout_p = _round_up(wh.shape[0], 8)
    p['head_wh'] = jnp.pad(wh, ((0, cout_p - wh.shape[0]), (0, 0)))
    p['head_bh'] = jnp.pad(bh, (0, cout_p - bh.shape[0])).reshape(cout_p, 1)

    # Linear heads -> one (256, N_total) matrix (padded to mult of 128 lanes)
    ln_ws, ln_bs = [], []
    for odim in (f1, f2, f3, f4, f4, 1):                # fc1b..fc4b, fc5w, fc5b
        w, b = lin(odim, gs)
        ln_ws.append(jnp.transpose(w))                  # (256, odim)
        ln_bs.append(b)
    wl = jnp.concatenate(ln_ws, axis=1)                 # (256, 257)
    bl = jnp.concatenate(ln_bs, axis=0)                 # (257,)
    nlin_p = _round_up(wl.shape[1], 128)
    p['head_wl'] = jnp.pad(wl, ((0, 0), (0, nlin_p - wl.shape[1])))
    p['head_bl'] = jnp.pad(bl, (0, nlin_p - bl.shape[0])).reshape(1, nlin_p)
    return p


# ------------------------------ forward ------------------------------------

def ovt_forward(params, S_img, content_w_vec, style_w_vec, *, cfg):
    gs = GRAM_SIZE
    f1, f2, f3, f4 = cfg['f1'], cfg['f2'], cfg['f3'], cfg['f4']
    tin = cfg['target_in_size']

    # Backbone: conv1 + bn + relu + maxpool + layer1  ->  res_out_S2
    x = jnp.transpose(S_img, (0, 2, 3, 1))              # NCHW -> NHWC
    x = jnp.pad(x, ((0, 0), (0, 0), (0, 0), (0, STEM_CIN - x.shape[-1])))
    patches, (B, Ho, Wo) = im2col(x, 7, 7, 2, 3)
    y = fused_matmul_bn(patches, params['stem_w'],
                        params['stem_bn_s'], params['stem_bn_b'], relu=True)
    x = y.reshape(B, Ho, Wo, 64)
    x = maxpool_3x3_s2_p1(x)
    for i, bp in enumerate(params['layer1']):
        x = bottleneck(x, bp, has_down=(i == 0))
    # (backbone layers 2-4 are dead compute for OVT_Net's outputs -- skipped)

    B, H, W, C = x.shape
    feat = jnp.transpose(x.reshape(B, H * W, C), (0, 2, 1))   # (B, 256, HW)

    # Gram + pooled-Gram + all hyper heads in a single fused Pallas kernel.
    hw, lin = gram_heads(feat, params['head_wh'], params['head_bh'],
                         params['head_wl'], params['head_bl'])

    c1, c2, c3, c4 = tin * f1 // gs, f1 * f2 // gs, f2 * f3 // gs, f3 * f4 // gs
    o1, o2, o3, o4 = c1, c1 + c2, c1 + c2 + c3, c1 + c2 + c3 + c4
    l1 = f1
    l2 = l1 + f2
    l3 = l2 + f3
    l4 = l3 + f4
    l5 = l4 + f4
    l6 = l5 + 1

    out = {}
    out['c_target_in_vec'] = content_w_vec
    out['s_target_in_vec'] = style_w_vec
    out['target_fc1w'] = hw[:, :o1, :].reshape(-1, f1, tin, 1, 1)
    out['target_fc1b'] = lin[:, :l1].reshape(-1, f1)
    out['target_fc2w'] = hw[:, o1:o2, :].reshape(-1, f2, f1, 1, 1)
    out['target_fc2b'] = lin[:, l1:l2].reshape(-1, f2)
    out['target_fc3w'] = hw[:, o2:o3, :].reshape(-1, f3, f2, 1, 1)
    out['target_fc3b'] = lin[:, l2:l3].reshape(-1, f3)
    out['target_fc4w'] = hw[:, o3:o4, :].reshape(-1, f4, f3, 1, 1)
    out['target_fc4b'] = lin[:, l3:l4].reshape(-1, f4)
    out['target_fc5w'] = lin[:, l4:l5].reshape(-1, 1, f4, 1, 1)
    out['target_fc5b'] = lin[:, l5:l6].reshape(-1, 1)
    return out


# -------------------------------- main --------------------------------------

if __name__ == "__main__":
    cfg = dict(hyper_in_channels=112, target_in_size=256,
               f1=128, f2=64, f3=32, f4=16, feature_size=7)

    key = jax.random.PRNGKey(0)
    kp, kx, kc, ks = jax.random.split(key, 4)
    params = init_params(kp, cfg)

    B = 2
    S_img = jax.random.normal(kx, (B, 3, 32, 32), jnp.float32)   # NCHW as in torch
    content_w_vec = jax.random.normal(kc, (B, cfg['target_in_size']), jnp.float32)
    style_w_vec = jax.random.normal(ks, (B, cfg['target_in_size']), jnp.float32)

    fwd = jax.jit(functools.partial(ovt_forward, cfg=cfg))
    out = fwd(params, S_img, content_w_vec, style_w_vec)
    jax.block_until_ready(out)

    assert out['target_fc1w'].shape == (B, cfg['f1'], cfg['target_in_size'], 1, 1)
    assert out['target_fc2w'].shape == (B, cfg['f2'], cfg['f1'], 1, 1)
    assert out['target_fc3w'].shape == (B, cfg['f3'], cfg['f2'], 1, 1)
    assert out['target_fc4w'].shape == (B, cfg['f4'], cfg['f3'], 1, 1)
    assert out['target_fc5w'].shape == (B, 1, cfg['f4'], 1, 1)
    assert out['target_fc1b'].shape == (B, cfg['f1'])
    assert out['target_fc2b'].shape == (B, cfg['f2'])
    assert out['target_fc3b'].shape == (B, cfg['f3'])
    assert out['target_fc4b'].shape == (B, cfg['f4'])
    assert out['target_fc5b'].shape == (B, 1)
    assert all(jnp.all(jnp.isfinite(v)) for v in out.values())

    print("KERNEL_OK")
</pallas_src>

<mosaic_0001>
module attributes {stable_mosaic.version = 11 : i64} {
  func.func @_mm_bn_kernel(%arg0: i32, %arg1: memref<256x392xbf16, #tpu.memory_space<vmem>>, %arg2: memref<392x64xbf16, #tpu.memory_space<vmem>>, %arg3: memref<1x64xf32, #tpu.memory_space<vmem>>, %arg4: memref<1x64xf32, #tpu.memory_space<vmem>>, %arg5: memref<256x64xf32, #tpu.memory_space<vmem>>) attributes {dimension_semantics = [#tpu.dimension_semantics<parallel>], iteration_bounds = array<i64: 2>, scalar_prefetch = 0 : i64, scratch_operands = 0 : i64, tpu.core_type = #tpu.core_type<tc>, window_params = [{transform_indices = @transform_0, window_bounds = array<i64: 256, 392>}, {pipeline_mode = #tpu.pipeline_mode<synchronous>, transform_indices = @transform_1, window_bounds = array<i64: 392, 64>}, {pipeline_mode = #tpu.pipeline_mode<synchronous>, transform_indices = @transform_2, window_bounds = array<i64: 1, 64>}, {pipeline_mode = #tpu.pipeline_mode<synchronous>, transform_indices = @transform_3, window_bounds = array<i64: 1, 64>}, {transform_indices = @transform_4, window_bounds = array<i64: 256, 64>}]} {
    %c0 = arith.constant 0 : index
    %c0_0 = arith.constant 0 : index
    %0 = vector.load %arg1[%c0, %c0_0] : memref<256x392xbf16, #tpu.memory_space<vmem>>, vector<256x392xbf16>
    %c0_1 = arith.constant 0 : index
    %c0_2 = arith.constant 0 : index
    %1 = vector.load %arg2[%c0_1, %c0_2] : memref<392x64xbf16, #tpu.memory_space<vmem>>, vector<392x64xbf16>
    %cst = arith.constant dense<0.000000e+00> : vector<256x64xf32>
    %2 = tpu.matmul %0, %1, %cst {dimension_numbers = #tpu.dot_dimension_numbers<[1], [0], [0], [1], [0, 0, 1, 1], [], []>} : vector<256x392xbf16>, vector<392x64xbf16>, vector<256x64xf32> -> vector<256x64xf32>
    %c0_3 = arith.constant 0 : index
    %c0_4 = arith.constant 0 : index
    %3 = vector.load %arg3[%c0_3, %c0_4] : memref<1x64xf32, #tpu.memory_space<vmem>>, vector<1x64xf32>
    %4 = vector.broadcast %3 : vector<1x64xf32> to vector<256x64xf32>
    %5 = arith.mulf %2, %4 : vector<256x64xf32>
    %c0_5 = arith.constant 0 : index
    %c0_6 = arith.constant 0 : index
    %6 = vector.load %arg4[%c0_5, %c0_6] : memref<1x64xf32, #tpu.memory_space<vmem>>, vector<1x64xf32>
    %7 = vector.broadcast %6 : vector<1x64xf32> to vector<256x64xf32>
    %8 = arith.addf %5, %7 : vector<256x64xf32>
    %cst_7 = arith.constant 0.000000e+00 : f32
    %9 = vector.broadcast %cst_7 : f32 to vector<256x64xf32>
    %10 = arith.maximumf %8, %9 : vector<256x64xf32>
    %c0_8 = arith.constant 0 : index
    %c0_9 = arith.constant 0 : index
    %11 = vector.load %arg5[%c0_8, %c0_9] : memref<256x64xf32, #tpu.memory_space<vmem>>, vector<256x64xf32>
    tpu.vector_store %arg5[%c0_8, %c0_9], %10 {strides = array<i32>} : memref<256x64xf32, #tpu.memory_space<vmem>>, vector<256x64xf32>,
    return
  }
  func.func @transform_0(%arg0: i32) -> (i32, i32) {
    %c0_i32 = arith.constant 0 : i32
    %c0_i32_0 = arith.constant 0 : i32
    return %arg0, %c0_i32 : i32, i32
  }
  func.func @transform_1(%arg0: i32) -> (i32, i32) {
    %c0_i32 = arith.constant 0 : i32
    %c0_i32_0 = arith.constant 0 : i32
    %c0_i32_1 = arith.constant 0 : i32
    return %c0_i32, %c0_i32_0 : i32, i32
  }
  func.func @transform_2(%arg0: i32) -> (i32, i32) {
    %c0_i32 = arith.constant 0 : i32
    %c0_i32_0 = arith.constant 0 : i32
    %c0_i32_1 = arith.constant 0 : i32
    return %c0_i32, %c0_i32_0 : i32, i32
  }
  func.func @transform_3(%arg0: i32) -> (i32, i32) {
    %c0_i32 = arith.constant 0 : i32
    %c0_i32_0 = arith.constant 0 : i32
    %c0_i32_1 = arith.constant 0 : i32
    return %c0_i32, %c0_i32_0 : i32, i32
  }
  func.func @transform_4(%arg0: i32) -> (i32, i32) {
    %c0_i32 = arith.constant 0 : i32
    %c0_i32_0 = arith.constant 0 : i32
    return %arg0, %c0_i32 : i32, i32
  }
}

module attributes {stable_mosaic.version = 11 : i64} {
  func.func @_mm_bn_kernel(%arg0: i32, %arg1: memref<128x64xbf16, #tpu.memory_space<vmem>>, %arg2: memref<64x64xbf16, #tpu.memory_space<vmem>>, %arg3: memref<1x64xf32, #tpu.memory_space<vmem>>, %arg4: memref<1x64xf32, #tpu.memory_space<vmem>>, %arg5: memref<128x64xf32, #tpu.memory_space<vmem>>) attributes {dimension_semantics = [#tpu.dimension_semantics<parallel>], iteration_bounds = array<i64: 1>, scalar_prefetch = 0 : i64, scratch_operands = 0 : i64, tpu.core_type = #tpu.core_type<tc>, window_params = [{transform_indices = @transform_0, window_bounds = array<i64: 128, 64>}, {pipeline_mode = #tpu.pipeline_mode<synchronous>, transform_indices = @transform_1, window_bounds = array<i64: 64, 64>}, {pipeline_mode = #tpu.pipeline_mode<synchronous>, transform_indices = @transform_2, window_bounds = array<i64: 1, 64>}, {pipeline_mode = #tpu.pipeline_mode<synchronous>, transform_indices = @transform_3, window_bounds = array<i64: 1, 64>}, {transform_indices = @transform_4, window_bounds = array<i64: 128, 64>}]} {
    %c0 = arith.constant 0 : index
    %c0_0 = arith.constant 0 : index
    %0 = vector.load %arg1[%c0, %c0_0] : memref<128x64xbf16, #tpu.memory_space<vmem>>, vector<128x64xbf16>
    %c0_1 = arith.constant 0 : index
    %c0_2 = arith.constant 0 : index
    %1 = vector.load %arg2[%c0_1, %c0_2] : memref<64x64xbf16, #tpu.memory_space<vmem>>, vector<64x64xbf16>
    %cst = arith.constant dense<0.000000e+00> : vector<128x64xf32>
    %2 = tpu.matmul %0, %1, %cst {dimension_numbers = #tpu.dot_dimension_numbers<[1], [0], [0], [1], [0, 0, 1, 1], [], []>} : vector<128x64xbf16>, vector<64x64xbf16>, vector<128x64xf32> -> vector<128x64xf32>
    %c0_3 = arith.constant 0 : index
    %c0_4 = arith.constant 0 : index
    %3 = vector.load %arg3[%c0_3, %c0_4] : memref<1x64xf32, #tpu.memory_space<vmem>>, vector<1x64xf32>
    %4 = vector.broadcast %3 : vector<1x64xf32> to vector<128x64xf32>
    %5 = arith.mulf %2, %4 : vector<128x64xf32>
    %c0_5 = arith.constant 0 : index
    %c0_6 = arith.constant 0 : index
    %6 = vector.load %arg4[%c0_5, %c0_6] : memref<1x64xf32, #tpu.memory_space<vmem>>, vector<1x64xf32>
    %7 = vector.broadcast %6 : vector<1x64xf32> to vector<128x64xf32>
    %8 = arith.addf %5, %7 : vector<128x64xf32>
    %cst_7 = arith.constant 0.000000e+00 : f32
    %9 = vector.broadcast %cst_7 : f32 to vector<128x64xf32>
    %10 = arith.maximumf %8, %9 : vector<128x64xf32>
    %c0_8 = arith.constant 0 : index
    %c0_9 = arith.constant 0 : index
    %11 = vector.load %arg5[%c0_8, %c0_9] : memref<128x64xf32, #tpu.memory_space<vmem>>, vector<128x64xf32>
    tpu.vector_store %arg5[%c0_8, %c0_9], %10 {strides = array<i32>} : memref<128x64xf32, #tpu.memory_space<vmem>>, vector<128x64xf32>,
    return
  }
  func.func @transform_0(%arg0: i32) -> (i32, i32) {
    %c0_i32 = arith.constant 0 : i32
    %c0_i32_0 = arith.constant 0 : i32
    return %arg0, %c0_i32 : i32, i32
  }
  func.func @transform_1(%arg0: i32) -> (i32, i32) {
    %c0_i32 = arith.constant 0 : i32
    %c0_i32_0 = arith.constant 0 : i32
    %c0_i32_1 = arith.constant 0 : i32
    return %c0_i32, %c0_i32_0 : i32, i32
  }
  func.func @transform_2(%arg0: i32) -> (i32, i32) {
    %c0_i32 = arith.constant 0 : i32
    %c0_i32_0 = arith.constant 0 : i32
    %c0_i32_1 = arith.constant 0 : i32
    return %c0_i32, %c0_i32_0 : i32, i32
  }
  func.func @transform_3(%arg0: i32) -> (i32, i32) {
    %c0_i32 = arith.constant 0 : i32
    %c0_i32_0 = arith.constant 0 : i32
    %c0_i32_1 = arith.constant 0 : i32
    return %c0_i32, %c0_i32_0 : i32, i32
  }
  func.func @transform_4(%arg0: i32) -> (i32, i32) {
    %c0_i32 = arith.constant 0 : i32
    %c0_i32_0 = arith.constant 0 : i32
    return %arg0, %c0_i32 : i32, i32
  }
}

module attributes {stable_mosaic.version = 11 : i64} {
  func.func @_mm_bn_kernel(%arg0: i32, %arg1: memref<128x576xbf16, #tpu.memory_space<vmem>>, %arg2: memref<576x64xbf16, #tpu.memory_space<vmem>>, %arg3: memref<1x64xf32, #tpu.memory_space<vmem>>, %arg4: memref<1x64xf32, #tpu.memory_space<vmem>>, %arg5: memref<128x64xf32, #tpu.memory_space<vmem>>) attributes {dimension_semantics = [#tpu.dimension_semantics<parallel>], iteration_bounds = array<i64: 1>, scalar_prefetch = 0 : i64, scratch_operands = 0 : i64, tpu.core_type = #tpu.core_type<tc>, window_params = [{transform_indices = @transform_0, window_bounds = array<i64: 128, 576>}, {pipeline_mode = #tpu.pipeline_mode<synchronous>, transform_indices = @transform_1, window_bounds = array<i64: 576, 64>}, {pipeline_mode = #tpu.pipeline_mode<synchronous>, transform_indices = @transform_2, window_bounds = array<i64: 1, 64>}, {pipeline_mode = #tpu.pipeline_mode<synchronous>, transform_indices = @transform_3, window_bounds = array<i64: 1, 64>}, {transform_indices = @transform_4, window_bounds = array<i64: 128, 64>}]} {
    %c0 = arith.constant 0 : index
    %c0_0 = arith.constant 0 : index
    %0 = vector.load %arg1[%c0, %c0_0] : memref<128x576xbf16, #tpu.memory_space<vmem>>, vector<128x576xbf16>
    %c0_1 = arith.constant 0 : index
    %c0_2 = arith.constant 0 : index
    %1 = vector.load %arg2[%c0_1, %c0_2] : memref<576x64xbf16, #tpu.memory_space<vmem>>, vector<576x64xbf16>
    %cst = arith.constant dense<0.000000e+00> : vector<128x64xf32>
    %2 = tpu.matmul %0, %1, %cst {dimension_numbers = #tpu.dot_dimension_numbers<[1], [0], [0], [1], [0, 0, 1, 1], [], []>} : vector<128x576xbf16>, vector<576x64xbf16>, vector<128x64xf32> -> vector<128x64xf32>
    %c0_3 = arith.constant 0 : index
    %c0_4 = arith.constant 0 : index
    %3 = vector.load %arg3[%c0_3, %c0_4] : memref<1x64xf32, #tpu.memory_space<vmem>>, vector<1x64xf32>
    %4 = vector.broadcast %3 : vector<1x64xf32> to vector<128x64xf32>
    %5 = arith.mulf %2, %4 : vector<128x64xf32>
    %c0_5 = arith.constant 0 : index
    %c0_6 = arith.constant 0 : index
    %6 = vector.load %arg4[%c0_5, %c0_6] : memref<1x64xf32, #tpu.memory_space<vmem>>, vector<1x64xf32>
    %7 = vector.broadcast %6 : vector<1x64xf32> to vector<128x64xf32>
    %8 = arith.addf %5, %7 : vector<128x64xf32>
    %cst_7 = arith.constant 0.000000e+00 : f32
    %9 = vector.broadcast %cst_7 : f32 to vector<128x64xf32>
    %10 = arith.maximumf %8, %9 : vector<128x64xf32>
    %c0_8 = arith.constant 0 : index
    %c0_9 = arith.constant 0 : index
    %11 = vector.load %arg5[%c0_8, %c0_9] : memref<128x64xf32, #tpu.memory_space<vmem>>, vector<128x64xf32>
    tpu.vector_store %arg5[%c0_8, %c0_9], %10 {strides = array<i32>} : memref<128x64xf32, #tpu.memory_space<vmem>>, vector<128x64xf32>,
    return
  }
  func.func @transform_0(%arg0: i32) -> (i32, i32) {
    %c0_i32 = arith.constant 0 : i32
    %c0_i32_0 = arith.constant 0 : i32
    return %arg0, %c0_i32 : i32, i32
  }
  func.func @transform_1(%arg0: i32) -> (i32, i32) {
    %c0_i32 = arith.constant 0 : i32
    %c0_i32_0 = arith.constant 0 : i32
    %c0_i32_1 = arith.constant 0 : i32
    return %c0_i32, %c0_i32_0 : i32, i32
  }
  func.func @transform_2(%arg0: i32) -> (i32, i32) {
    %c0_i32 = arith.constant 0 : i32
    %c0_i32_0 = arith.constant 0 : i32
    %c0_i32_1 = arith.constant 0 : i32
    return %c0_i32, %c0_i32_0 : i32, i32
  }
  func.func @transform_3(%arg0: i32) -> (i32, i32) {
    %c0_i32 = arith.constant 0 : i32
    %c0_i32_0 = arith.constant 0 : i32
    %c0_i32_1 = arith.constant 0 : i32
    return %c0_i32, %c0_i32_0 : i32, i32
  }
  func.func @transform_4(%arg0: i32) -> (i32, i32) {
    %c0_i32 = arith.constant 0 : i32
    %c0_i32_0 = arith.constant 0 : i32
    return %arg0, %c0_i32 : i32, i32
  }
}

module attributes {stable_mosaic.version = 11 : i64} {
  func.func @_mm_bn_kernel(%arg0: i32, %arg1: memref<128x64xbf16, #tpu.memory_space<vmem>>, %arg2: memref<64x256xbf16, #tpu.memory_space<vmem>>, %arg3: memref<1x256xf32, #tpu.memory_space<vmem>>, %arg4: memref<1x256xf32, #tpu.memory_space<vmem>>, %arg5: memref<128x64xbf16, #tpu.memory_space<vmem>>, %arg6: memref<64x256xbf16, #tpu.memory_space<vmem>>, %arg7: memref<1x256xf32, #tpu.memory_space<vmem>>, %arg8: memref<1x256xf32, #tpu.memory_space<vmem>>, %arg9: memref<128x256xf32, #tpu.memory_space<vmem>>) attributes {dimension_semantics = [#tpu.dimension_semantics<parallel>], iteration_bounds = array<i64: 1>, scalar_prefetch = 0 : i64, scratch_operands = 0 : i64, tpu.core_type = #tpu.core_type<tc>, window_params = [{transform_indices = @transform_0, window_bounds = array<i64: 128, 64>}, {pipeline_mode = #tpu.pipeline_mode<synchronous>, transform_indices = @transform_1, window_bounds = array<i64: 64, 256>}, {pipeline_mode = #tpu.pipeline_mode<synchronous>, transform_indices = @transform_2, window_bounds = array<i64: 1, 256>}, {pipeline_mode = #tpu.pipeline_mode<synchronous>, transform_indices = @transform_3, window_bounds = array<i64: 1, 256>}, {transform_indices = @transform_4, window_bounds = array<i64: 128, 64>}, {pipeline_mode = #tpu.pipeline_mode<synchronous>, transform_indices = @transform_5, window_bounds = array<i64: 64, 256>}, {pipeline_mode = #tpu.pipeline_mode<synchronous>, transform_indices = @transform_6, window_bounds = array<i64: 1, 256>}, {pipeline_mode = #tpu.pipeline_mode<synchronous>, transform_indices = @transform_7, window_bounds = array<i64: 1, 256>}, {transform_indices = @transform_8, window_bounds = array<i64: 128, 256>}]} {
    %c0 = arith.constant 0 : index
    %c0_0 = arith.constant 0 : index
    %0 = vector.load %arg1[%c0, %c0_0] : memref<128x64xbf16, #tpu.memory_space<vmem>>, vector<128x64xbf16>
    %c0_1 = arith.constant 0 : index
    %c0_2 = arith.constant 0 : index
    %1 = vector.load %arg2[%c0_1, %c0_2] : memref<64x256xbf16, #tpu.memory_space<vmem>>, vector<64x256xbf16>
    %cst = arith.constant dense<0.000000e+00> : vector<128x256xf32>
    %2 = tpu.matmul %0, %1, %cst {dimension_numbers = #tpu.dot_dimension_numbers<[1], [0], [0], [1], [0, 0, 1, 1], [], []>} : vector<128x64xbf16>, vector<64x256xbf16>, vector<128x256xf32> -> vector<128x256xf32>
    %c0_3 = arith.constant 0 : index
    %c0_4 = arith.constant 0 : index
    %3 = vector.load %arg3[%c0_3, %c0_4] : memref<1x256xf32, #tpu.memory_space<vmem>>, vector<1x256xf32>
    %4 = vector.broadcast %3 : vector<1x256xf32> to vector<128x256xf32>
    %5 = arith.mulf %2, %4 : vector<128x256xf32>
    %c0_5 = arith.constant 0 : index
    %c0_6 = arith.constant 0 : index
    %6 = vector.load %arg4[%c0_5, %c0_6] : memref<1x256xf32, #tpu.memory_space<vmem>>, vector<1x256xf32>
    %7 = vector.broadcast %6 : vector<1x256xf32> to vector<128x256xf32>
    %8 = arith.addf %5, %7 : vector<128x256xf32>
    %c0_7 = arith.constant 0 : index
    %c0_8 = arith.constant 0 : index
    %9 = vector.load %arg5[%c0_7, %c0_8] : memref<128x64xbf16, #tpu.memory_space<vmem>>, vector<128x64xbf16>
    %c0_9 = arith.constant 0 : index
    %c0_10 = arith.constant 0 : index
    %10 = vector.load %arg6[%c0_9, %c0_10] : memref<64x256xbf16, #tpu.memory_space<vmem>>, vector<64x256xbf16>
    %cst_11 = arith.constant dense<0.000000e+00> : vector<128x256xf32>
    %11 = tpu.matmul %9, %10, %cst_11 {dimension_numbers = #tpu.dot_dimension_numbers<[1], [0], [0], [1], [0, 0, 1, 1], [], []>} : vector<128x64xbf16>, vector<64x256xbf16>, vector<128x256xf32> -> vector<128x256xf32>
    %c0_12 = arith.constant 0 : index
    %c0_13 = arith.constant 0 : index
    %12 = vector.load %arg7[%c0_12, %c0_13] : memref<1x256xf32, #tpu.memory_space<vmem>>, vector<1x256xf32>
    %13 = vector.broadcast %12 : vector<1x256xf32> to vector<128x256xf32>
    %14 = arith.mulf %11, %13 : vector<128x256xf32>
    %c0_14 = arith.constant 0 : index
    %c0_15 = arith.constant 0 : index
    %15 = vector.load %arg8[%c0_14, %c0_15] : memref<1x256xf32, #tpu.memory_space<vmem>>, vector<1x256xf32>
    %16 = vector.broadcast %15 : vector<1x256xf32> to vector<128x256xf32>
    %17 = arith.addf %14, %16 : vector<128x256xf32>
    %18 = arith.addf %8, %17 : vector<128x256xf32>
    %cst_16 = arith.constant 0.000000e+00 : f32
    %19 = vector.broadcast %cst_16 : f32 to vector<128x256xf32>
    %20 = arith.maximumf %18, %19 : vector<128x256xf32>
    %c0_17 = arith.constant 0 : index
    %c0_18 = arith.constant 0 : index
    %21 = vector.load %arg9[%c0_17, %c0_18] : memref<128x256xf32, #tpu.memory_space<vmem>>, vector<128x256xf32>
    tpu.vector_store %arg9[%c0_17, %c0_18], %20 {strides = array<i32>} : memref<128x256xf32, #tpu.memory_space<vmem>>, vector<128x256xf32>,
    return
  }
  func.func @transform_0(%arg0: i32) -> (i32, i32) {
    %c0_i32 = arith.constant 0 : i32
    %c0_i32_0 = arith.constant 0 : i32
    return %arg0, %c0_i32 : i32, i32
  }
  func.func @transform_1(%arg0: i32) -> (i32, i32) {
    %c0_i32 = arith.constant 0 : i32
    %c0_i32_0 = arith.constant 0 : i32
    %c0_i32_1 = arith.constant 0 : i32
    return %c0_i32, %c0_i32_0 : i32, i32
  }
  func.func @transform_2(%arg0: i32) -> (i32, i32) {
    %c0_i32 = arith.constant 0 : i32
    %c0_i32_0 = arith.constant 0 : i32
    %c0_i32_1 = arith.constant 0 : i32
    return %c0_i32, %c0_i32_0 : i32, i32
  }
  func.func @transform_3(%arg0: i32) -> (i32, i32) {
    %c0_i32 = arith.constant 0 : i32
    %c0_i32_0 = arith.constant 0 : i32
    %c0_i32_1 = arith.constant 0 : i32
    return %c0_i32, %c0_i32_0 : i32, i32
  }
  func.func @transform_4(%arg0: i32) -> (i32, i32) {
    %c0_i32 = arith.constant 0 : i32
    %c0_i32_0 = arith.constant 0 : i32
    return %arg0, %c0_i32 : i32, i32
  }
  func.func @transform_5(%arg0: i32) -> (i32, i32) {
    %c0_i32 = arith.constant 0 : i32
    %c0_i32_0 = arith.constant 0 : i32
    %c0_i32_1 = arith.constant 0 : i32
    return %c0_i32, %c0_i32_0 : i32, i32
  }
  func.func @transform_6(%arg0: i32) -> (i32, i32) {
    %c0_i32 = arith.constant 0 : i32
    %c0_i32_0 = arith.constant 0 : i32
    %c0_i32_1 = arith.constant 0 : i32
    return %c0_i32, %c0_i32_0 : i32, i32
  }
  func.func @transform_7(%arg0: i32) -> (i32, i32) {
    %c0_i32 = arith.constant 0 : i32
    %c0_i32_0 = arith.constant 0 : i32
    %c0_i32_1 = arith.constant 0 : i32
    return %c0_i32, %c0_i32_0 : i32, i32
  }
  func.func @transform_8(%arg0: i32) -> (i32, i32) {
    %c0_i32 = arith.constant 0 : i32
    %c0_i32_0 = arith.constant 0 : i32
    return %arg0, %c0_i32 : i32, i32
  }
}

module attributes {stable_mosaic.version = 11 : i64} {
  func.func @_mm_bn_kernel(%arg0: i32, %arg1: memref<128x256xbf16, #tpu.memory_space<vmem>>, %arg2: memref<256x64xbf16, #tpu.memory_space<vmem>>, %arg3: memref<1x64xf32, #tpu.memory_space<vmem>>, %arg4: memref<1x64xf32, #tpu.memory_space<vmem>>, %arg5: memref<128x64xf32, #tpu.memory_space<vmem>>) attributes {dimension_semantics = [#tpu.dimension_semantics<parallel>], iteration_bounds = array<i64: 1>, scalar_prefetch = 0 : i64, scratch_operands = 0 : i64, tpu.core_type = #tpu.core_type<tc>, window_params = [{transform_indices = @transform_0, window_bounds = array<i64: 128, 256>}, {pipeline_mode = #tpu.pipeline_mode<synchronous>, transform_indices = @transform_1, window_bounds = array<i64: 256, 64>}, {pipeline_mode = #tpu.pipeline_mode<synchronous>, transform_indices = @transform_2, window_bounds = array<i64: 1, 64>}, {pipeline_mode = #tpu.pipeline_mode<synchronous>, transform_indices = @transform_3, window_bounds = array<i64: 1, 64>}, {transform_indices = @transform_4, window_bounds = array<i64: 128, 64>}]} {
    %c0 = arith.constant 0 : index
    %c0_0 = arith.constant 0 : index
    %0 = vector.load %arg1[%c0, %c0_0] : memref<128x256xbf16, #tpu.memory_space<vmem>>, vector<128x256xbf16>
    %c0_1 = arith.constant 0 : index
    %c0_2 = arith.constant 0 : index
    %1 = vector.load %arg2[%c0_1, %c0_2] : memref<256x64xbf16, #tpu.memory_space<vmem>>, vector<256x64xbf16>
    %cst = arith.constant dense<0.000000e+00> : vector<128x64xf32>
    %2 = tpu.matmul %0, %1, %cst {dimension_numbers = #tpu.dot_dimension_numbers<[1], [0], [0], [1], [0, 0, 1, 1], [], []>} : vector<128x256xbf16>, vector<256x64xbf16>, vector<128x64xf32> -> vector<128x64xf32>
    %c0_3 = arith.constant 0 : index
    %c0_4 = arith.constant 0 : index
    %3 = vector.load %arg3[%c0_3, %c0_4] : memref<1x64xf32, #tpu.memory_space<vmem>>, vector<1x64xf32>
    %4 = vector.broadcast %3 : vector<1x64xf32> to vector<128x64xf32>
    %5 = arith.mulf %2, %4 : vector<128x64xf32>
    %c0_5 = arith.constant 0 : index
    %c0_6 = arith.constant 0 : index
    %6 = vector.load %arg4[%c0_5, %c0_6] : memref<1x64xf32, #tpu.memory_space<vmem>>, vector<1x64xf32>
    %7 = vector.broadcast %6 : vector<1x64xf32> to vector<128x64xf32>
    %8 = arith.addf %5, %7 : vector<128x64xf32>
    %cst_7 = arith.constant 0.000000e+00 : f32
    %9 = vector.broadcast %cst_7 : f32 to vector<128x64xf32>
    %10 = arith.maximumf %8, %9 : vector<128x64xf32>
    %c0_8 = arith.constant 0 : index
    %c0_9 = arith.constant 0 : index
    %11 = vector.load %arg5[%c0_8, %c0_9] : memref<128x64xf32, #tpu.memory_space<vmem>>, vector<128x64xf32>
    tpu.vector_store %arg5[%c0_8, %c0_9], %10 {strides = array<i32>} : memref<128x64xf32, #tpu.memory_space<vmem>>, vector<128x64xf32>,
    return
  }
  func.func @transform_0(%arg0: i32) -> (i32, i32) {
    %c0_i32 = arith.constant 0 : i32
    %c0_i32_0 = arith.constant 0 : i32
    return %arg0, %c0_i32 : i32, i32
  }
  func.func @transform_1(%arg0: i32) -> (i32, i32) {
    %c0_i32 = arith.constant 0 : i32
    %c0_i32_0 = arith.constant 0 : i32
    %c0_i32_1 = arith.constant 0 : i32
    return %c0_i32, %c0_i32_0 : i32, i32
  }
  func.func @transform_2(%arg0: i32) -> (i32, i32) {
    %c0_i32 = arith.constant 0 : i32
    %c0_i32_0 = arith.constant 0 : i32
    %c0_i32_1 = arith.constant 0 : i32
    return %c0_i32, %c0_i32_0 : i32, i32
  }
  func.func @transform_3(%arg0: i32) -> (i32, i32) {
    %c0_i32 = arith.constant 0 : i32
    %c0_i32_0 = arith.constant 0 : i32
    %c0_i32_1 = arith.constant 0 : i32
    return %c0_i32, %c0_i32_0 : i32, i32
  }
  func.func @transform_4(%arg0: i32) -> (i32, i32) {
    %c0_i32 = arith.constant 0 : i32
    %c0_i32_0 = arith.constant 0 : i32
    return %arg0, %c0_i32 : i32, i32
  }
}

module attributes {stable_mosaic.version = 11 : i64} {
  func.func @_mm_bn_kernel(%arg0: i32, %arg1: memref<128x64xbf16, #tpu.memory_space<vmem>>, %arg2: memref<64x256xbf16, #tpu.memory_space<vmem>>, %arg3: memref<1x256xf32, #tpu.memory_space<vmem>>, %arg4: memref<1x256xf32, #tpu.memory_space<vmem>>, %arg5: memref<128x256xf32, #tpu.memory_space<vmem>>, %arg6: memref<128x256xf32, #tpu.memory_space<vmem>>) attributes {dimension_semantics = [#tpu.dimension_semantics<parallel>], iteration_bounds = array<i64: 1>, scalar_prefetch = 0 : i64, scratch_operands = 0 : i64, tpu.core_type = #tpu.core_type<tc>, window_params = [{transform_indices = @transform_0, window_bounds = array<i64: 128, 64>}, {pipeline_mode = #tpu.pipeline_mode<synchronous>, transform_indices = @transform_1, window_bounds = array<i64: 64, 256>}, {pipeline_mode = #tpu.pipeline_mode<synchronous>, transform_indices = @transform_2, window_bounds = array<i64: 1, 256>}, {pipeline_mode = #tpu.pipeline_mode<synchronous>, transform_indices = @transform_3, window_bounds = array<i64: 1, 256>}, {transform_indices = @transform_4, window_bounds = array<i64: 128, 256>}, {transform_indices = @transform_5, window_bounds = array<i64: 128, 256>}]} {
    %c0 = arith.constant 0 : index
    %c0_0 = arith.constant 0 : index
    %0 = vector.load %arg1[%c0, %c0_0] : memref<128x64xbf16, #tpu.memory_space<vmem>>, vector<128x64xbf16>
    %c0_1 = arith.constant 0 : index
    %c0_2 = arith.constant 0 : index
    %1 = vector.load %arg2[%c0_1, %c0_2] : memref<64x256xbf16, #tpu.memory_space<vmem>>, vector<64x256xbf16>
    %cst = arith.constant dense<0.000000e+00> : vector<128x256xf32>
    %2 = tpu.matmul %0, %1, %cst {dimension_numbers = #tpu.dot_dimension_numbers<[1], [0], [0], [1], [0, 0, 1, 1], [], []>} : vector<128x64xbf16>, vector<64x256xbf16>, vector<128x256xf32> -> vector<128x256xf32>
    %c0_3 = arith.constant 0 : index
    %c0_4 = arith.constant 0 : index
    %3 = vector.load %arg3[%c0_3, %c0_4] : memref<1x256xf32, #tpu.memory_space<vmem>>, vector<1x256xf32>
    %4 = vector.broadcast %3 : vector<1x256xf32> to vector<128x256xf32>
    %5 = arith.mulf %2, %4 : vector<128x256xf32>
    %c0_5 = arith.constant 0 : index
    %c0_6 = arith.constant 0 : index
    %6 = vector.load %arg4[%c0_5, %c0_6] : memref<1x256xf32, #tpu.memory_space<vmem>>, vector<1x256xf32>
    %7 = vector.broadcast %6 : vector<1x256xf32> to vector<128x256xf32>
    %8 = arith.addf %5, %7 : vector<128x256xf32>
    %c0_7 = arith.constant 0 : index
    %c0_8 = arith.constant 0 : index
    %9 = vector.load %arg5[%c0_7, %c0_8] : memref<128x256xf32, #tpu.memory_space<vmem>>, vector<128x256xf32>
    %10 = arith.addf %8, %9 : vector<128x256xf32>
    %cst_9 = arith.constant 0.000000e+00 : f32
    %11 = vector.broadcast %cst_9 : f32 to vector<128x256xf32>
    %12 = arith.maximumf %10, %11 : vector<128x256xf32>
    %c0_10 = arith.constant 0 : index
    %c0_11 = arith.constant 0 : index
    %13 = vector.load %arg6[%c0_10, %c0_11] : memref<128x256xf32, #tpu.memory_space<vmem>>, vector<128x256xf32>
    tpu.vector_store %arg6[%c0_10, %c0_11], %12 {strides = array<i32>} : memref<128x256xf32, #tpu.memory_space<vmem>>, vector<128x256xf32>,
    return
  }
  func.func @transform_0(%arg0: i32) -> (i32, i32) {
    %c0_i32 = arith.constant 0 : i32
    %c0_i32_0 = arith.constant 0 : i32
    return %arg0, %c0_i32 : i32, i32
  }
  func.func @transform_1(%arg0: i32) -> (i32, i32) {
    %c0_i32 = arith.constant 0 : i32
    %c0_i32_0 = arith.constant 0 : i32
    %c0_i32_1 = arith.constant 0 : i32
    return %c0_i32, %c0_i32_0 : i32, i32
  }
  func.func @transform_2(%arg0: i32) -> (i32, i32) {
    %c0_i32 = arith.constant 0 : i32
    %c0_i32_0 = arith.constant 0 : i32
    %c0_i32_1 = arith.constant 0 : i32
    return %c0_i32, %c0_i32_0 : i32, i32
  }
  func.func @transform_3(%arg0: i32) -> (i32, i32) {
    %c0_i32 = arith.constant 0 : i32
    %c0_i32_0 = arith.constant 0 : i32
    %c0_i32_1 = arith.constant 0 : i32
    return %c0_i32, %c0_i32_0 : i32, i32
  }
  func.func @transform_4(%arg0: i32) -> (i32, i32) {
    %c0_i32 = arith.constant 0 : i32
    %c0_i32_0 = arith.constant 0 : i32
    return %arg0, %c0_i32 : i32, i32
  }
  func.func @transform_5(%arg0: i32) -> (i32, i32) {
    %c0_i32 = arith.constant 0 : i32
    %c0_i32_0 = arith.constant 0 : i32
    return %arg0, %c0_i32 : i32, i32
  }
}

module attributes {stable_mosaic.version = 11 : i64} {
  func.func @_gram_heads_kernel(%arg0: i32, %arg1: memref<1x256x64xbf16, #tpu.memory_space<vmem>>, %arg2: memref<176x256xbf16, #tpu.memory_space<vmem>>, %arg3: memref<176x1xf32, #tpu.memory_space<vmem>>, %arg4: memref<256x384xbf16, #tpu.memory_space<vmem>>, %arg5: memref<1x384xf32, #tpu.memory_space<vmem>>, %arg6: memref<1x176x256xf32, #tpu.memory_space<vmem>>, %arg7: memref<1x1x384xf32, #tpu.memory_space<vmem>>) attributes {dimension_semantics = [#tpu.dimension_semantics<parallel>], iteration_bounds = array<i64: 2>, scalar_prefetch = 0 : i64, scratch_operands = 0 : i64, tpu.core_type = #tpu.core_type<tc>, window_params = [{transform_indices = @transform_0, window_bounds = array<i64: 1, 256, 64>}, {pipeline_mode = #tpu.pipeline_mode<synchronous>, transform_indices = @transform_1, window_bounds = array<i64: 176, 256>}, {pipeline_mode = #tpu.pipeline_mode<synchronous>, transform_indices = @transform_2, window_bounds = array<i64: 176, 1>}, {pipeline_mode = #tpu.pipeline_mode<synchronous>, transform_indices = @transform_3, window_bounds = array<i64: 256, 384>}, {pipeline_mode = #tpu.pipeline_mode<synchronous>, transform_indices = @transform_4, window_bounds = array<i64: 1, 384>}, {transform_indices = @transform_5, window_bounds = array<i64: 1, 176, 256>}, {transform_indices = @transform_6, window_bounds = array<i64: 1, 1, 384>}]} {
    %c0 = arith.constant 0 : index
    %c0_0 = arith.constant 0 : index
    %c0_1 = arith.constant 0 : index
    %0 = vector.load %arg1[%c0, %c0_0, %c0_1] : memref<1x256x64xbf16, #tpu.memory_space<vmem>>, vector<1x256x64xbf16>
    %1 = vector.shape_cast %0 : vector<1x256x64xbf16> to vector<256x64xbf16>
    %cst = arith.constant dense<0.000000e+00> : vector<256x256xf32>
    %2 = tpu.matmul %1, %1, %cst {dimension_numbers = #tpu.dot_dimension_numbers<[1], [1], [0], [0], [0, 0, 1, 0], [], []>} : vector<256x64xbf16>, vector<256x64xbf16>, vector<256x256xf32> -> vector<256x256xf32>
    %cst_2 = arith.constant 1.562500e-02 : f32
    %3 = vector.broadcast %cst_2 : f32 to vector<256x256xf32>
    %4 = arith.mulf %2, %3 : vector<256x256xf32>
    %5 = arith.truncf %4 : vector<256x256xf32> to vector<256x256xbf16>
    %c0_3 = arith.constant 0 : index
    %c0_4 = arith.constant 0 : index
    %6 = vector.load %arg2[%c0_3, %c0_4] : memref<176x256xbf16, #tpu.memory_space<vmem>>, vector<176x256xbf16>
    %cst_5 = arith.constant dense<0.000000e+00> : vector<176x256xf32>
    %7 = tpu.matmul %6, %5, %cst_5 {dimension_numbers = #tpu.dot_dimension_numbers<[1], [0], [0], [1], [0, 0, 1, 1], [], []>} : vector<176x256xbf16>, vector<256x256xbf16>, vector<176x256xf32> -> vector<176x256xf32>
    %c0_6 = arith.constant 0 : index
    %c0_7 = arith.constant 0 : index
    %8 = vector.load %arg3[%c0_6, %c0_7] : memref<176x1xf32, #tpu.memory_space<vmem>>, vector<176x1xf32>
    %9 = vector.broadcast %8 : vector<176x1xf32> to vector<176x256xf32>
    %10 = arith.addf %7, %9 : vector<176x256xf32>
    %c0_8 = arith.constant 0 : index
    %c0_9 = arith.constant 0 : index
    %c0_10 = arith.constant 0 : index
    %11 = vector.load %arg6[%c0_8, %c0_9, %c0_10] : memref<1x176x256xf32, #tpu.memory_space<vmem>>, vector<1x176x256xf32>
    %12 = vector.shape_cast %11 : vector<1x176x256xf32> to vector<176x256xf32>
    %13 = vector.shape_cast %10 : vector<176x256xf32> to vector<1x176x256xf32>
    tpu.vector_store %arg6[%c0_8, %c0_9, %c0_10], %13 {strides = array<i32>} : memref<1x176x256xf32, #tpu.memory_space<vmem>>, vector<1x176x256xf32>,
    %cst_11 = arith.constant dense<0.000000e+00> : vector<256xf32>
    %14 = vector.multi_reduction <add>, %4, %cst_11 [0] : vector<256x256xf32> to vector<256xf32>
    %15 = vector.shape_cast %14 : vector<256xf32> to vector<1x256xf32>
    %cst_12 = arith.constant 2.560000e+02 : f32
    %16 = vector.broadcast %cst_12 : f32 to vector<1x256xf32>
    %17 = arith.divf %15, %16 : vector<1x256xf32>
    %18 = arith.truncf %17 : vector<1x256xf32> to vector<1x256xbf16>
    %c0_13 = arith.constant 0 : index
    %c0_14 = arith.constant 0 : index
    %19 = vector.load %arg4[%c0_13, %c0_14] : memref<256x384xbf16, #tpu.memory_space<vmem>>, vector<256x384xbf16>
    %cst_15 = arith.constant dense<0.000000e+00> : vector<1x384xf32>
    %20 = tpu.matmul %18, %19, %cst_15 {dimension_numbers = #tpu.dot_dimension_numbers<[1], [0], [0], [1], [0, 0, 1, 1], [], []>} : vector<1x256xbf16>, vector<256x384xbf16>, vector<1x384xf32> -> vector<1x384xf32>
    %c0_16 = arith.constant 0 : index
    %c0_17 = arith.constant 0 : index
    %21 = vector.load %arg5[%c0_16, %c0_17] : memref<1x384xf32, #tpu.memory_space<vmem>>, vector<1x384xf32>
    %22 = arith.addf %20, %21 : vector<1x384xf32>
    %c0_18 = arith.constant 0 : index
    %c0_19 = arith.constant 0 : index
    %c0_20 = arith.constant 0 : index
    %23 = vector.load %arg7[%c0_18, %c0_19, %c0_20] : memref<1x1x384xf32, #tpu.memory_space<vmem>>, vector<1x1x384xf32>
    %24 = vector.shape_cast %23 : vector<1x1x384xf32> to vector<1x384xf32>
    %25 = vector.shape_cast %22 : vector<1x384xf32> to vector<1x1x384xf32>
    tpu.vector_store %arg7[%c0_18, %c0_19, %c0_20], %25 {strides = array<i32>} : memref<1x1x384xf32, #tpu.memory_space<vmem>>, vector<1x1x384xf32>,
    return
  }
  func.func @transform_0(%arg0: i32) -> (i32, i32, i32) {
    %c0_i32 = arith.constant 0 : i32
    %c0_i32_0 = arith.constant 0 : i32
    %c0_i32_1 = arith.constant 0 : i32
    return %arg0, %c0_i32, %c0_i32_0 : i32, i32, i32
  }
  func.func @transform_1(%arg0: i32) -> (i32, i32) {
    %c0_i32 = arith.constant 0 : i32
    %c0_i32_0 = arith.constant 0 : i32
    %c0_i32_1 = arith.constant 0 : i32
    return %c0_i32, %c0_i32_0 : i32, i32
  }
  func.func @transform_2(%arg0: i32) -> (i32, i32) {
    %c0_i32 = arith.constant 0 : i32
    %c0_i32_0 = arith.constant 0 : i32
    %c0_i32_1 = arith.constant 0 : i32
    return %c0_i32, %c0_i32_0 : i32, i32
  }
  func.func @transform_3(%arg0: i32) -> (i32, i32) {
    %c0_i32 = arith.constant 0 : i32
    %c0_i32_0 = arith.constant 0 : i32
    %c0_i32_1 = arith.constant 0 : i32
    return %c0_i32, %c0_i32_0 : i32, i32
  }
  func.func @transform_4(%arg0: i32) -> (i32, i32) {
    %c0_i32 = arith.constant 0 : i32
    %c0_i32_0 = arith.constant 0 : i32
    %c0_i32_1 = arith.constant 0 : i32
    return %c0_i32, %c0_i32_0 : i32, i32
  }
  func.func @transform_5(%arg0: i32) -> (i32, i32, i32) {
    %c0_i32 = arith.constant 0 : i32
    %c0_i32_0 = arith.constant 0 : i32
    %c0_i32_1 = arith.constant 0 : i32
    return %arg0, %c0_i32, %c0_i32_0 : i32, i32, i32
  }
  func.func @transform_6(%arg0: i32) -> (i32, i32, i32) {
    %c0_i32 = arith.constant 0 : i32
    %c0_i32_0 = arith.constant 0 : i32
    %c0_i32_1 = arith.constant 0 : i32
    return %arg0, %c0_i32, %c0_i32_0 : i32, i32, i32
  }
}

</mosaic_0001>

<llo_original>
// kernel: ovt_forward.12
$region0: #{ovt_forward.12}
  #allocation0 [shape = 'u32[]', space=smem, size = 0x4, offset = 0x4, fixed_abs, tag = 'smem constant byte address 0x4 - core index']
  #allocation1 [shape = 'u32[144,128]{1,0:T(1,128)}', space=vmem, size = 0x12000, scoped, tag = 'internal scratch']
  %s0 = inlined_call_operand.vmem [shape: bf16[128,64], index: 0, kind: input, shape index: {}]
  %s1 = inlined_call_operand.vmem [shape: bf16[64,64], index: 1, kind: input, shape index: {}]
  %s2 = inlined_call_operand.vmem [shape: f32[1,64], index: 2, kind: input, shape index: {}]
  %s3 = inlined_call_operand.vmem [shape: f32[1,64], index: 3, kind: input, shape index: {}]
  %s4 = inlined_call_operand.vmem [shape: f32[128,64], index: 4, kind: output, shape index: {}]
  %s5 = sld [smem:[#allocation0]]
  $region26: #{ovt_forward.12} parent=0
    _
  %s7 = ssub.s32 1, %s5
  %s8 = scalar_select 0, %s7, %s5
  // Predicated region
  $region2: #{ovt_forward.12} parent=0 // pred_check
    _
  $region3: #{ovt_forward.12} parent=0 // pred_check_branch
    %10 = sbr.rel (0) target = $region5
  $region4: #{ovt_forward.12} parent=0 // pred_region
    _
  $region5: #{ovt_forward.12} parent=0 // pred_fallthru
    _
  // Predicated region
  $region6: #{ovt_forward.12} parent=0 // pred_check
    _
  $region7: #{ovt_forward.12} parent=0 // pred_check_branch
    %12 = sbr.rel (0) target = $region9
  $region8: #{ovt_forward.12} parent=0 // pred_region
    _
  $region9: #{ovt_forward.12} parent=0 // pred_fallthru
    _
  // Predicated region
  $region10: #{ovt_forward.12} parent=0 // pred_check
    _
  $region11: #{ovt_forward.12} parent=0 // pred_check_branch
    %14 = sbr.rel (0) target = $region13
  $region12: #{ovt_forward.12} parent=0 // pred_region
    _
  $region13: #{ovt_forward.12} parent=0 // pred_fallthru
    _
  // Predicated region
  $region14: #{ovt_forward.12} parent=0 // pred_check
    _
  $region15: #{ovt_forward.12} parent=0 // pred_check_branch
    %16 = sbr.rel (0) target = $region17
  $region16: #{ovt_forward.12} parent=0 // pred_region
    _
  $region17: #{ovt_forward.12} parent=0 // pred_fallthru
    _
  %v18 = vld [vmem:[%s0] sm:$0xf]
  %v19 = vld [vmem:[%s0 + $0x4] sm:$0xf]
  %v20 = vld [vmem:[%s0 + $0x8] sm:$0xf]
  %v21 = vld [vmem:[%s0 + $0xc] sm:$0xf]
  %v22 = vld [vmem:[%s0 + $0x10] sm:$0xf]
  %v23 = vld [vmem:[%s0 + $0x14] sm:$0xf]
  %v24 = vld [vmem:[%s0 + $0x18] sm:$0xf]
  %v25 = vld [vmem:[%s0 + $0x1c] sm:$0xf]
  %v26 = vld [vmem:[%s0 + $0x20] sm:$0xf]
  %v27 = vld [vmem:[%s0 + $0x24] sm:$0xf]
  %v28 = vld [vmem:[%s0 + $0x28] sm:$0xf]
  %v29 = vld [vmem:[%s0 + $0x2c] sm:$0xf]
  %v30 = vld [vmem:[%s0 + $0x30] sm:$0xf]
  %v31 = vld [vmem:[%s0 + $0x34] sm:$0xf]
  %v32 = vld [vmem:[%s0 + $0x38] sm:$0xf]
  %v33 = vld [vmem:[%s0 + $0x3c] sm:$0xf]
  %v34 = vld [vmem:[%s1] sm:$0xf]
  %v35 = vld [vmem:[%s1 + $0x4] sm:$0xf]
  %v36 = vld [vmem:[%s1 + $0x8] sm:$0xf]
  %v37 = vld [vmem:[%s1 + $0xc] sm:$0xf]
  %v38 = vld [vmem:[%s1 + $0x10] sm:$0xf]
  %v39 = vld [vmem:[%s1 + $0x14] sm:$0xf]
  %v40 = vld [vmem:[%s1 + $0x18] sm:$0xf]
  %v41 = vld [vmem:[%s1 + $0x1c] sm:$0xf]
  %v58 = vunpack.c.l.b16 %v18
  %v59 = vunpack.c.l.b16 %v19
  %v60 = vunpack.c.l.b16 %v20
  %v61 = vunpack.c.l.b16 %v21
  %v62 = vunpack.c.l.b16 %v22
  %v63 = vunpack.c.l.b16 %v23
  %v64 = vunpack.c.l.b16 %v24
  %v65 = vunpack.c.l.b16 %v25
  %v66 = vunpack.c.l.b16 %v26
  %v67 = vunpack.c.l.b16 %v27
  %v68 = vunpack.c.l.b16 %v28
  %v69 = vunpack.c.l.b16 %v29
  %v70 = vunpack.c.l.b16 %v30
  %v71 = vunpack.c.l.b16 %v31
  %v72 = vunpack.c.l.b16 %v32
  %v73 = vunpack.c.l.b16 %v33
  %v74 = vpack.c.b16 %v59, %v58
  %v75 = vpack.c.b16 %v61, %v60
  %v76 = vpack.c.b16 %v63, %v62
  %v77 = vpack.c.b16 %v65, %v64
  %v78 = vpack.c.b16 %v67, %v66
  %v79 = vpack.c.b16 %v69, %v68
  %v80 = vpack.c.b16 %v71, %v70
  %v81 = vpack.c.b16 %v73, %v72
  %v90 = vunpack.c.l.b16 %v34
  %v91 = vunpack.c.l.b16 %v35
  %v92 = vunpack.c.l.b16 %v36
  %v93 = vunpack.c.l.b16 %v37
  %v94 = vunpack.c.l.b16 %v38
  %v95 = vunpack.c.l.b16 %v39
  %v96 = vunpack.c.l.b16 %v40
  %v97 = vunpack.c.l.b16 %v41
  %v98 = vpack.c.b16 %v91, %v90
  %v99 = vpack.c.b16 %v93, %v92
  %v100 = vpack.c.b16 %v95, %v94
  %v101 = vpack.c.b16 %v97, %v96
  %vm106 = vcmask 523264
  %v108 = vsel %vm106, %v74, 0
  %v111 = vsel %vm106, %v75, 0
  %v114 = vsel %vm106, %v76, 0
  %v117 = vsel %vm106, %v77, 0
  %v120 = vsel %vm106, %v78, 0
  %v123 = vsel %vm106, %v79, 0
  %v126 = vsel %vm106, %v80, 0
  %v129 = vsel %vm106, %v81, 0
  %131 = vmatprep.subr.bf16.mxu0 0
  %132 = vmatpush1.bf16.msra.mxu0 %v98
  %133 = vmatprep.subr.bf16.mxu0 0
  %134 = vmatpush1.bf16.msra.mxu0 %v99
  %135 = vmatprep.subr.bf16.mxu0 0
  %136 = vmatpush1.bf16.msra.mxu0 %v100
  %137 = vmatprep.subr.bf16.mxu0 0
  %138 = vmatpush1.bf16.msra.mxu0 %v101
  %139 = vmatprep.subr.bf16.mxu0 0
  %140 = vmatpush1.bf16.msra.mxu0 0
  %141 = vmatprep.subr.bf16.mxu0 0
  %142 = vmatpush1.bf16.msra.mxu0 0
  %143 = vmatprep.subr.bf16.mxu0 0
  %144 = vmatpush1.bf16.msra.mxu0 0
  %145 = vmatprep.subr.bf16.mxu0 0
  %146 = vmatpush1.bf16.msra.mxu0 0
  %147 = vmatprep.subr.bf16.mxu0 0
  %148 = vmatpush1.bf16.msra.mxu0 0
  %149 = vmatprep.subr.bf16.mxu0 0
  %150 = vmatpush1.bf16.msra.mxu0 0
  %151 = vmatprep.subr.bf16.mxu0 0
  %152 = vmatpush1.bf16.msra.mxu0 0
  %153 = vmatprep.subr.bf16.mxu0 0
  %154 = vmatpush1.bf16.msra.mxu0 0
  %155 = vmatprep.subr.bf16.mxu0 0
  %156 = vmatpush1.bf16.msra.mxu0 0
  %157 = vmatprep.subr.bf16.mxu0 0
  %158 = vmatpush1.bf16.msra.mxu0 0
  %159 = vmatprep.subr.bf16.mxu0 0
  %160 = vmatpush1.bf16.msra.mxu0 0
  %161 = vmatprep.subr.bf16.mxu0 0
  %162 = vmatpush1.bf16.msra.mxu0 0
  %163 = vmatprep.mubr.bf16.mxu0 0
  %164 = vmatmul.mubr.bf16.gmra.mrb[0].mxu0 %v108
  %v165 = vpop.f32.mrb[0].mxu0
  %v166 = vadd.f32 0.0, %v165
  %v167 = vpop.f32.mrb[0].mxu0
  %v168 = vpop.f32.mrb[0].mxu0
  %v169 = vadd.f32 0.0, %v168
  %v170 = vpop.f32.mrb[0].mxu0
  %171 = vmatprep.mubr.bf16.mxu0 0
  %172 = vmatmul.mubr.bf16.gmra.mrb[0].mxu0 %v111
  %v173 = vpop.f32.mrb[0].mxu0
  %v174 = vadd.f32 0.0, %v173
  %v175 = vpop.f32.mrb[0].mxu0
  %v176 = vpop.f32.mrb[0].mxu0
  %v177 = vadd.f32 0.0, %v176
  %v178 = vpop.f32.mrb[0].mxu0
  %179 = vmatprep.mubr.bf16.mxu0 0
  %180 = vmatmul.mubr.bf16.gmra.mrb[0].mxu0 %v114
  %v181 = vpop.f32.mrb[0].mxu0
  %v182 = vadd.f32 0.0, %v181
  %v183 = vpop.f32.mrb[0].mxu0
  %v184 = vpop.f32.mrb[0].mxu0
  %v185 = vadd.f32 0.0, %v184
  %v186 = vpop.f32.mrb[0].mxu0
  %187 = vmatprep.mubr.bf16.mxu0 0
  %188 = vmatmul.mubr.bf16.gmra.mrb[0].mxu0 %v117
  %v189 = vpop.f32.mrb[0].mxu0
  %v190 = vadd.f32 0.0, %v189
  %v191 = vpop.f32.mrb[0].mxu0
  %v192 = vpop.f32.mrb[0].mxu0
  %v193 = vadd.f32 0.0, %v192
  %v194 = vpop.f32.mrb[0].mxu0
  %195 = vmatprep.mubr.bf16.mxu0 0
  %196 = vmatmul.mubr.bf16.gmra.mrb[0].mxu0 %v120
  %v197 = vpop.f32.mrb[0].mxu0
  %v198 = vadd.f32 0.0, %v197
  %v199 = vpop.f32.mrb[0].mxu0
  %v200 = vpop.f32.mrb[0].mxu0
  %v201 = vadd.f32 0.0, %v200
  %v202 = vpop.f32.mrb[0].mxu0
  %203 = vmatprep.mubr.bf16.mxu0 0
  %204 = vmatmul.mubr.bf16.gmra.mrb[0].mxu0 %v123
  %v205 = vpop.f32.mrb[0].mxu0
  %v206 = vadd.f32 0.0, %v205
  %v207 = vpop.f32.mrb[0].mxu0
  %v208 = vpop.f32.mrb[0].mxu0
  %v209 = vadd.f32 0.0, %v208
  %v210 = vpop.f32.mrb[0].mxu0
  %211 = vmatprep.mubr.bf16.mxu0 0
  %212 = vmatmul.mubr.bf16.gmra.mrb[0].mxu0 %v126
  %v213 = vpop.f32.mrb[0].mxu0
  %v214 = vadd.f32 0.0, %v213
  %v215 = vpop.f32.mrb[0].mxu0
  %v216 = vpop.f32.mrb[0].mxu0
  %v217 = vadd.f32 0.0, %v216
  %v218 = vpop.f32.mrb[0].mxu0
  %219 = vmatprep.mubr.bf16.mxu0 0
  %220 = vmatmul.mubr.bf16.gmra.mrb[0].mxu0 %v129
  %v221 = vpop.f32.mrb[0].mxu0
  %v222 = vadd.f32 0.0, %v221
  %v223 = vpop.f32.mrb[0].mxu0
  %v224 = vpop.f32.mrb[0].mxu0
  %v225 = vadd.f32 0.0, %v224
  %v226 = vpop.f32.mrb[0].mxu0
  %227 = vdwg.mxu0
  %v228 = vld [vmem:[%s2] sm:$0x1]
  %v230 = vlaneseq
  %v231 = vshrl.u32 %v230, 7
  %v232 = vsub.s32 0, %v231
  %v233 = vrot.slane %v228, %v232
  %v235 = vmul.f32 %v166, %v233
  %v236 = vmul.f32 %v169, %v233
  %v237 = vmul.f32 %v174, %v233
  %v238 = vmul.f32 %v177, %v233
  %v239 = vmul.f32 %v182, %v233
  %v240 = vmul.f32 %v185, %v233
  %v241 = vmul.f32 %v190, %v233
  %v242 = vmul.f32 %v193, %v233
  %v243 = vmul.f32 %v198, %v233
  %v244 = vmul.f32 %v201, %v233
  %v245 = vmul.f32 %v206, %v233
  %v246 = vmul.f32 %v209, %v233
  %v247 = vmul.f32 %v214, %v233
  %v248 = vmul.f32 %v217, %v233
  %v249 = vmul.f32 %v222, %v233
  %v250 = vmul.f32 %v225, %v233
  %v251 = vld [vmem:[%s3] sm:$0x1]
  %v253 = vlaneseq
  %v254 = vshrl.u32 %v253, 7
  %v255 = vsub.s32 0, %v254
  %v256 = vrot.slane %v251, %v255
  %v258 = vadd.f32 %v235, %v256
  %v259 = vadd.f32 %v236, %v256
  %v260 = vadd.f32 %v237, %v256
  %v261 = vadd.f32 %v238, %v256
  %v262 = vadd.f32 %v239, %v256
  %v263 = vadd.f32 %v240, %v256
  %v264 = vadd.f32 %v241, %v256
  %v265 = vadd.f32 %v242, %v256
  %v266 = vadd.f32 %v243, %v256
  %v267 = vadd.f32 %v244, %v256
  %v268 = vadd.f32 %v245, %v256
  %v269 = vadd.f32 %v246, %v256
  %v270 = vadd.f32 %v247, %v256
  %v271 = vadd.f32 %v248, %v256
  %v272 = vadd.f32 %v249, %v256
  %v273 = vadd.f32 %v250, %v256
  %v274 = vmax.f32 %v258, 0.0
  %v275 = vmax.f32 %v259, 0.0
  %v276 = vmax.f32 %v260, 0.0
  %v277 = vmax.f32 %v261, 0.0
  %v278 = vmax.f32 %v262, 0.0
  %v279 = vmax.f32 %v263, 0.0
  %v280 = vmax.f32 %v264, 0.0
  %v281 = vmax.f32 %v265, 0.0
  %v282 = vmax.f32 %v266, 0.0
  %v283 = vmax.f32 %v267, 0.0
  %v284 = vmax.f32 %v268, 0.0
  %v285 = vmax.f32 %v269, 0.0
  %v286 = vmax.f32 %v270, 0.0
  %v287 = vmax.f32 %v271, 0.0
  %v288 = vmax.f32 %v272, 0.0
  %v289 = vmax.f32 %v273, 0.0
  %290 = vst.msk [vmem:[%s4] sm:$0xff] %vm106, %v274
  %291 = vst.msk [vmem:[%s4 + $0x8] sm:$0xff] %vm106, %v275
  %292 = vst.msk [vmem:[%s4 + $0x10] sm:$0xff] %vm106, %v276
  %293 = vst.msk [vmem:[%s4 + $0x18] sm:$0xff] %vm106, %v277
  %294 = vst.msk [vmem:[%s4 + $0x20] sm:$0xff] %vm106, %v278
  %295 = vst.msk [vmem:[%s4 + $0x28] sm:$0xff] %vm106, %v279
  %296 = vst.msk [vmem:[%s4 + $0x30] sm:$0xff] %vm106, %v280
  %297 = vst.msk [vmem:[%s4 + $0x38] sm:$0xff] %vm106, %v281
  %298 = vst.msk [vmem:[%s4 + $0x40] sm:$0xff] %vm106, %v282
  %299 = vst.msk [vmem:[%s4 + $0x48] sm:$0xff] %vm106, %v283
  %300 = vst.msk [vmem:[%s4 + $0x50] sm:$0xff] %vm106, %v284
  %301 = vst.msk [vmem:[%s4 + $0x58] sm:$0xff] %vm106, %v285
  %302 = vst.msk [vmem:[%s4 + $0x60] sm:$0xff] %vm106, %v286
  %303 = vst.msk [vmem:[%s4 + $0x68] sm:$0xff] %vm106, %v287
  %304 = vst.msk [vmem:[%s4 + $0x70] sm:$0xff] %vm106, %v288
  %305 = vst.msk [vmem:[%s4 + $0x78] sm:$0xff] %vm106, %v289
  // Predicated region
  $region18: #{ovt_forward.12} parent=0 // pred_check
    _
  $region19: #{ovt_forward.12} parent=0 // pred_check_branch
    %307 = sbr.rel (0) target = $region21
  $region20: #{ovt_forward.12} parent=0 // pred_region
    _
  $region21: #{ovt_forward.12} parent=0 // pred_fallthru
    _
  // Predicated region
  $region22: #{ovt_forward.12} parent=0 // pred_check
    _
  $region23: #{ovt_forward.12} parent=0 // pred_check_branch
    %309 = sbr.rel (0) target = $region25
  $region24: #{ovt_forward.12} parent=0 // pred_region
    _
  $region25: #{ovt_forward.12} parent=0 // pred_fallthru
    _

// kernel: ovt_forward.11
$region0: #{ovt_forward.11}
  #allocation0 [shape = 'u32[]', space=smem, size = 0x4, offset = 0x4, fixed_abs, tag = 'smem constant byte address 0x4 - core index']
  #allocation1 [shape = 'u32[144,128]{1,0:T(1,128)}', space=vmem, size = 0x12000, scoped, tag = 'internal scratch']
  %s0 = inlined_call_operand.vmem [shape: bf16[512,392], index: 0, kind: input, shape index: {}]
  %s1 = inlined_call_operand.vmem [shape: bf16[392,64], index: 1, kind: input, shape index: {}]
  %s2 = inlined_call_operand.vmem [shape: f32[1,64], index: 2, kind: input, shape index: {}]
  %s3 = inlined_call_operand.vmem [shape: f32[1,64], index: 3, kind: input, shape index: {}]
  %s4 = inlined_call_operand.vmem [shape: f32[512,64], index: 4, kind: output, shape index: {}]
  %s5 = sld [smem:[#allocation0]]
  $region49: #{ovt_forward.11} parent=0
    _
  %s7 = ssub.s32 1, %s5
  %s8 = scalar_select 0, %s7, %s5
  loop: start=0, step=1, limit=4
  $region2: #{ovt_forward.11} parent=0 // loop_pre_header
    _
  $region3: #{ovt_forward.11} parent=0 // loop_header
    %s10 = sphi 0, %s14
    %p11 = scmp.ge.s32.totalorder %s10, 4
    %s20 = sphi 0, %s22
    %s23 = sphi 0, %s20
    %s24 = sphi 0, %s23
    %s40 = sphi 0, %s24
    %s44 = sphi 0, %s44
    %s46 = sphi 0, %s44
    %s47 = sphi 0, %s46
    %s61 = sphi 0, %s47
    %s65 = sphi 0, %s65
    %s67 = sphi 0, %s65
    %s68 = sphi 0, %s67
    %s82 = sphi 0, %s68
    %s86 = sphi 0, %s86
    %s88 = sphi 0, %s86
    %s89 = sphi 0, %s88
    %s103 = sphi 0, %s89
    %s109 = sphi 0, %s111
    %s112 = sphi 0, %s109
    %s113 = sphi 0, %s112
    %s129 = sphi 0, %s113
  $region4: #{ovt_forward.11} parent=0 // loop_header_branch
    %13 = sbr.rel (%p11) target = $region8
  $region5: #{ovt_forward.11} parent=0 // loop_body
    %s15 = ssub.s32 %s10, 1
    %s16 = ssub.s32 %s10, 2
    %s17 = sadd.s32 %s10, 1
    %s18 = ssub.s32 %s10, %s17
    %p19 = scmp.eq.s32.totalorder %s18, 0
    %s21 = sadd.s32 %s20, 1
    %s22 = scalar_select %p19, %s20, %s21
    %p25 = pneg %p19
    %p26 = scmp.eq.s32.totalorder %s10, 1
    %p27 = por %p25, %p26
    %p28 = scmp.ne.s32.totalorder %s20, %s23
    %p29 = scmp.eq.s32.totalorder %s10, 0
    %p30 = por %p28, %p29
    %p31 = scmp.ne.s32.totalorder %s20, %s23
    %p32 = scmp.eq.s32.totalorder %s15, 1
    %p33 = por %p31, %p32
    %p34 = scmp.ne.s32.totalorder %s23, %s24
    %p35 = scmp.eq.s32.totalorder %s15, 0
    %p36 = por %p34, %p35
    %p37 = scmp.ne.s32.totalorder %s23, %s24
    %p38 = scmp.eq.s32.totalorder %s16, 1
    %p39 = por %p37, %p38
    %p41 = scmp.ne.s32.totalorder %s24, %s40
    %p42 = scmp.eq.s32.totalorder %s16, 0
    %p43 = por %p41, %p42
    %s45 = sadd.s32 %s44, 1
    %p48 = scmp.eq.s32.totalorder %s10, 1
    %p49 = scmp.ne.s32.totalorder %s44, %s46
    %p50 = scmp.eq.s32.totalorder %s10, 0
    %p51 = por %p49, %p50
    %p52 = scmp.ne.s32.totalorder %s44, %s46
    %p53 = scmp.eq.s32.totalorder %s15, 1
    %p54 = por %p52, %p53
    %p55 = scmp.ne.s32.totalorder %s46, %s47
    %p56 = scmp.eq.s32.totalorder %s15, 0
    %p57 = por %p55, %p56
    %p58 = scmp.ne.s32.totalorder %s46, %s47
    %p59 = scmp.eq.s32.totalorder %s16, 1
    %p60 = por %p58, %p59
    %p62 = scmp.ne.s32.totalorder %s47, %s61
    %p63 = scmp.eq.s32.totalorder %s16, 0
    %p64 = por %p62, %p63
    %s66 = sadd.s32 %s65, 1
    %p69 = scmp.eq.s32.totalorder %s10, 1
    %p70 = scmp.ne.s32.totalorder %s65, %s67
    %p71 = scmp.eq.s32.totalorder %s10, 0
    %p72 = por %p70, %p71
    %p73 = scmp.ne.s32.totalorder %s65, %s67
    %p74 = scmp.eq.s32.totalorder %s15, 1
    %p75 = por %p73, %p74
    %p76 = scmp.ne.s32.totalorder %s67, %s68
    %p77 = scmp.eq.s32.totalorder %s15, 0
    %p78 = por %p76, %p77
    %p79 = scmp.ne.s32.totalorder %s67, %s68
    %p80 = scmp.eq.s32.totalorder %s16, 1
    %p81 = por %p79, %p80
    %p83 = scmp.ne.s32.totalorder %s68, %s82
    %p84 = scmp.eq.s32.totalorder %s16, 0
    %p85 = por %p83, %p84
    %s87 = sadd.s32 %s86, 1
    %p90 = scmp.eq.s32.totalorder %s10, 1
    %p91 = scmp.ne.s32.totalorder %s86, %s88
    %p92 = scmp.eq.s32.totalorder %s10, 0
    %p93 = por %p91, %p92
    %p94 = scmp.ne.s32.totalorder %s86, %s88
    %p95 = scmp.eq.s32.totalorder %s15, 1
    %p96 = por %p94, %p95
    %p97 = scmp.ne.s32.totalorder %s88, %s89
    %p98 = scmp.eq.s32.totalorder %s15, 0
    %p99 = por %p97, %p98
    %p100 = scmp.ne.s32.totalorder %s88, %s89
    %p101 = scmp.eq.s32.totalorder %s16, 1
    %p102 = por %p100, %p101
    %p104 = scmp.ne.s32.totalorder %s89, %s103
    %p105 = scmp.eq.s32.totalorder %s16, 0
    %p106 = por %p104, %p105
    %s107 = ssub.s32 %s10, %s17
    %p108 = scmp.eq.s32.totalorder %s107, 0
    %s110 = sadd.s32 %s109, 1
    %s111 = scalar_select %p108, %s109, %s110
    %p114 = pneg %p108
    %p115 = scmp.eq.s32.totalorder %s10, 1
    %p116 = por %p114, %p115
    %p117 = scmp.ne.s32.totalorder %s109, %s112
    %p118 = scmp.eq.s32.totalorder %s10, 0
    %p119 = por %p117, %p118
    %p120 = scmp.ne.s32.totalorder %s109, %s112
    %p121 = scmp.eq.s32.totalorder %s15, 1
    %p122 = por %p120, %p121
    %p123 = scmp.ne.s32.totalorder %s112, %s113
    %p124 = scmp.eq.s32.totalorder %s15, 0
    %p125 = por %p123, %p124
    %p126 = scmp.ne.s32.totalorder %s112, %s113
    %p127 = scmp.eq.s32.totalorder %s16, 1
    %p128 = por %p126, %p127
    %p130 = scmp.ne.s32.totalorder %s113, %s129
    %p131 = scmp.eq.s32.totalorder %s16, 0
    %p132 = por %p130, %p131
    %p133 = scmp.le.s32.totalorder 1, %s10
    %p134 = scmp.lt.s32.totalorder %s10, 3
    %p135 = pnand %p133, %p134
    %p136 = pneg %p135
    // Predicated region
    $region9: #{ovt_forward.11} parent=5 // pred_check
      _
    $region10: #{ovt_forward.11} parent=5 // pred_check_branch
      %138 = sbr.rel (%p135) target = $region12
    $region11: #{ovt_forward.11} parent=5 // pred_region
      %s139 = ssub.s32 %s10, 1
      // Predicated region
      $region13: #{ovt_forward.11} parent=11 // pred_check
        %p140 = pneg %p57
      $region14: #{ovt_forward.11} parent=11 // pred_check_branch
        %142 = sbr.rel (%p140) target = $region16
      $region15: #{ovt_forward.11} parent=11 // pred_region
        _
      $region16: #{ovt_forward.11} parent=11 // pred_fallthru
        _
      // Predicated region
      $region17: #{ovt_forward.11} parent=11 // pred_check
        %p143 = pneg %p78
      $region18: #{ovt_forward.11} parent=11 // pred_check_branch
        %145 = sbr.rel (%p143) target = $region20
      $region19: #{ovt_forward.11} parent=11 // pred_region
        _
      $region20: #{ovt_forward.11} parent=11 // pred_fallthru
        _
      // Predicated region
      $region21: #{ovt_forward.11} parent=11 // pred_check
        %p146 = pneg %p99
      $region22: #{ovt_forward.11} parent=11 // pred_check_branch
        %148 = sbr.rel (%p146) target = $region24
      $region23: #{ovt_forward.11} parent=11 // pred_region
        _
      $region24: #{ovt_forward.11} parent=11 // pred_fallthru
        _
    $region12: #{ovt_forward.11} parent=5 // pred_fallthru
      _
    %p149 = scmp.lt.s32.totalorder %s10, 2
    // Predicated region
    $region25: #{ovt_forward.11} parent=5 // pred_check
      %p150 = pneg %p149
    $region26: #{ovt_forward.11} parent=5 // pred_check_branch
      %152 = sbr.rel (%p150) target = $region28
    $region27: #{ovt_forward.11} parent=5 // pred_region
      // Predicated region
      $region29: #{ovt_forward.11} parent=27 // pred_check
        %p153 = pneg %p30
      $region30: #{ovt_forward.11} parent=27 // pred_check_branch
        %155 = sbr.rel (%p153) target = $region32
      $region31: #{ovt_forward.11} parent=27 // pred_region
        %s156 = smul.u32 32, %s10
        %p157 = scmp.lt.s32.totalorder %s156, 63
        %s158 = scalar_select %p157, %s156, 63
        %s159 = smul.addr %s158, 4
        %s160 = smul.addr %s159, 4
        %s161 = scalar_lea.vmem %s0, %s160
        %s162 = smul.u32 32, %s10
      $region32: #{ovt_forward.11} parent=27 // pred_fallthru
        _
    $region28: #{ovt_forward.11} parent=5 // pred_fallthru
      _
    %p163 = scmp.le.s32.totalorder 1, %s10
    %p164 = scmp.lt.s32.totalorder %s10, 3
    %p165 = pnand %p163, %p164
    %p166 = pneg %p165
    // Predicated region
    $region33: #{ovt_forward.11} parent=5 // pred_check
      _
    $region34: #{ovt_forward.11} parent=5 // pred_check_branch
      %168 = sbr.rel (%p165) target = $region36
    $region35: #{ovt_forward.11} parent=5 // pred_region
      %s169 = ssub.s32 %s10, 1
      %s170 = smul.u32 32, %s15
      %p171 = scmp.lt.s32.totalorder %s170, 63
      %s172 = scalar_select %p171, %s170, 63
      %s173 = smul.addr %s172, 4
      %s174 = smul.addr %s173, 4
      %s175 = scalar_lea.vmem %s0, %s174
      %p176 = pneg %p36
      %p177 = pneg %p33
      %p178 = pneg %p57
      %p179 = pneg %p54
      %p180 = pneg %p78
      %p181 = pneg %p75
      %p182 = pneg %p99
      %p183 = pneg %p96
      %p184 = pneg %p125
      %p185 = pneg %p122
      %s186 = smul.u32 32, %s15
      %p187 = scmp.lt.s32.totalorder %s186, 63
      %s188 = scalar_select %p187, %s186, 63
      %s189 = smul.addr %s188, 8
      %s190 = scalar_lea.vmem %s4, %s189
      %s191 = smul.u32 32, %s15
      %p192 = scmp.lt.s32.totalorder %s191, 63
      %s193 = scalar_select %p192, %s191, 63
      %s194 = smul.addr %s193, 4
      %s195 = smul.addr %s194, 4
      %s196 = scalar_lea.vmem %s0, %s195
      %s197 = smul.u32 32, %s15
      %s198 = smul.u32 32, %s15
      %p199 = scmp.lt.s32.totalorder %s198, 63
      %s200 = scalar_select %p199, %s198, 63
      %s201 = smul.addr %s200, 8
      %s202 = scalar_lea.vmem %s4, %s201
      %s203 = smul.u32 32, %s15
      %v205 = vld [vmem:[%s196] sm:$0xff]
      %v206 = vld [vmem:[%s196 + $0x8] sm:$0xff]
      %v207 = vld [vmem:[%s196 + $0x10] sm:$0xff]
      %v208 = vld [vmem:[%s196 + $0x18] sm:$0xff]
      %v209 = vld [vmem:[%s196 + $0x20] sm:$0xff]
      %v210 = vld [vmem:[%s196 + $0x28] sm:$0xff]
      %v211 = vld [vmem:[%s196 + $0x30] sm:$0xff]
      %v212 = vld [vmem:[%s196 + $0x38] sm:$0xff]
      %v213 = vld [vmem:[%s196 + $0x40] sm:$0xff]
      %v214 = vld [vmem:[%s196 + $0x48] sm:$0xff]
      %v215 = vld [vmem:[%s196 + $0x50] sm:$0xff]
      %v216 = vld [vmem:[%s196 + $0x58] sm:$0xff]
      %v217 = vld [vmem:[%s196 + $0x60] sm:$0xff]
      %v218 = vld [vmem:[%s196 + $0x68] sm:$0xff]
      %v219 = vld [vmem:[%s196 + $0x70] sm:$0xff]
      %v220 = vld [vmem:[%s196 + $0x78] sm:$0xff]
      %v221 = vld [vmem:[%s196 + $0x80] sm:$0xff]
      %v222 = vld [vmem:[%s196 + $0x88] sm:$0xff]
      %v223 = vld [vmem:[%s196 + $0x90] sm:$0xff]
      %v224 = vld [vmem:[%s196 + $0x98] sm:$0xff]
      %v225 = vld [vmem:[%s196 + $0xa0] sm:$0xff]
      %v226 = vld [vmem:[%s196 + $0xa8] sm:$0xff]
      %v227 = vld [vmem:[%s196 + $0xb0] sm:$0xff]
      %v228 = vld [vmem:[%s196 + $0xb8] sm:$0xff]
      %v229 = vld [vmem:[%s196 + $0xc0] sm:$0xff]
      %v230 = vld [vmem:[%s196 + $0xc8] sm:$0xff]
      %v231 = vld [vmem:[%s196 + $0xd0] sm:$0xff]
      %v232 = vld [vmem:[%s196 + $0xd8] sm:$0xff]
      %v233 = vld [vmem:[%s196 + $0xe0] sm:$0xff]
      %v234 = vld [vmem:[%s196 + $0xe8] sm:$0xff]
      %v235 = vld [vmem:[%s196 + $0xf0] sm:$0xff]
      %v236 = vld [vmem:[%s196 + $0xf8] sm:$0xff]
      %v237 = vld [vmem:[%s196 + $0x100] sm:$0xff]
      %v238 = vld [vmem:[%s196 + $0x108] sm:$0xff]
      %v239 = vld [vmem:[%s196 + $0x110] sm:$0xff]
      %v240 = vld [vmem:[%s196 + $0x118] sm:$0xff]
      %v241 = vld [vmem:[%s196 + $0x120] sm:$0xff]
      %v242 = vld [vmem:[%s196 + $0x128] sm:$0xff]
      %v243 = vld [vmem:[%s196 + $0x130] sm:$0xff]
      %v244 = vld [vmem:[%s196 + $0x138] sm:$0xff]
      %v245 = vld [vmem:[%s196 + $0x140] sm:$0xff]
      %v246 = vld [vmem:[%s196 + $0x148] sm:$0xff]
      %v247 = vld [vmem:[%s196 + $0x150] sm:$0xff]
      %v248 = vld [vmem:[%s196 + $0x158] sm:$0xff]
      %v249 = vld [vmem:[%s196 + $0x160] sm:$0xff]
      %v250 = vld [vmem:[%s196 + $0x168] sm:$0xff]
      %v251 = vld [vmem:[%s196 + $0x170] sm:$0xff]
      %v252 = vld [vmem:[%s196 + $0x178] sm:$0xff]
      %v253 = vld [vmem:[%s196 + $0x180] sm:$0xff]
      %v254 = vld [vmem:[%s196 + $0x188] sm:$0xff]
      %v255 = vld [vmem:[%s196 + $0x190] sm:$0xff]
      %v256 = vld [vmem:[%s196 + $0x198] sm:$0xff]
      %v257 = vld [vmem:[%s196 + $0x1a0] sm:$0xff]
      %v258 = vld [vmem:[%s196 + $0x1a8] sm:$0xff]
      %v259 = vld [vmem:[%s196 + $0x1b0] sm:$0xff]
      %v260 = vld [vmem:[%s196 + $0x1b8] sm:$0xff]
      %v261 = vld [vmem:[%s196 + $0x1c0] sm:$0xff]
      %v262 = vld [vmem:[%s196 + $0x1c8] sm:$0xff]
      %v263 = vld [vmem:[%s196 + $0x1d0] sm:$0xff]
      %v264 = vld [vmem:[%s196 + $0x1d8] sm:$0xff]
      %v265 = vld [vmem:[%s196 + $0x1e0] sm:$0xff]
      %v266 = vld [vmem:[%s196 + $0x1e8] sm:$0xff]
      %v267 = vld [vmem:[%s196 + $0x1f0] sm:$0xff]
      %v268 = vld [vmem:[%s196 + $0x1f8] sm:$0xff]
      %v269 = vld [vmem:[%s1] sm:$0xf]
      %v270 = vld [vmem:[%s1 + $0x4] sm:$0xf]
      %v271 = vld [vmem:[%s1 + $0x8] sm:$0xf]
      %v272 = vld [vmem:[%s1 + $0xc] sm:$0xf]
      %v273 = vld [vmem:[%s1 + $0x10] sm:$0xf]
      %v274 = vld [vmem:[%s1 + $0x14] sm:$0xf]
      %v275 = vld [vmem:[%s1 + $0x18] sm:$0xf]
      %v276 = vld [vmem:[%s1 + $0x1c] sm:$0xf]
      %v277 = vld [vmem:[%s1 + $0x20] sm:$0xf]
      %v278 = vld [vmem:[%s1 + $0x24] sm:$0xf]
      %v279 = vld [vmem:[%s1 + $0x28] sm:$0xf]
      %v280 = vld [vmem:[%s1 + $0x2c] sm:$0xf]
      %v281 = vld [vmem:[%s1 + $0x30] sm:$0xf]
      %v282 = vld [vmem:[%s1 + $0x34] sm:$0xf]
      %v283 = vld [vmem:[%s1 + $0x38] sm:$0xf]
      %v284 = vld [vmem:[%s1 + $0x3c] sm:$0xf]
      %v285 = vld [vmem:[%s1 + $0x40] sm:$0xf]
      %v286 = vld [vmem:[%s1 + $0x44] sm:$0xf]
      %v287 = vld [vmem:[%s1 + $0x48] sm:$0xf]
      %v288 = vld [vmem:[%s1 + $0x4c] sm:$0xf]
      %v289 = vld [vmem:[%s1 + $0x50] sm:$0xf]
      %v290 = vld [vmem:[%s1 + $0x54] sm:$0xf]
      %v291 = vld [vmem:[%s1 + $0x58] sm:$0xf]
      %v292 = vld [vmem:[%s1 + $0x5c] sm:$0xf]
      %v293 = vld [vmem:[%s1 + $0x60] sm:$0xf]
      %v294 = vld [vmem:[%s1 + $0x64] sm:$0xf]
      %v295 = vld [vmem:[%s1 + $0x68] sm:$0xf]
      %v296 = vld [vmem:[%s1 + $0x6c] sm:$0xf]
      %v297 = vld [vmem:[%s1 + $0x70] sm:$0xf]
      %v298 = vld [vmem:[%s1 + $0x74] sm:$0xf]
      %v299 = vld [vmem:[%s1 + $0x78] sm:$0xf]
      %v300 = vld [vmem:[%s1 + $0x7c] sm:$0xf]
      %v301 = vld [vmem:[%s1 + $0x80] sm:$0xf]
      %v302 = vld [vmem:[%s1 + $0x84] sm:$0xf]
      %v303 = vld [vmem:[%s1 + $0x88] sm:$0xf]
      %v304 = vld [vmem:[%s1 + $0x8c] sm:$0xf]
      %v305 = vld [vmem:[%s1 + $0x90] sm:$0xf]
      %v306 = vld [vmem:[%s1 + $0x94] sm:$0xf]
      %v307 = vld [vmem:[%s1 + $0x98] sm:$0xf]
      %v308 = vld [vmem:[%s1 + $0x9c] sm:$0xf]
      %v309 = vld [vmem:[%s1 + $0xa0] sm:$0xf]
      %v310 = vld [vmem:[%s1 + $0xa4] sm:$0xf]
      %v311 = vld [vmem:[%s1 + $0xa8] sm:$0xf]
      %v312 = vld [vmem:[%s1 + $0xac] sm:$0xf]
      %v313 = vld [vmem:[%s1 + $0xb0] sm:$0xf]
      %v314 = vld [vmem:[%s1 + $0xb4] sm:$0xf]
      %v315 = vld [vmem:[%s1 + $0xb8] sm:$0xf]
      %v316 = vld [vmem:[%s1 + $0xbc] sm:$0xf]
      %v317 = vld [vmem:[%s1 + $0xc0] sm:$0xf]
      %v382 = vunpack.c.l.b16 %v205
      %v383 = vunpack.c.h.b16 %v205
      %v384 = vunpack.c.l.b16 %v206
      %v385 = vunpack.c.h.b16 %v206
      %v386 = vunpack.c.l.b16 %v207
      %v387 = vunpack.c.h.b16 %v207
      %v388 = vunpack.c.l.b16 %v208
      %v389 = vunpack.c.h.b16 %v208
      %v390 = vunpack.c.l.b16 %v209
      %v391 = vunpack.c.h.b16 %v209
      %v392 = vunpack.c.l.b16 %v210
      %v393 = vunpack.c.h.b16 %v210
      %v394 = vunpack.c.l.b16 %v211
      %v395 = vunpack.c.h.b16 %v211
      %v396 = vunpack.c.l.b16 %v212
      %v397 = vunpack.c.h.b16 %v212
      %v398 = vunpack.c.l.b16 %v213
      %v399 = vunpack.c.h.b16 %v213
      %v400 = vunpack.c.l.b16 %v214
      %v401 = vunpack.c.h.b16 %v214
      %v402 = vunpack.c.l.b16 %v215
      %v403 = vunpack.c.h.b16 %v215
      %v404 = vunpack.c.l.b16 %v216
      %v405 = vunpack.c.h.b16 %v216
      %v406 = vunpack.c.l.b16 %v217
      %v407 = vunpack.c.h.b16 %v217
      %v408 = vunpack.c.l.b16 %v218
      %v409 = vunpack.c.h.b16 %v218
      %v410 = vunpack.c.l.b16 %v219
      %v411 = vunpack.c.h.b16 %v219
      %v412 = vunpack.c.l.b16 %v220
      %v413 = vunpack.c.h.b16 %v220
      %v414 = vunpack.c.l.b16 %v221
      %v415 = vunpack.c.h.b16 %v221
      %v416 = vunpack.c.l.b16 %v222
      %v417 = vunpack.c.h.b16 %v222
      %v418 = vunpack.c.l.b16 %v223
      %v419 = vunpack.c.h.b16 %v223
      %v420 = vunpack.c.l.b16 %v224
      %v421 = vunpack.c.h.b16 %v224
      %v422 = vunpack.c.l.b16 %v225
      %v423 = vunpack.c.h.b16 %v225
      %v424 = vunpack.c.l.b16 %v226
      %v425 = vunpack.c.h.b16 %v226
      %v426 = vunpack.c.l.b16 %v227
      %v427 = vunpack.c.h.b16 %v227
      %v428 = vunpack.c.l.b16 %v228
      %v429 = vunpack.c.h.b16 %v228
      %v430 = vunpack.c.l.b16 %v229
      %v431 = vunpack.c.h.b16 %v229
      %v432 = vunpack.c.l.b16 %v230
      %v433 = vunpack.c.h.b16 %v230
      %v434 = vunpack.c.l.b16 %v231
      %v435 = vunpack.c.h.b16 %v231
      %v436 = vunpack.c.l.b16 %v232
      %v437 = vunpack.c.h.b16 %v232
      %v438 = vunpack.c.l.b16 %v233
      %v439 = vunpack.c.h.b16 %v233
      %v440 = vunpack.c.l.b16 %v234
      %v441 = vunpack.c.h.b16 %v234
      %v442 = vunpack.c.l.b16 %v235
      %v443 = vunpack.c.h.b16 %v235
      %v444 = vunpack.c.l.b16 %v236
      %v445 = vunpack.c.h.b16 %v236
      %v446 = vunpack.c.l.b16 %v237
      %v447 = vunpack.c.h.b16 %v237
      %v448 = vunpack.c.l.b16 %v238
      %v449 = vunpack.c.h.b16 %v238
      %v450 = vunpack.c.l.b16 %v239
      %v451 = vunpack.c.h.b16 %v239
      %v452 = vunpack.c.l.b16 %v240
      %v453 = vunpack.c.h.b16 %v240
      %v454 = vunpack.c.l.b16 %v241
      %v455 = vunpack.c.h.b16 %v241
      %v456 = vunpack.c.l.b16 %v242
      %v457 = vunpack.c.h.b16 %v242
      %v458 = vunpack.c.l.b16 %v243
      %v459 = vunpack.c.h.b16 %v243
      %v460 = vunpack.c.l.b16 %v244
      %v461 = vunpack.c.h.b16 %v244
      %v462 = vunpack.c.l.b16 %v245
      %v463 = vunpack.c.h.b16 %v245
      %v464 = vunpack.c.l.b16 %v246
      %v465 = vunpack.c.h.b16 %v246
      %v466 = vunpack.c.l.b16 %v247
      %v467 = vunpack.c.h.b16 %v247
      %v468 = vunpack.c.l.b16 %v248
      %v469 = vunpack.c.h.b16 %v248
      %v470 = vunpack.c.l.b16 %v249
      %v471 = vunpack.c.h.b16 %v249
      %v472 = vunpack.c.l.b16 %v250
      %v473 = vunpack.c.h.b16 %v250
      %v474 = vunpack.c.l.b16 %v251
      %v475 = vunpack.c.h.b16 %v251
      %v476 = vunpack.c.l.b16 %v252
      %v477 = vunpack.c.h.b16 %v252
      %v478 = vunpack.c.l.b16 %v253
      %v479 = vunpack.c.h.b16 %v253
      %v480 = vunpack.c.l.b16 %v254
      %v481 = vunpack.c.h.b16 %v254
      %v482 = vunpack.c.l.b16 %v255
      %v483 = vunpack.c.h.b16 %v255
      %v484 = vunpack.c.l.b16 %v256
      %v485 = vunpack.c.h.b16 %v256
      %v486 = vunpack.c.l.b16 %v257
      %v487 = vunpack.c.h.b16 %v257
      %v488 = vunpack.c.l.b16 %v258
      %v489 = vunpack.c.h.b16 %v258
      %v490 = vunpack.c.l.b16 %v259
      %v491 = vunpack.c.h.b16 %v259
      %v492 = vunpack.c.l.b16 %v260
      %v493 = vunpack.c.h.b16 %v260
      %v494 = vunpack.c.l.b16 %v261
      %v495 = vunpack.c.h.b16 %v261
      %v496 = vunpack.c.l.b16 %v262
      %v497 = vunpack.c.h.b16 %v262
      %v498 = vunpack.c.l.b16 %v263
      %v499 = vunpack.c.h.b16 %v263
      %v500 = vunpack.c.l.b16 %v264
      %v501 = vunpack.c.h.b16 %v264
      %v502 = vunpack.c.l.b16 %v265
      %v503 = vunpack.c.h.b16 %v265
      %v504 = vunpack.c.l.b16 %v266
      %v505 = vunpack.c.h.b16 %v266
      %v506 = vunpack.c.l.b16 %v267
      %v507 = vunpack.c.h.b16 %v267
      %v508 = vunpack.c.l.b16 %v268
      %v509 = vunpack.c.h.b16 %v268
      %v510 = vpack.c.b16 %v386, %v382
      %v511 = vpack.c.b16 %v387, %v383
      %v512 = vpack.c.b16 %v388, %v384
      %v513 = vpack.c.b16 %v389, %v385
      %v514 = vpack.c.b16 %v394, %v390
      %v515 = vpack.c.b16 %v395, %v391
      %v516 = vpack.c.b16 %v396, %v392
      %v517 = vpack.c.b16 %v397, %v393
      %v518 = vpack.c.b16 %v402, %v398
      %v519 = vpack.c.b16 %v403, %v399
      %v520 = vpack.c.b16 %v404, %v400
      %v521 = vpack.c.b16 %v405, %v401
      %v522 = vpack.c.b16 %v410, %v406
      %v523 = vpack.c.b16 %v411, %v407
      %v524 = vpack.c.b16 %v412, %v408
      %v525 = vpack.c.b16 %v413, %v409
      %v526 = vpack.c.b16 %v418, %v414
      %v527 = vpack.c.b16 %v419, %v415
      %v528 = vpack.c.b16 %v420, %v416
      %v529 = vpack.c.b16 %v421, %v417
      %v530 = vpack.c.b16 %v426, %v422
      %v531 = vpack.c.b16 %v427, %v423
      %v532 = vpack.c.b16 %v428, %v424
      %v533 = vpack.c.b16 %v429, %v425
      %v534 = vpack.c.b16 %v434, %v430
      %v535 = vpack.c.b16 %v435, %v431
      %v536 = vpack.c.b16 %v436, %v432
      %v537 = vpack.c.b16 %v437, %v433
      %v538 = vpack.c.b16 %v442, %v438
      %v539 = vpack.c.b16 %v443, %v439
      %v540 = vpack.c.b16 %v444, %v440
      %v541 = vpack.c.b16 %v445, %v441
      %v542 = vpack.c.b16 %v450, %v446
      %v543 = vpack.c.b16 %v451, %v447
      %v544 = vpack.c.b16 %v452, %v448
      %v545 = vpack.c.b16 %v453, %v449
      %v546 = vpack.c.b16 %v458, %v454
      %v547 = vpack.c.b16 %v459, %v455
      %v548 = vpack.c.b16 %v460, %v456
      %v549 = vpack.c.b16 %v461, %v457
      %v550 = vpack.c.b16 %v466, %v462
      %v551 = vpack.c.b16 %v467, %v463
      %v552 = vpack.c.b16 %v468, %v464
      %v553 = vpack.c.b16 %v469, %v465
      %v554 = vpack.c.b16 %v474, %v470
      %v555 = vpack.c.b16 %v475, %v471
      %v556 = vpack.c.b16 %v476, %v472
      %v557 = vpack.c.b16 %v477, %v473
      %v558 = vpack.c.b16 %v482, %v478
      %v559 = vpack.c.b16 %v483, %v479
      %v560 = vpack.c.b16 %v484, %v480
      %v561 = vpack.c.b16 %v485, %v481
      %v562 = vpack.c.b16 %v490, %v486
      %v563 = vpack.c.b16 %v491, %v487
      %v564 = vpack.c.b16 %v492, %v488
      %v565 = vpack.c.b16 %v493, %v489
      %v566 = vpack.c.b16 %v498, %v494
      %v567 = vpack.c.b16 %v499, %v495
      %v568 = vpack.c.b16 %v500, %v496
      %v569 = vpack.c.b16 %v501, %v497
      %v570 = vpack.c.b16 %v506, %v502
      %v571 = vpack.c.b16 %v507, %v503
      %v572 = vpack.c.b16 %v508, %v504
      %v573 = vpack.c.b16 %v509, %v505
      %v671 = vunpack.c.l.b16 %v269
      %v672 = vunpack.c.l.b16 %v270
      %v673 = vunpack.c.l.b16 %v271
      %v674 = vunpack.c.l.b16 %v272
      %v675 = vunpack.c.l.b16 %v273
      %v676 = vunpack.c.l.b16 %v274
      %v677 = vunpack.c.l.b16 %v275
      %v678 = vunpack.c.l.b16 %v276
      %v679 = vunpack.c.l.b16 %v277
      %v680 = vunpack.c.l.b16 %v278
      %v681 = vunpack.c.l.b16 %v279
      %v682 = vunpack.c.l.b16 %v280
      %v683 = vunpack.c.l.b16 %v281
      %v684 = vunpack.c.l.b16 %v282
      %v685 = vunpack.c.l.b16 %v283
      %v686 = vunpack.c.l.b16 %v284
      %v687 = vunpack.c.l.b16 %v285
      %v688 = vunpack.c.l.b16 %v286
      %v689 = vunpack.c.l.b16 %v287
      %v690 = vunpack.c.l.b16 %v288
      %v691 = vunpack.c.l.b16 %v289
      %v692 = vunpack.c.l.b16 %v290
      %v693 = vunpack.c.l.b16 %v291
      %v694 = vunpack.c.l.b16 %v292
      %v695 = vunpack.c.l.b16 %v293
      %v696 = vunpack.c.l.b16 %v294
      %v697 = vunpack.c.l.b16 %v295
      %v698 = vunpack.c.l.b16 %v296
      %v699 = vunpack.c.l.b16 %v297
      %v700 = vunpack.c.l.b16 %v298
      %v701 = vunpack.c.l.b16 %v299
      %v702 = vunpack.c.l.b16 %v300
      %v703 = vunpack.c.l.b16 %v301
      %v704 = vunpack.c.l.b16 %v302
      %v705 = vunpack.c.l.b16 %v303
      %v706 = vunpack.c.l.b16 %v304
      %v707 = vunpack.c.l.b16 %v305
      %v708 = vunpack.c.l.b16 %v306
      %v709 = vunpack.c.l.b16 %v307
      %v710 = vunpack.c.l.b16 %v308
      %v711 = vunpack.c.l.b16 %v309
      %v712 = vunpack.c.l.b16 %v310
      %v713 = vunpack.c.l.b16 %v311
      %v714 = vunpack.c.l.b16 %v312
      %v715 = vunpack.c.l.b16 %v313
      %v716 = vunpack.c.l.b16 %v314
      %v717 = vunpack.c.l.b16 %v315
      %v718 = vunpack.c.l.b16 %v316
      %v719 = vunpack.c.l.b16 %v317
      %v720 = vpack.c.b16 %v672, %v671
      %v721 = vpack.c.b16 %v674, %v673
      %v722 = vpack.c.b16 %v676, %v675
      %v723 = vpack.c.b16 %v678, %v677
      %v724 = vpack.c.b16 %v680, %v679
      %v725 = vpack.c.b16 %v682, %v681
      %v726 = vpack.c.b16 %v684, %v683
      %v727 = vpack.c.b16 %v686, %v685
      %v728 = vpack.c.b16 %v688, %v687
      %v729 = vpack.c.b16 %v690, %v689
      %v730 = vpack.c.b16 %v692, %v691
      %v731 = vpack.c.b16 %v694, %v693
      %v732 = vpack.c.b16 %v696, %v695
      %v733 = vpack.c.b16 %v698, %v697
      %v734 = vpack.c.b16 %v700, %v699
      %v735 = vpack.c.b16 %v702, %v701
      %v736 = vpack.c.b16 %v704, %v703
      %v737 = vpack.c.b16 %v706, %v705
      %v738 = vpack.c.b16 %v708, %v707
      %v739 = vpack.c.b16 %v710, %v709
      %v740 = vpack.c.b16 %v712, %v711
      %v741 = vpack.c.b16 %v714, %v713
      %v742 = vpack.c.b16 %v716, %v715
      %v743 = vpack.c.b16 %v718, %v717
      %v744 = vpack.c.b16 %v719, %v719
      %vm769 = vcmask 64512
      %v771 = vsel %vm769, %v513, 0
      %v774 = vsel %vm769, %v517, 0
      %v777 = vsel %vm769, %v521, 0
      %v780 = vsel %vm769, %v525, 0
      %v783 = vsel %vm769, %v529, 0
      %v786 = vsel %vm769, %v533, 0
      %v789 = vsel %vm769, %v537, 0
      %v792 = vsel %vm769, %v541, 0
      %v795 = vsel %vm769, %v545, 0
      %v798 = vsel %vm769, %v549, 0
      %v801 = vsel %vm769, %v553, 0
      %v804 = vsel %vm769, %v557, 0
      %v807 = vsel %vm769, %v561, 0
      %v810 = vsel %vm769, %v565, 0
      %v813 = vsel %vm769, %v569, 0
      %v816 = vsel %vm769, %v573, 0
      %vm818 = vcmask 1043456
      %v820 = vsel %vm818, %v744, 0
      %822 = vmatprep.subr.bf16.mxu0 0
      %823 = vmatpush1.bf16.msra.mxu0 %v720
      %824 = vmatprep.subr.bf16.mxu0 0
      %825 = vmatpush1.bf16.msra.mxu0 %v721
      %826 = vmatprep.subr.bf16.mxu0 0
      %827 = vmatpush1.bf16.msra.mxu0 %v722
      %828 = vmatprep.subr.bf16.mxu0 0
      %829 = vmatpush1.bf16.msra.mxu0 %v723
      %830 = vmatprep.subr.bf16.mxu0 0
      %831 = vmatpush1.bf16.msra.mxu0 %v724
      %832 = vmatprep.subr.bf16.mxu0 0
      %833 = vmatpush1.bf16.msra.mxu0 %v725
      %834 = vmatprep.subr.bf16.mxu0 0
      %835 = vmatpush1.bf16.msra.mxu0 %v726
      %836 = vmatprep.subr.bf16.mxu0 0
      %837 = vmatpush1.bf16.msra.mxu0 %v727
      %838 = vmatprep.subr.bf16.mxu0 0
      %839 = vmatpush1.bf16.msra.mxu0 %v728
      %840 = vmatprep.subr.bf16.mxu0 0
      %841 = vmatpush1.bf16.msra.mxu0 %v729
      %842 = vmatprep.subr.bf16.mxu0 0
      %843 = vmatpush1.bf16.msra.mxu0 %v730
      %844 = vmatprep.subr.bf16.mxu0 0
      %845 = vmatpush1.bf16.msra.mxu0 %v731
      %846 = vmatprep.subr.bf16.mxu0 0
      %847 = vmatpush1.bf16.msra.mxu0 %v732
      %848 = vmatprep.subr.bf16.mxu0 0
      %849 = vmatpush1.bf16.msra.mxu0 %v733
      %850 = vmatprep.subr.bf16.mxu0 0
      %851 = vmatpush1.bf16.msra.mxu0 %v734
      %852 = vmatprep.subr.bf16.mxu0 0
      %853 = vmatpush1.bf16.msra.mxu0 %v735
      %854 = vmatprep.mubr.bf16.mxu0 %v511
      %855 = vmatmul.mubr.bf16.gmra.mrb[0].mxu0 %v510
      %v856 = vpop.f32.mrb[0].mxu0
      %v857 = vadd.f32 0.0, %v856
      %v858 = vpop.f32.mrb[0].mxu0
      %v859 = vpop.f32.mrb[0].mxu0
      %v860 = vadd.f32 0.0, %v859
      %v861 = vpop.f32.mrb[0].mxu0
      %862 = vmatprep.mubr.bf16.mxu0 %v515
      %863 = vmatmul.mubr.bf16.gmra.mrb[0].mxu0 %v514
      %v864 = vpop.f32.mrb[0].mxu0
      %v865 = vadd.f32 0.0, %v864
      %v866 = vpop.f32.mrb[0].mxu0
      %v867 = vpop.f32.mrb[0].mxu0
      %v868 = vadd.f32 0.0, %v867
      %v869 = vpop.f32.mrb[0].mxu0
      %870 = vmatprep.mubr.bf16.mxu0 %v519
      %871 = vmatmul.mubr.bf16.gmra.mrb[0].mxu0 %v518
      %v872 = vpop.f32.mrb[0].mxu0
      %v873 = vadd.f32 0.0, %v872
      %v874 = vpop.f32.mrb[0].mxu0
      %v875 = vpop.f32.mrb[0].mxu0
      %v876 = vadd.f32 0.0, %v875
      %v877 = vpop.f32.mrb[0].mxu0
      %878 = vmatprep.mubr.bf16.mxu0 %v523
      %879 = vmatmul.mubr.bf16.gmra.mrb[0].mxu0 %v522
      %v880 = vpop.f32.mrb[0].mxu0
      %v881 = vadd.f32 0.0, %v880
      %v882 = vpop.f32.mrb[0].mxu0
      %v883 = vpop.f32.mrb[0].mxu0
      %v884 = vadd.f32 0.0, %v883
      %v885 = vpop.f32.mrb[0].mxu0
      %886 = vmatprep.mubr.bf16.mxu0 %v527
      %887 = vmatmul.mubr.bf16.gmra.mrb[0].mxu0 %v526
      %v888 = vpop.f32.mrb[0].mxu0
      %v889 = vadd.f32 0.0, %v888
      %v890 = vpop.f32.mrb[0].mxu0
      %v891 = vpop.f32.mrb[0].mxu0
      %v892 = vadd.f32 0.0, %v891
      %v893 = vpop.f32.mrb[0].mxu0
      %894 = vmatprep.mubr.bf16.mxu0 %v531
      %895 = vmatmul.mubr.bf16.gmra.mrb[0].mxu0 %v530
      %v896 = vpop.f32.mrb[0].mxu0
      %v897 = vadd.f32 0.0, %v896
      %v898 = vpop.f32.mrb[0].mxu0
      %v899 = vpop.f32.mrb[0].mxu0
      %v900 = vadd.f32 0.0, %v899
      %v901 = vpop.f32.mrb[0].mxu0
      %902 = vmatprep.mubr.bf16.mxu0 %v535
      %903 = vmatmul.mubr.bf16.gmra.mrb[0].mxu0 %v534
      %v904 = vpop.f32.mrb[0].mxu0
      %v905 = vadd.f32 0.0, %v904
      %v906 = vpop.f32.mrb[0].mxu0
      %v907 = vpop.f32.mrb[0].mxu0
      %v908 = vadd.f32 0.0, %v907
      %v909 = vpop.f32.mrb[0].mxu0
      %910 = vmatprep.mubr.bf16.mxu0 %v539
      %911 = vmatmul.mubr.bf16.gmra.mrb[0].mxu0 %v538
      %v912 = vpop.f32.mrb[0].mxu0
      %v913 = vadd.f32 0.0, %v912
      %v914 = vpop.f32.mrb[0].mxu0
      %v915 = vpop.f32.mrb[0].mxu0
      %v916 = vadd.f32 0.0, %v915
      %v917 = vpop.f32.mrb[0].mxu0
      %918 = vmatprep.mubr.bf16.mxu0 %v543
      %919 = vmatmul.mubr.bf16.gmra.mrb[0].mxu0 %v542
      %v920 = vpop.f32.mrb[0].mxu0
      %v921 = vadd.f32 0.0, %v920
      %v922 = vpop.f32.mrb[0].mxu0
      %v923 = vpop.f32.mrb[0].mxu0
      %v924 = vadd.f32 0.0, %v923
      %v925 = vpop.f32.mrb[0].mxu0
      %926 = vmatprep.mubr.bf16.mxu0 %v547
      %927 = vmatmul.mubr.bf16.gmra.mrb[0].mxu0 %v546
      %v928 = vpop.f32.mrb[0].mxu0
      %v929 = vadd.f32 0.0, %v928
      %v930 = vpop.f32.mrb[0].mxu0
      %v931 = vpop.f32.mrb[0].mxu0
      %v932 = vadd.f32 0.0, %v931
      %v933 = vpop.f32.mrb[0].mxu0
      %934 = vmatprep.mubr.bf16.mxu0 %v551
      %935 = vmatmul.mubr.bf16.gmra.mrb[0].mxu0 %v550
      %v936 = vpop.f32.mrb[0].mxu0
      %v937 = vadd.f32 0.0, %v936
      %v938 = vpop.f32.mrb[0].mxu0
      %v939 = vpop.f32.mrb[0].mxu0
      %v940 = vadd.f32 0.0, %v939
      %v941 = vpop.f32.mrb[0].mxu0
      %942 = vmatprep.mubr.bf16.mxu0 %v555
      %943 = vmatmul.mubr.bf16.gmra.mrb[0].mxu0 %v554
      %v944 = vpop.f32.mrb[0].mxu0
      %v945 = vadd.f32 0.0, %v944
      %v946 = vpop.f32.mrb[0].mxu0
      %v947 = vpop.f32.mrb[0].mxu0
      %v948 = vadd.f32 0.0, %v947
      %v949 = vpop.f32.mrb[0].mxu0
      %950 = vmatprep.mubr.bf16.mxu0 %v559
      %951 = vmatmul.mubr.bf16.gmra.mrb[0].mxu0 %v558
      %v952 = vpop.f32.mrb[0].mxu0
      %v953 = vadd.f32 0.0, %v952
      %v954 = vpop.f32.mrb[0].mxu0
      %v955 = vpop.f32.mrb[0].mxu0
      %v956 = vadd.f32 0.0, %v955
      %v957 = vpop.f32.mrb[0].mxu0
      %958 = vmatprep.mubr.bf16.mxu0 %v563
      %959 = vmatmul.mubr.bf16.gmra.mrb[0].mxu0 %v562
      %v960 = vpop.f32.mrb[0].mxu0
      %v961 = vadd.f32 0.0, %v960
      %v962 = vpop.f32.mrb[0].mxu0
      %v963 = vpop.f32.mrb[0].mxu0
      %v964 = vadd.f32 0.0, %v963
      %v965 = vpop.f32.mrb[0].mxu0
      %966 = vmatprep.mubr.bf16.mxu0 %v567
      %967 = vmatmul.mubr.bf16.gmra.mrb[0].mxu0 %v566
      %v968 = vpop.f32.mrb[0].mxu0
      %v969 = vadd.f32 0.0, %v968
      %v970 = vpop.f32.mrb[0].mxu0
      %v971 = vpop.f32.mrb[0].mxu0
      %v972 = vadd.f32 0.0, %v971
      %v973 = vpop.f32.mrb[0].mxu0
      %974 = vmatprep.mubr.bf16.mxu0 %v571
      %975 = vmatmul.mubr.bf16.gmra.mrb[0].mxu0 %v570
      %v976 = vpop.f32.mrb[0].mxu0
      %v977 = vadd.f32 0.0, %v976
      %v978 = vpop.f32.mrb[0].mxu0
      %v979 = vpop.f32.mrb[0].mxu0
      %v980 = vadd.f32 0.0, %v979
      %v981 = vpop.f32.mrb[0].mxu0
      %982 = vdwg.mxu0
      %983 = vmatprep.subr.bf16.mxu0 0
      %984 = vmatpush1.bf16.msra.mxu0 %v736
      %985 = vmatprep.subr.bf16.mxu0 0
      %986 = vmatpush1.bf16.msra.mxu0 %v737
      %987 = vmatprep.subr.bf16.mxu0 0
      %988 = vmatpush1.bf16.msra.mxu0 %v738
      %989 = vmatprep.subr.bf16.mxu0 0
      %990 = vmatpush1.bf16.msra.mxu0 %v739
      %991 = vmatprep.subr.bf16.mxu0 0
      %992 = vmatpush1.bf16.msra.mxu0 %v740
      %993 = vmatprep.subr.bf16.mxu0 0
      %994 = vmatpush1.bf16.msra.mxu0 %v741
      %995 = vmatprep.subr.bf16.mxu0 0
      %996 = vmatpush1.bf16.msra.mxu0 %v742
      %997 = vmatprep.subr.bf16.mxu0 0
      %998 = vmatpush1.bf16.msra.mxu0 %v743
      %999 = vmatprep.subr.bf16.mxu0 0
      %1000 = vmatpush1.bf16.msra.mxu0 %v820
      %1001 = vmatprep.subr.bf16.mxu0 0
      %1002 = vmatpush1.bf16.msra.mxu0 0
      %1003 = vmatprep.subr.bf16.mxu0 0
      %1004 = vmatpush1.bf16.msra.mxu0 0
      %1005 = vmatprep.subr.bf16.mxu0 0
      %1006 = vmatpush1.bf16.msra.mxu0 0
      %1007 = vmatprep.subr.bf16.mxu0 0
      %1008 = vmatpush1.bf16.msra.mxu0 0
      %1009 = vmatprep.subr.bf16.mxu0 0
      %1010 = vmatpush1.bf16.msra.mxu0 0
      %1011 = vmatprep.subr.bf16.mxu0 0
      %1012 = vmatpush1.bf16.msra.mxu0 0
      %1013 = vmatprep.subr.bf16.mxu0 0
      %1014 = vmatpush1.bf16.msra.mxu0 0
      %1015 = vmatprep.mubr.bf16.mxu0 %v771
      %1016 = vmatmul.mubr.bf16.gmra.mrb[0].mxu0 %v512
      %v1017 = vpop.f32.mrb[0].mxu0
      %v1018 = vadd.f32 %v857, %v1017
      %v1019 = vpop.f32.mrb[0].mxu0
      %v1020 = vpop.f32.mrb[0].mxu0
      %v1021 = vadd.f32 %v860, %v1020
      %v1022 = vpop.f32.mrb[0].mxu0
      %1023 = vmatprep.mubr.bf16.mxu0 %v774
      %1024 = vmatmul.mubr.bf16.gmra.mrb[0].mxu0 %v516
      %v1025 = vpop.f32.mrb[0].mxu0
      %v1026 = vadd.f32 %v865, %v1025
      %v1027 = vpop.f32.mrb[0].mxu0
      %v1028 = vpop.f32.mrb[0].mxu0
      %v1029 = vadd.f32 %v868, %v1028
      %v1030 = vpop.f32.mrb[0].mxu0
      %1031 = vmatprep.mubr.bf16.mxu0 %v777
      %1032 = vmatmul.mubr.bf16.gmra.mrb[0].mxu0 %v520
      %v1033 = vpop.f32.mrb[0].mxu0
      %v1034 = vadd.f32 %v873, %v1033
      %v1035 = vpop.f32.mrb[0].mxu0
      %v1036 = vpop.f32.mrb[0].mxu0
      %v1037 = vadd.f32 %v876, %v1036
      %v1038 = vpop.f32.mrb[0].mxu0
      %1039 = vmatprep.mubr.bf16.mxu0 %v780
      %1040 = vmatmul.mubr.bf16.gmra.mrb[0].mxu0 %v524
      %v1041 = vpop.f32.mrb[0].mxu0
      %v1042 = vadd.f32 %v881, %v1041
      %v1043 = vpop.f32.mrb[0].mxu0
      %v1044 = vpop.f32.mrb[0].mxu0
      %v1045 = vadd.f32 %v884, %v1044
      %v1046 = vpop.f32.mrb[0].mxu0
      %1047 = vmatprep.mubr.bf16.mxu0 %v783
      %1048 = vmatmul.mubr.bf16.gmra.mrb[0].mxu0 %v528
      %v1049 = vpop.f32.mrb[0].mxu0
      %v1050 = vadd.f32 %v889, %v1049
      %v1051 = vpop.f32.mrb[0].mxu0
      %v1052 = vpop.f32.mrb[0].mxu0
      %v1053 = vadd.f32 %v892, %v1052
      %v1054 = vpop.f32.mrb[0].mxu0
      %1055 = vmatprep.mubr.bf16.mxu0 %v786
      %1056 = vmatmul.mubr.bf16.gmra.mrb[0].mxu0 %v532
      %v1057 = vpop.f32.mrb[0].mxu0
      %v1058 = vadd.f32 %v897, %v1057
      %v1059 = vpop.f32.mrb[0].mxu0
      %v1060 = vpop.f32.mrb[0].mxu0
      %v1061 = vadd.f32 %v900, %v1060
      %v1062 = vpop.f32.mrb[0].mxu0
      %1063 = vmatprep.mubr.bf16.mxu0 %v789
      %1064 = vmatmul.mubr.bf16.gmra.mrb[0].mxu0 %v536
      %v1065 = vpop.f32.mrb[0].mxu0
      %v1066 = vadd.f32 %v905, %v1065
      %v1067 = vpop.f32.mrb[0].mxu0
      %v1068 = vpop.f32.mrb[0].mxu0
      %v1069 = vadd.f32 %v908, %v1068
      %v1070 = vpop.f32.mrb[0].mxu0
      %1071 = vmatprep.mubr.bf16.mxu0 %v792
      %1072 = vmatmul.mubr.bf16.gmra.mrb[0].mxu0 %v540
      %v1073 = vpop.f32.mrb[0].mxu0
      %v1074 = vadd.f32 %v913, %v1073
      %v1075 = vpop.f32.mrb[0].mxu0
      %v1076 = vpop.f32.mrb[0].mxu0
      %v1077 = vadd.f32 %v916, %v1076
      %v1078 = vpop.f32.mrb[0].mxu0
      %1079 = vmatprep.mubr.bf16.mxu0 %v795
      %1080 = vmatmul.mubr.bf16.gmra.mrb[0].mxu0 %v544
      %v1081 = vpop.f32.mrb[0].mxu0
      %v1082 = vadd.f32 %v921, %v1081
      %v1083 = vpop.f32.mrb[0].mxu0
      %v1084 = vpop.f32.mrb[0].mxu0
      %v1085 = vadd.f32 %v924, %v1084
      %v1086 = vpop.f32.mrb[0].mxu0
      %1087 = vmatprep.mubr.bf16.mxu0 %v798
      %1088 = vmatmul.mubr.bf16.gmra.mrb[0].mxu0 %v548
      %v1089 = vpop.f32.mrb[0].mxu0
      %v1090 = vadd.f32 %v929, %v1089
      %v1091 = vpop.f32.mrb[0].mxu0
      %v1092 = vpop.f32.mrb[0].mxu0
      %v1093 = vadd.f32 %v932, %v1092
      %v1094 = vpop.f32.mrb[0].mxu0
      %1095 = vmatprep.mubr.bf16.mxu0 %v801
      %1096 = vmatmul.mubr.bf16.gmra.mrb[0].mxu0 %v552
      %v1097 = vpop.f32.mrb[0].mxu0
      %v1098 = vadd.f32 %v937, %v1097
      %v1099 = vpop.f32.mrb[0].mxu0
      %v1100 = vpop.f32.mrb[0].mxu0
      %v1101 = vadd.f32 %v940, %v1100
      %v1102 = vpop.f32.mrb[0].mxu0
      %1103 = vmatprep.mubr.bf16.mxu0 %v804
      %1104 = vmatmul.mubr.bf16.gmra.mrb[0].mxu0 %v556
      %v1105 = vpop.f32.mrb[0].mxu0
      %v1106 = vadd.f32 %v945, %v1105
      %v1107 = vpop.f32.mrb[0].mxu0
      %v1108 = vpop.f32.mrb[0].mxu0
      %v1109 = vadd.f32 %v948, %v1108
      %v1110 = vpop.f32.mrb[0].mxu0
      %1111 = vmatprep.mubr.bf16.mxu0 %v807
      %1112 = vmatmul.mubr.bf16.gmra.mrb[0].mxu0 %v560
      %v1113 = vpop.f32.mrb[0].mxu0
      %v1114 = vadd.f32 %v953, %v1113
      %v1115 = vpop.f32.mrb[0].mxu0
      %v1116 = vpop.f32.mrb[0].mxu0
      %v1117 = vadd.f32 %v956, %v1116
      %v1118 = vpop.f32.mrb[0].mxu0
      %1119 = vmatprep.mubr.bf16.mxu0 %v810
      %1120 = vmatmul.mubr.bf16.gmra.mrb[0].mxu0 %v564
      %v1121 = vpop.f32.mrb[0].mxu0
      %v1122 = vadd.f32 %v961, %v1121
      %v1123 = vpop.f32.mrb[0].mxu0
      %v1124 = vpop.f32.mrb[0].mxu0
      %v1125 = vadd.f32 %v964, %v1124
      %v1126 = vpop.f32.mrb[0].mxu0
      %1127 = vmatprep.mubr.bf16.mxu0 %v813
      %1128 = vmatmul.mubr.bf16.gmra.mrb[0].mxu0 %v568
      %v1129 = vpop.f32.mrb[0].mxu0
      %v1130 = vadd.f32 %v969, %v1129
      %v1131 = vpop.f32.mrb[0].mxu0
      %v1132 = vpop.f32.mrb[0].mxu0
      %v1133 = vadd.f32 %v972, %v1132
      %v1134 = vpop.f32.mrb[0].mxu0
      %1135 = vmatprep.mubr.bf16.mxu0 %v816
      %1136 = vmatmul.mubr.bf16.gmra.mrb[0].mxu0 %v572
      %v1137 = vpop.f32.mrb[0].mxu0
      %v1138 = vadd.f32 %v977, %v1137
      %v1139 = vpop.f32.mrb[0].mxu0
      %v1140 = vpop.f32.mrb[0].mxu0
      %v1141 = vadd.f32 %v980, %v1140
      %v1142 = vpop.f32.mrb[0].mxu0
      %1143 = vdwg.mxu0
      %v1144 = vld [vmem:[%s2] sm:$0x1]
      %v1146 = vlaneseq
      %v1147 = vshrl.u32 %v1146, 7
      %v1148 = vsub.s32 0, %v1147
      %v1149 = vrot.slane %v1144, %v1148
      %v1151 = vmul.f32 %v1018, %v1149
      %v1152 = vmul.f32 %v1021, %v1149
      %v1153 = vmul.f32 %v1026, %v1149
      %v1154 = vmul.f32 %v1029, %v1149
      %v1155 = vmul.f32 %v1034, %v1149
      %v1156 = vmul.f32 %v1037, %v1149
      %v1157 = vmul.f32 %v1042, %v1149
      %v1158 = vmul.f32 %v1045, %v1149
      %v1159 = vmul.f32 %v1050, %v1149
      %v1160 = vmul.f32 %v1053, %v1149
      %v1161 = vmul.f32 %v1058, %v1149
      %v1162 = vmul.f32 %v1061, %v1149
      %v1163 = vmul.f32 %v1066, %v1149
      %v1164 = vmul.f32 %v1069, %v1149
      %v1165 = vmul.f32 %v1074, %v1149
      %v1166 = vmul.f32 %v1077, %v1149
      %v1167 = vmul.f32 %v1082, %v1149
      %v1168 = vmul.f32 %v1085, %v1149
      %v1169 = vmul.f32 %v1090, %v1149
      %v1170 = vmul.f32 %v1093, %v1149
      %v1171 = vmul.f32 %v1098, %v1149
      %v1172 = vmul.f32 %v1101, %v1149
      %v1173 = vmul.f32 %v1106, %v1149
      %v1174 = vmul.f32 %v1109, %v1149
      %v1175 = vmul.f32 %v1114, %v1149
      %v1176 = vmul.f32 %v1117, %v1149
      %v1177 = vmul.f32 %v1122, %v1149
      %v1178 = vmul.f32 %v1125, %v1149
      %v1179 = vmul.f32 %v1130, %v1149
      %v1180 = vmul.f32 %v1133, %v1149
      %v1181 = vmul.f32 %v1138, %v1149
      %v1182 = vmul.f32 %v1141, %v1149
      %v1183 = vld [vmem:[%s3] sm:$0x1]
      %v1185 = vlaneseq
      %v1186 = vshrl.u32 %v1185, 7
      %v1187 = vsub.s32 0, %v1186
      %v1188 = vrot.slane %v1183, %v1187
      %v1190 = vadd.f32 %v1151, %v1188
      %v1191 = vadd.f32 %v1152, %v1188
      %v1192 = vadd.f32 %v1153, %v1188
      %v1193 = vadd.f32 %v1154, %v1188
      %v1194 = vadd.f32 %v1155, %v1188
      %v1195 = vadd.f32 %v1156, %v1188
      %v1196 = vadd.f32 %v1157, %v1188
      %v1197 = vadd.f32 %v1158, %v1188
      %v1198 = vadd.f32 %v1159, %v1188
      %v1199 = vadd.f32 %v1160, %v1188
      %v1200 = vadd.f32 %v1161, %v1188
      %v1201 = vadd.f32 %v1162, %v1188
      %v1202 = vadd.f32 %v1163, %v1188
      %v1203 = vadd.f32 %v1164, %v1188
      %v1204 = vadd.f32 %v1165, %v1188
      %v1205 = vadd.f32 %v1166, %v1188
      %v1206 = vadd.f32 %v1167, %v1188
      %v1207 = vadd.f32 %v1168, %v1188
      %v1208 = vadd.f32 %v1169, %v1188
      %v1209 = vadd.f32 %v1170, %v1188
      %v1210 = vadd.f32 %v1171, %v1188
      %v1211 = vadd.f32 %v1172, %v1188
      %v1212 = vadd.f32 %v1173, %v1188
      %v1213 = vadd.f32 %v1174, %v1188
      %v1214 = vadd.f32 %v1175, %v1188
      %v1215 = vadd.f32 %v1176, %v1188
      %v1216 = vadd.f32 %v1177, %v1188
      %v1217 = vadd.f32 %v1178, %v1188
      %v1218 = vadd.f32 %v1179, %v1188
      %v1219 = vadd.f32 %v1180, %v1188
      %v1220 = vadd.f32 %v1181, %v1188
      %v1221 = vadd.f32 %v1182, %v1188
      %v1222 = vmax.f32 %v1190, 0.0
      %v1223 = vmax.f32 %v1191, 0.0
      %v1224 = vmax.f32 %v1192, 0.0
      %v1225 = vmax.f32 %v1193, 0.0
      %v1226 = vmax.f32 %v1194, 0.0
      %v1227 = vmax.f32 %v1195, 0.0
      %v1228 = vmax.f32 %v1196, 0.0
      %v1229 = vmax.f32 %v1197, 0.0
      %v1230 = vmax.f32 %v1198, 0.0
      %v1231 = vmax.f32 %v1199, 0.0
      %v1232 = vmax.f32 %v1200, 0.0
      %v1233 = vmax.f32 %v1201, 0.0
      %v1234 = vmax.f32 %v1202, 0.0
      %v1235 = vmax.f32 %v1203, 0.0
      %v1236 = vmax.f32 %v1204, 0.0
      %v1237 = vmax.f32 %v1205, 0.0
      %v1238 = vmax.f32 %v1206, 0.0
      %v1239 = vmax.f32 %v1207, 0.0
      %v1240 = vmax.f32 %v1208, 0.0
      %v1241 = vmax.f32 %v1209, 0.0
      %v1242 = vmax.f32 %v1210, 0.0
      %v1243 = vmax.f32 %v1211, 0.0
      %v1244 = vmax.f32 %v1212, 0.0
      %v1245 = vmax.f32 %v1213, 0.0
      %v1246 = vmax.f32 %v1214, 0.0
      %v1247 = vmax.f32 %v1215, 0.0
      %v1248 = vmax.f32 %v1216, 0.0
      %v1249 = vmax.f32 %v1217, 0.0
      %v1250 = vmax.f32 %v1218, 0.0
      %v1251 = vmax.f32 %v1219, 0.0
      %v1252 = vmax.f32 %v1220, 0.0
      %v1253 = vmax.f32 %v1221, 0.0
      %vm1254 = vcmask 523264
      %1255 = vst.msk [vmem:[%s202] sm:$0xff] %vm1254, %v1222
      %1256 = vst.msk [vmem:[%s202 + $0x8] sm:$0xff] %vm1254, %v1223
      %1257 = vst.msk [vmem:[%s202 + $0x10] sm:$0xff] %vm1254, %v1224
      %1258 = vst.msk [vmem:[%s202 + $0x18] sm:$0xff] %vm1254, %v1225
      %1259 = vst.msk [vmem:[%s202 + $0x20] sm:$0xff] %vm1254, %v1226
      %1260 = vst.msk [vmem:[%s202 + $0x28] sm:$0xff] %vm1254, %v1227
      %1261 = vst.msk [vmem:[%s202 + $0x30] sm:$0xff] %vm1254, %v1228
      %1262 = vst.msk [vmem:[%s202 + $0x38] sm:$0xff] %vm1254, %v1229
      %1263 = vst.msk [vmem:[%s202 + $0x40] sm:$0xff] %vm1254, %v1230
      %1264 = vst.msk [vmem:[%s202 + $0x48] sm:$0xff] %vm1254, %v1231
      %1265 = vst.msk [vmem:[%s202 + $0x50] sm:$0xff] %vm1254, %v1232
      %1266 = vst.msk [vmem:[%s202 + $0x58] sm:$0xff] %vm1254, %v1233
      %1267 = vst.msk [vmem:[%s202 + $0x60] sm:$0xff] %vm1254, %v1234
      %1268 = vst.msk [vmem:[%s202 + $0x68] sm:$0xff] %vm1254, %v1235
      %1269 = vst.msk [vmem:[%s202 + $0x70] sm:$0xff] %vm1254, %v1236
      %1270 = vst.msk [vmem:[%s202 + $0x78] sm:$0xff] %vm1254, %v1237
      %1271 = vst.msk [vmem:[%s202 + $0x80] sm:$0xff] %vm1254, %v1238
      %1272 = vst.msk [vmem:[%s202 + $0x88] sm:$0xff] %vm1254, %v1239
      %1273 = vst.msk [vmem:[%s202 + $0x90] sm:$0xff] %vm1254, %v1240
      %1274 = vst.msk [vmem:[%s202 + $0x98] sm:$0xff] %vm1254, %v1241
      %1275 = vst.msk [vmem:[%s202 + $0xa0] sm:$0xff] %vm1254, %v1242
      %1276 = vst.msk [vmem:[%s202 + $0xa8] sm:$0xff] %vm1254, %v1243
      %1277 = vst.msk [vmem:[%s202 + $0xb0] sm:$0xff] %vm1254, %v1244
      %1278 = vst.msk [vmem:[%s202 + $0xb8] sm:$0xff] %vm1254, %v1245
      %1279 = vst.msk [vmem:[%s202 + $0xc0] sm:$0xff] %vm1254, %v1246
      %1280 = vst.msk [vmem:[%s202 + $0xc8] sm:$0xff] %vm1254, %v1247
      %1281 = vst.msk [vmem:[%s202 + $0xd0] sm:$0xff] %vm1254, %v1248
      %1282 = vst.msk [vmem:[%s202 + $0xd8] sm:$0xff] %vm1254, %v1249
      %1283 = vst.msk [vmem:[%s202 + $0xe0] sm:$0xff] %vm1254, %v1250
      %1284 = vst.msk [vmem:[%s202 + $0xe8] sm:$0xff] %vm1254, %v1251
      %1285 = vst.msk [vmem:[%s202 + $0xf0] sm:$0xff] %vm1254, %v1252
      %1286 = vst.msk [vmem:[%s202 + $0xf8] sm:$0xff] %vm1254, %v1253
      %s1287 = smul.u32 32, %s15
      %p1288 = scmp.lt.s32.totalorder %s1287, 63
      %s1289 = scalar_select %p1288, %s1287, 63
      %s1290 = smul.addr %s1289, 8
      %s1291 = scalar_lea.vmem %s4, %s1290
      // Predicated region
      $region37: #{ovt_forward.11} parent=35 // pred_check
        %p1292 = pneg %p122
      $region38: #{ovt_forward.11} parent=35 // pred_check_branch
        %1294 = sbr.rel (%p1292) target = $region40
      $region39: #{ovt_forward.11} parent=35 // pred_region
        %s1295 = smul.u32 32, %s15
      $region40: #{ovt_forward.11} parent=35 // pred_fallthru
        _
    $region36: #{ovt_forward.11} parent=5 // pred_fallthru
      _
    %p1296 = scmp.le.s32.totalorder 2, %s10
    // Predicated region
    $region41: #{ovt_forward.11} parent=5 // pred_check
      %p1297 = pneg %p1296
    $region42: #{ovt_forward.11} parent=5 // pred_check_branch
      %1299 = sbr.rel (%p1297) target = $region44
    $region43: #{ovt_forward.11} parent=5 // pred_region
      %s1300 = ssub.s32 %s10, 2
      // Predicated region
      $region45: #{ovt_forward.11} parent=43 // pred_check
        %p1301 = pneg %p128
      $region46: #{ovt_forward.11} parent=43 // pred_check_branch
        %1303 = sbr.rel (%p1301) target = $region48
      $region47: #{ovt_forward.11} parent=43 // pred_region
        %s1304 = smul.u32 32, %s16
        %p1305 = scmp.lt.s32.totalorder %s1304, 63
        %s1306 = scalar_select %p1305, %s1304, 63
        %s1307 = smul.addr %s1306, 8
        %s1308 = scalar_lea.vmem %s4, %s1307
      $region48: #{ovt_forward.11} parent=43 // pred_fallthru
        _
    $region44: #{ovt_forward.11} parent=5 // pred_fallthru
      _
  $region6: #{ovt_forward.11} parent=0 // loop_footer
    %s14 = sadd.s32 1, %s10
  $region7: #{ovt_forward.11} parent=0 // loop_footer_branch
    %9 = sbr.rel target = $region3
  $region8: #{ovt_forward.11} parent=0 // loop_exit
    _

// kernel: ovt_forward.13
$region0: #{ovt_forward.13}
  #allocation0 [shape = 'u32[]', space=smem, size = 0x4, offset = 0x4, fixed_abs, tag = 'smem constant byte address 0x4 - core index']
  #allocation1 [shape = 'u32[144,128]{1,0:T(1,128)}', space=vmem, size = 0x12000, scoped, tag = 'internal scratch']
  %s0 = inlined_call_operand.vmem [shape: bf16[128,576], index: 0, kind: input, shape index: {}]
  %s1 = inlined_call_operand.vmem [shape: bf16[576,64], index: 1, kind: input, shape index: {}]
  %s2 = inlined_call_operand.vmem [shape: f32[1,64], index: 2, kind: input, shape index: {}]
  %s3 = inlined_call_operand.vmem [shape: f32[1,64], index: 3, kind: input, shape index: {}]
  %s4 = inlined_call_operand.vmem [shape: f32[128,64], index: 4, kind: output, shape index: {}]
  %s5 = sld [smem:[#allocation0]]
  $region26: #{ovt_forward.13} parent=0
    _
  %s7 = ssub.s32 1, %s5
  %s8 = scalar_select 0, %s7, %s5
  // Predicated region
  $region2: #{ovt_forward.13} parent=0 // pred_check
    _
  $region3: #{ovt_forward.13} parent=0 // pred_check_branch
    %10 = sbr.rel (0) target = $region5
  $region4: #{ovt_forward.13} parent=0 // pred_region
    _
  $region5: #{ovt_forward.13} parent=0 // pred_fallthru
    _
  // Predicated region
  $region6: #{ovt_forward.13} parent=0 // pred_check
    _
  $region7: #{ovt_forward.13} parent=0 // pred_check_branch
    %12 = sbr.rel (0) target = $region9
  $region8: #{ovt_forward.13} parent=0 // pred_region
    _
  $region9: #{ovt_forward.13} parent=0 // pred_fallthru
    _
  // Predicated region
  $region10: #{ovt_forward.13} parent=0 // pred_check
    _
  $region11: #{ovt_forward.13} parent=0 // pred_check_branch
    %14 = sbr.rel (0) target = $region13
  $region12: #{ovt_forward.13} parent=0 // pred_region
    _
  $region13: #{ovt_forward.13} parent=0 // pred_fallthru
    _
  // Predicated region
  $region14: #{ovt_forward.13} parent=0 // pred_check
    _
  $region15: #{ovt_forward.13} parent=0 // pred_check_branch
    %16 = sbr.rel (0) target = $region17
  $region16: #{ovt_forward.13} parent=0 // pred_region
    _
  $region17: #{ovt_forward.13} parent=0 // pred_fallthru
    _
  %v18 = vld [vmem:[%s0] sm:$0xff]
  %v19 = vld [vmem:[%s0 + $0x8] sm:$0xff]
  %v20 = vld [vmem:[%s0 + $0x10] sm:$0xf]
  %v21 = vld [vmem:[%s0 + $0x14] sm:$0xff]
  %v22 = vld [vmem:[%s0 + $0x1c] sm:$0xff]
  %v23 = vld [vmem:[%s0 + $0x24] sm:$0xf]
  %v24 = vld [vmem:[%s0 + $0x28] sm:$0xff]
  %v25 = vld [vmem:[%s0 + $0x30] sm:$0xff]
  %v26 = vld [vmem:[%s0 + $0x38] sm:$0xf]
  %v27 = vld [vmem:[%s0 + $0x3c] sm:$0xff]
  %v28 = vld [vmem:[%s0 + $0x44] sm:$0xff]
  %v29 = vld [vmem:[%s0 + $0x4c] sm:$0xf]
  %v30 = vld [vmem:[%s0 + $0x50] sm:$0xff]
  %v31 = vld [vmem:[%s0 + $0x58] sm:$0xff]
  %v32 = vld [vmem:[%s0 + $0x60] sm:$0xf]
  %v33 = vld [vmem:[%s0 + $0x64] sm:$0xff]
  %v34 = vld [vmem:[%s0 + $0x6c] sm:$0xff]
  %v35 = vld [vmem:[%s0 + $0x74] sm:$0xf]
  %v36 = vld [vmem:[%s0 + $0x78] sm:$0xff]
  %v37 = vld [vmem:[%s0 + $0x80] sm:$0xff]
  %v38 = vld [vmem:[%s0 + $0x88] sm:$0xf]
  %v39 = vld [vmem:[%s0 + $0x8c] sm:$0xff]
  %v40 = vld [vmem:[%s0 + $0x94] sm:$0xff]
  %v41 = vld [vmem:[%s0 + $0x9c] sm:$0xf]
  %v42 = vld [vmem:[%s0 + $0xa0] sm:$0xff]
  %v43 = vld [vmem:[%s0 + $0xa8] sm:$0xff]
  %v44 = vld [vmem:[%s0 + $0xb0] sm:$0xf]
  %v45 = vld [vmem:[%s0 + $0xb4] sm:$0xff]
  %v46 = vld [vmem:[%s0 + $0xbc] sm:$0xff]
  %v47 = vld [vmem:[%s0 + $0xc4] sm:$0xf]
  %v48 = vld [vmem:[%s0 + $0xc8] sm:$0xff]
  %v49 = vld [vmem:[%s0 + $0xd0] sm:$0xff]
  %v50 = vld [vmem:[%s0 + $0xd8] sm:$0xf]
  %v51 = vld [vmem:[%s0 + $0xdc] sm:$0xff]
  %v52 = vld [vmem:[%s0 + $0xe4] sm:$0xff]
  %v53 = vld [vmem:[%s0 + $0xec] sm:$0xf]
  %v54 = vld [vmem:[%s0 + $0xf0] sm:$0xff]
  %v55 = vld [vmem:[%s0 + $0xf8] sm:$0xff]
  %v56 = vld [vmem:[%s0 + $0x100] sm:$0xf]
  %v57 = vld [vmem:[%s0 + $0x104] sm:$0xff]
  %v58 = vld [vmem:[%s0 + $0x10c] sm:$0xff]
  %v59 = vld [vmem:[%s0 + $0x114] sm:$0xf]
  %v60 = vld [vmem:[%s0 + $0x118] sm:$0xff]
  %v61 = vld [vmem:[%s0 + $0x120] sm:$0xff]
  %v62 = vld [vmem:[%s0 + $0x128] sm:$0xf]
  %v63 = vld [vmem:[%s0 + $0x12c] sm:$0xff]
  %v64 = vld [vmem:[%s0 + $0x134] sm:$0xff]
  %v65 = vld [vmem:[%s0 + $0x13c] sm:$0xf]
  %v66 = vld [vmem:[%s1] sm:$0xf]
  %v67 = vld [vmem:[%s1 + $0x4] sm:$0xf]
  %v68 = vld [vmem:[%s1 + $0x8] sm:$0xf]
  %v69 = vld [vmem:[%s1 + $0xc] sm:$0xf]
  %v70 = vld [vmem:[%s1 + $0x10] sm:$0xf]
  %v71 = vld [vmem:[%s1 + $0x14] sm:$0xf]
  %v72 = vld [vmem:[%s1 + $0x18] sm:$0xf]
  %v73 = vld [vmem:[%s1 + $0x1c] sm:$0xf]
  %v74 = vld [vmem:[%s1 + $0x20] sm:$0xf]
  %v75 = vld [vmem:[%s1 + $0x24] sm:$0xf]
  %v76 = vld [vmem:[%s1 + $0x28] sm:$0xf]
  %v77 = vld [vmem:[%s1 + $0x2c] sm:$0xf]
  %v78 = vld [vmem:[%s1 + $0x30] sm:$0xf]
  %v79 = vld [vmem:[%s1 + $0x34] sm:$0xf]
  %v80 = vld [vmem:[%s1 + $0x38] sm:$0xf]
  %v81 = vld [vmem:[%s1 + $0x3c] sm:$0xf]
  %v82 = vld [vmem:[%s1 + $0x40] sm:$0xf]
  %v83 = vld [vmem:[%s1 + $0x44] sm:$0xf]
  %v84 = vld [vmem:[%s1 + $0x48] sm:$0xf]
  %v85 = vld [vmem:[%s1 + $0x4c] sm:$0xf]
  %v86 = vld [vmem:[%s1 + $0x50] sm:$0xf]
  %v87 = vld [vmem:[%s1 + $0x54] sm:$0xf]
  %v88 = vld [vmem:[%s1 + $0x58] sm:$0xf]
  %v89 = vld [vmem:[%s1 + $0x5c] sm:$0xf]
  %v90 = vld [vmem:[%s1 + $0x60] sm:$0xf]
  %v91 = vld [vmem:[%s1 + $0x64] sm:$0xf]
  %v92 = vld [vmem:[%s1 + $0x68] sm:$0xf]
  %v93 = vld [vmem:[%s1 + $0x6c] sm:$0xf]
  %v94 = vld [vmem:[%s1 + $0x70] sm:$0xf]
  %v95 = vld [vmem:[%s1 + $0x74] sm:$0xf]
  %v96 = vld [vmem:[%s1 + $0x78] sm:$0xf]
  %v97 = vld [vmem:[%s1 + $0x7c] sm:$0xf]
  %v98 = vld [vmem:[%s1 + $0x80] sm:$0xf]
  %v99 = vld [vmem:[%s1 + $0x84] sm:$0xf]
  %v100 = vld [vmem:[%s1 + $0x88] sm:$0xf]
  %v101 = vld [vmem:[%s1 + $0x8c] sm:$0xf]
  %v102 = vld [vmem:[%s1 + $0x90] sm:$0xf]
  %v103 = vld [vmem:[%s1 + $0x94] sm:$0xf]
  %v104 = vld [vmem:[%s1 + $0x98] sm:$0xf]
  %v105 = vld [vmem:[%s1 + $0x9c] sm:$0xf]
  %v106 = vld [vmem:[%s1 + $0xa0] sm:$0xf]
  %v107 = vld [vmem:[%s1 + $0xa4] sm:$0xf]
  %v108 = vld [vmem:[%s1 + $0xa8] sm:$0xf]
  %v109 = vld [vmem:[%s1 + $0xac] sm:$0xf]
  %v110 = vld [vmem:[%s1 + $0xb0] sm:$0xf]
  %v111 = vld [vmem:[%s1 + $0xb4] sm:$0xf]
  %v112 = vld [vmem:[%s1 + $0xb8] sm:$0xf]
  %v113 = vld [vmem:[%s1 + $0xbc] sm:$0xf]
  %v114 = vld [vmem:[%s1 + $0xc0] sm:$0xf]
  %v115 = vld [vmem:[%s1 + $0xc4] sm:$0xf]
  %v116 = vld [vmem:[%s1 + $0xc8] sm:$0xf]
  %v117 = vld [vmem:[%s1 + $0xcc] sm:$0xf]
  %v118 = vld [vmem:[%s1 + $0xd0] sm:$0xf]
  %v119 = vld [vmem:[%s1 + $0xd4] sm:$0xf]
  %v120 = vld [vmem:[%s1 + $0xd8] sm:$0xf]
  %v121 = vld [vmem:[%s1 + $0xdc] sm:$0xf]
  %v122 = vld [vmem:[%s1 + $0xe0] sm:$0xf]
  %v123 = vld [vmem:[%s1 + $0xe4] sm:$0xf]
  %v124 = vld [vmem:[%s1 + $0xe8] sm:$0xf]
  %v125 = vld [vmem:[%s1 + $0xec] sm:$0xf]
  %v126 = vld [vmem:[%s1 + $0xf0] sm:$0xf]
  %v127 = vld [vmem:[%s1 + $0xf4] sm:$0xf]
  %v128 = vld [vmem:[%s1 + $0xf8] sm:$0xf]
  %v129 = vld [vmem:[%s1 + $0xfc] sm:$0xf]
  %v130 = vld [vmem:[%s1 + $0x100] sm:$0xf]
  %v131 = vld [vmem:[%s1 + $0x104] sm:$0xf]
  %v132 = vld [vmem:[%s1 + $0x108] sm:$0xf]
  %v133 = vld [vmem:[%s1 + $0x10c] sm:$0xf]
  %v134 = vld [vmem:[%s1 + $0x110] sm:$0xf]
  %v135 = vld [vmem:[%s1 + $0x114] sm:$0xf]
  %v136 = vld [vmem:[%s1 + $0x118] sm:$0xf]
  %v137 = vld [vmem:[%s1 + $0x11c] sm:$0xf]
  %v186 = vunpack.c.l.b16 %v18
  %v187 = vunpack.c.h.b16 %v18
  %v188 = vunpack.c.l.b16 %v19
  %v189 = vunpack.c.h.b16 %v19
  %v190 = vunpack.c.l.b16 %v20
  %v191 = vunpack.c.l.b16 %v21
  %v192 = vunpack.c.h.b16 %v21
  %v193 = vunpack.c.l.b16 %v22
  %v194 = vunpack.c.h.b16 %v22
  %v195 = vunpack.c.l.b16 %v23
  %v196 = vunpack.c.l.b16 %v24
  %v197 = vunpack.c.h.b16 %v24
  %v198 = vunpack.c.l.b16 %v25
  %v199 = vunpack.c.h.b16 %v25
  %v200 = vunpack.c.l.b16 %v26
  %v201 = vunpack.c.l.b16 %v27
  %v202 = vunpack.c.h.b16 %v27
  %v203 = vunpack.c.l.b16 %v28
  %v204 = vunpack.c.h.b16 %v28
  %v205 = vunpack.c.l.b16 %v29
  %v206 = vunpack.c.l.b16 %v30
  %v207 = vunpack.c.h.b16 %v30
  %v208 = vunpack.c.l.b16 %v31
  %v209 = vunpack.c.h.b16 %v31
  %v210 = vunpack.c.l.b16 %v32
  %v211 = vunpack.c.l.b16 %v33
  %v212 = vunpack.c.h.b16 %v33
  %v213 = vunpack.c.l.b16 %v34
  %v214 = vunpack.c.h.b16 %v34
  %v215 = vunpack.c.l.b16 %v35
  %v216 = vunpack.c.l.b16 %v36
  %v217 = vunpack.c.h.b16 %v36
  %v218 = vunpack.c.l.b16 %v37
  %v219 = vunpack.c.h.b16 %v37
  %v220 = vunpack.c.l.b16 %v38
  %v221 = vunpack.c.l.b16 %v39
  %v222 = vunpack.c.h.b16 %v39
  %v223 = vunpack.c.l.b16 %v40
  %v224 = vunpack.c.h.b16 %v40
  %v225 = vunpack.c.l.b16 %v41
  %v226 = vunpack.c.l.b16 %v42
  %v227 = vunpack.c.h.b16 %v42
  %v228 = vunpack.c.l.b16 %v43
  %v229 = vunpack.c.h.b16 %v43
  %v230 = vunpack.c.l.b16 %v44
  %v231 = vunpack.c.l.b16 %v45
  %v232 = vunpack.c.h.b16 %v45
  %v233 = vunpack.c.l.b16 %v46
  %v234 = vunpack.c.h.b16 %v46
  %v235 = vunpack.c.l.b16 %v47
  %v236 = vunpack.c.l.b16 %v48
  %v237 = vunpack.c.h.b16 %v48
  %v238 = vunpack.c.l.b16 %v49
  %v239 = vunpack.c.h.b16 %v49
  %v240 = vunpack.c.l.b16 %v50
  %v241 = vunpack.c.l.b16 %v51
  %v242 = vunpack.c.h.b16 %v51
  %v243 = vunpack.c.l.b16 %v52
  %v244 = vunpack.c.h.b16 %v52
  %v245 = vunpack.c.l.b16 %v53
  %v246 = vunpack.c.l.b16 %v54
  %v247 = vunpack.c.h.b16 %v54
  %v248 = vunpack.c.l.b16 %v55
  %v249 = vunpack.c.h.b16 %v55
  %v250 = vunpack.c.l.b16 %v56
  %v251 = vunpack.c.l.b16 %v57
  %v252 = vunpack.c.h.b16 %v57
  %v253 = vunpack.c.l.b16 %v58
  %v254 = vunpack.c.h.b16 %v58
  %v255 = vunpack.c.l.b16 %v59
  %v256 = vunpack.c.l.b16 %v60
  %v257 = vunpack.c.h.b16 %v60
  %v258 = vunpack.c.l.b16 %v61
  %v259 = vunpack.c.h.b16 %v61
  %v260 = vunpack.c.l.b16 %v62
  %v261 = vunpack.c.l.b16 %v63
  %v262 = vunpack.c.h.b16 %v63
  %v263 = vunpack.c.l.b16 %v64
  %v264 = vunpack.c.h.b16 %v64
  %v265 = vunpack.c.l.b16 %v65
  %v266 = vpack.c.b16 %v191, %v186
  %v267 = vpack.c.b16 %v192, %v187
  %v268 = vpack.c.b16 %v193, %v188
  %v269 = vpack.c.b16 %v194, %v189
  %v270 = vpack.c.b16 %v195, %v190
  %v271 = vpack.c.b16 %v201, %v196
  %v272 = vpack.c.b16 %v202, %v197
  %v273 = vpack.c.b16 %v203, %v198
  %v274 = vpack.c.b16 %v204, %v199
  %v275 = vpack.c.b16 %v205, %v200
  %v276 = vpack.c.b16 %v211, %v206
  %v277 = vpack.c.b16 %v212, %v207
  %v278 = vpack.c.b16 %v213, %v208
  %v279 = vpack.c.b16 %v214, %v209
  %v280 = vpack.c.b16 %v215, %v210
  %v281 = vpack.c.b16 %v221, %v216
  %v282 = vpack.c.b16 %v222, %v217
  %v283 = vpack.c.b16 %v223, %v218
  %v284 = vpack.c.b16 %v224, %v219
  %v285 = vpack.c.b16 %v225, %v220
  %v286 = vpack.c.b16 %v231, %v226
  %v287 = vpack.c.b16 %v232, %v227
  %v288 = vpack.c.b16 %v233, %v228
  %v289 = vpack.c.b16 %v234, %v229
  %v290 = vpack.c.b16 %v235, %v230
  %v291 = vpack.c.b16 %v241, %v236
  %v292 = vpack.c.b16 %v242, %v237
  %v293 = vpack.c.b16 %v243, %v238
  %v294 = vpack.c.b16 %v244, %v239
  %v295 = vpack.c.b16 %v245, %v240
  %v296 = vpack.c.b16 %v251, %v246
  %v297 = vpack.c.b16 %v252, %v247
  %v298 = vpack.c.b16 %v253, %v248
  %v299 = vpack.c.b16 %v254, %v249
  %v300 = vpack.c.b16 %v255, %v250
  %v301 = vpack.c.b16 %v261, %v256
  %v302 = vpack.c.b16 %v262, %v257
  %v303 = vpack.c.b16 %v263, %v258
  %v304 = vpack.c.b16 %v264, %v259
  %v305 = vpack.c.b16 %v265, %v260
  %v410 = vunpack.c.l.b16 %v66
  %v411 = vunpack.c.l.b16 %v67
  %v412 = vunpack.c.l.b16 %v68
  %v413 = vunpack.c.l.b16 %v69
  %v414 = vunpack.c.l.b16 %v70
  %v415 = vunpack.c.l.b16 %v71
  %v416 = vunpack.c.l.b16 %v72
  %v417 = vunpack.c.l.b16 %v73
  %v418 = vunpack.c.l.b16 %v74
  %v419 = vunpack.c.l.b16 %v75
  %v420 = vunpack.c.l.b16 %v76
  %v421 = vunpack.c.l.b16 %v77
  %v422 = vunpack.c.l.b16 %v78
  %v423 = vunpack.c.l.b16 %v79
  %v424 = vunpack.c.l.b16 %v80
  %v425 = vunpack.c.l.b16 %v81
  %v426 = vunpack.c.l.b16 %v82
  %v427 = vunpack.c.l.b16 %v83
  %v428 = vunpack.c.l.b16 %v84
  %v429 = vunpack.c.l.b16 %v85
  %v430 = vunpack.c.l.b16 %v86
  %v431 = vunpack.c.l.b16 %v87
  %v432 = vunpack.c.l.b16 %v88
  %v433 = vunpack.c.l.b16 %v89
  %v434 = vunpack.c.l.b16 %v90
  %v435 = vunpack.c.l.b16 %v91
  %v436 = vunpack.c.l.b16 %v92
  %v437 = vunpack.c.l.b16 %v93
  %v438 = vunpack.c.l.b16 %v94
  %v439 = vunpack.c.l.b16 %v95
  %v440 = vunpack.c.l.b16 %v96
  %v441 = vunpack.c.l.b16 %v97
  %v442 = vunpack.c.l.b16 %v98
  %v443 = vunpack.c.l.b16 %v99
  %v444 = vunpack.c.l.b16 %v100
  %v445 = vunpack.c.l.b16 %v101
  %v446 = vunpack.c.l.b16 %v102
  %v447 = vunpack.c.l.b16 %v103
  %v448 = vunpack.c.l.b16 %v104
  %v449 = vunpack.c.l.b16 %v105
  %v450 = vunpack.c.l.b16 %v106
  %v451 = vunpack.c.l.b16 %v107
  %v452 = vunpack.c.l.b16 %v108
  %v453 = vunpack.c.l.b16 %v109
  %v454 = vunpack.c.l.b16 %v110
  %v455 = vunpack.c.l.b16 %v111
  %v456 = vunpack.c.l.b16 %v112
  %v457 = vunpack.c.l.b16 %v113
  %v458 = vunpack.c.l.b16 %v114
  %v459 = vunpack.c.l.b16 %v115
  %v460 = vunpack.c.l.b16 %v116
  %v461 = vunpack.c.l.b16 %v117
  %v462 = vunpack.c.l.b16 %v118
  %v463 = vunpack.c.l.b16 %v119
  %v464 = vunpack.c.l.b16 %v120
  %v465 = vunpack.c.l.b16 %v121
  %v466 = vunpack.c.l.b16 %v122
  %v467 = vunpack.c.l.b16 %v123
  %v468 = vunpack.c.l.b16 %v124
  %v469 = vunpack.c.l.b16 %v125
  %v470 = vunpack.c.l.b16 %v126
  %v471 = vunpack.c.l.b16 %v127
  %v472 = vunpack.c.l.b16 %v128
  %v473 = vunpack.c.l.b16 %v129
  %v474 = vunpack.c.l.b16 %v130
  %v475 = vunpack.c.l.b16 %v131
  %v476 = vunpack.c.l.b16 %v132
  %v477 = vunpack.c.l.b16 %v133
  %v478 = vunpack.c.l.b16 %v134
  %v479 = vunpack.c.l.b16 %v135
  %v480 = vunpack.c.l.b16 %v136
  %v481 = vunpack.c.l.b16 %v137
  %v482 = vpack.c.b16 %v411, %v410
  %v483 = vpack.c.b16 %v413, %v412
  %v484 = vpack.c.b16 %v415, %v414
  %v485 = vpack.c.b16 %v417, %v416
  %v486 = vpack.c.b16 %v419, %v418
  %v487 = vpack.c.b16 %v421, %v420
  %v488 = vpack.c.b16 %v423, %v422
  %v489 = vpack.c.b16 %v425, %v424
  %v490 = vpack.c.b16 %v427, %v426
  %v491 = vpack.c.b16 %v429, %v428
  %v492 = vpack.c.b16 %v431, %v430
  %v493 = vpack.c.b16 %v433, %v432
  %v494 = vpack.c.b16 %v435, %v434
  %v495 = vpack.c.b16 %v437, %v436
  %v496 = vpack.c.b16 %v439, %v438
  %v497 = vpack.c.b16 %v441, %v440
  %v498 = vpack.c.b16 %v443, %v442
  %v499 = vpack.c.b16 %v445, %v444
  %v500 = vpack.c.b16 %v447, %v446
  %v501 = vpack.c.b16 %v449, %v448
  %v502 = vpack.c.b16 %v451, %v450
  %v503 = vpack.c.b16 %v453, %v452
  %v504 = vpack.c.b16 %v455, %v454
  %v505 = vpack.c.b16 %v457, %v456
  %v506 = vpack.c.b16 %v459, %v458
  %v507 = vpack.c.b16 %v461, %v460
  %v508 = vpack.c.b16 %v463, %v462
  %v509 = vpack.c.b16 %v465, %v464
  %v510 = vpack.c.b16 %v467, %v466
  %v511 = vpack.c.b16 %v469, %v468
  %v512 = vpack.c.b16 %v471, %v470
  %v513 = vpack.c.b16 %v473, %v472
  %v514 = vpack.c.b16 %v475, %v474
  %v515 = vpack.c.b16 %v477, %v476
  %v516 = vpack.c.b16 %v479, %v478
  %v517 = vpack.c.b16 %v481, %v480
  %vm554 = vcmask 523264
  %v556 = vsel %vm554, %v270, 0
  %v559 = vsel %vm554, %v275, 0
  %v562 = vsel %vm554, %v280, 0
  %v565 = vsel %vm554, %v285, 0
  %v568 = vsel %vm554, %v290, 0
  %v571 = vsel %vm554, %v295, 0
  %v574 = vsel %vm554, %v300, 0
  %v577 = vsel %vm554, %v305, 0
  %579 = vmatprep.subr.bf16.mxu0 0
  %580 = vmatpush1.bf16.msra.mxu0 %v482
  %581 = vmatprep.subr.bf16.mxu0 0
  %582 = vmatpush1.bf16.msra.mxu0 %v483
  %583 = vmatprep.subr.bf16.mxu0 0
  %584 = vmatpush1.bf16.msra.mxu0 %v484
  %585 = vmatprep.subr.bf16.mxu0 0
  %586 = vmatpush1.bf16.msra.mxu0 %v485
  %587 = vmatprep.subr.bf16.mxu0 0
  %588 = vmatpush1.bf16.msra.mxu0 %v486
  %589 = vmatprep.subr.bf16.mxu0 0
  %590 = vmatpush1.bf16.msra.mxu0 %v487
  %591 = vmatprep.subr.bf16.mxu0 0
  %592 = vmatpush1.bf16.msra.mxu0 %v488
  %593 = vmatprep.subr.bf16.mxu0 0
  %594 = vmatpush1.bf16.msra.mxu0 %v489
  %595 = vmatprep.subr.bf16.mxu0 0
  %596 = vmatpush1.bf16.msra.mxu0 %v490
  %597 = vmatprep.subr.bf16.mxu0 0
  %598 = vmatpush1.bf16.msra.mxu0 %v491
  %599 = vmatprep.subr.bf16.mxu0 0
  %600 = vmatpush1.bf16.msra.mxu0 %v492
  %601 = vmatprep.subr.bf16.mxu0 0
  %602 = vmatpush1.bf16.msra.mxu0 %v493
  %603 = vmatprep.subr.bf16.mxu0 0
  %604 = vmatpush1.bf16.msra.mxu0 %v494
  %605 = vmatprep.subr.bf16.mxu0 0
  %606 = vmatpush1.bf16.msra.mxu0 %v495
  %607 = vmatprep.subr.bf16.mxu0 0
  %608 = vmatpush1.bf16.msra.mxu0 %v496
  %609 = vmatprep.subr.bf16.mxu0 0
  %610 = vmatpush1.bf16.msra.mxu0 %v497
  %611 = vmatprep.mubr.bf16.mxu0 %v267
  %612 = vmatmul.mubr.bf16.gmra.mrb[0].mxu0 %v266
  %v613 = vpop.f32.mrb[0].mxu0
  %v614 = vadd.f32 0.0, %v613
  %v615 = vpop.f32.mrb[0].mxu0
  %v616 = vpop.f32.mrb[0].mxu0
  %v617 = vadd.f32 0.0, %v616
  %v618 = vpop.f32.mrb[0].mxu0
  %619 = vmatprep.mubr.bf16.mxu0 %v272
  %620 = vmatmul.mubr.bf16.gmra.mrb[0].mxu0 %v271
  %v621 = vpop.f32.mrb[0].mxu0
  %v622 = vadd.f32 0.0, %v621
  %v623 = vpop.f32.mrb[0].mxu0
  %v624 = vpop.f32.mrb[0].mxu0
  %v625 = vadd.f32 0.0, %v624
  %v626 = vpop.f32.mrb[0].mxu0
  %627 = vmatprep.mubr.bf16.mxu0 %v277
  %628 = vmatmul.mubr.bf16.gmra.mrb[0].mxu0 %v276
  %v629 = vpop.f32.mrb[0].mxu0
  %v630 = vadd.f32 0.0, %v629
  %v631 = vpop.f32.mrb[0].mxu0
  %v632 = vpop.f32.mrb[0].mxu0
  %v633 = vadd.f32 0.0, %v632
  %v634 = vpop.f32.mrb[0].mxu0
  %635 = vmatprep.mubr.bf16.mxu0 %v282
  %636 = vmatmul.mubr.bf16.gmra.mrb[0].mxu0 %v281
  %v637 = vpop.f32.mrb[0].mxu0
  %v638 = vadd.f32 0.0, %v637
  %v639 = vpop.f32.mrb[0].mxu0
  %v640 = vpop.f32.mrb[0].mxu0
  %v641 = vadd.f32 0.0, %v640
  %v642 = vpop.f32.mrb[0].mxu0
  %643 = vmatprep.mubr.bf16.mxu0 %v287
  %644 = vmatmul.mubr.bf16.gmra.mrb[0].mxu0 %v286
  %v645 = vpop.f32.mrb[0].mxu0
  %v646 = vadd.f32 0.0, %v645
  %v647 = vpop.f32.mrb[0].mxu0
  %v648 = vpop.f32.mrb[0].mxu0
  %v649 = vadd.f32 0.0, %v648
  %v650 = vpop.f32.mrb[0].mxu0
  %651 = vmatprep.mubr.bf16.mxu0 %v292
  %652 = vmatmul.mubr.bf16.gmra.mrb[0].mxu0 %v291
  %v653 = vpop.f32.mrb[0].mxu0
  %v654 = vadd.f32 0.0, %v653
  %v655 = vpop.f32.mrb[0].mxu0
  %v656 = vpop.f32.mrb[0].mxu0
  %v657 = vadd.f32 0.0, %v656
  %v658 = vpop.f32.mrb[0].mxu0
  %659 = vmatprep.mubr.bf16.mxu0 %v297
  %660 = vmatmul.mubr.bf16.gmra.mrb[0].mxu0 %v296
  %v661 = vpop.f32.mrb[0].mxu0
  %v662 = vadd.f32 0.0, %v661
  %v663 = vpop.f32.mrb[0].mxu0
  %v664 = vpop.f32.mrb[0].mxu0
  %v665 = vadd.f32 0.0, %v664
  %v666 = vpop.f32.mrb[0].mxu0
  %667 = vmatprep.mubr.bf16.mxu0 %v302
  %668 = vmatmul.mubr.bf16.gmra.mrb[0].mxu0 %v301
  %v669 = vpop.f32.mrb[0].mxu0
  %v670 = vadd.f32 0.0, %v669
  %v671 = vpop.f32.mrb[0].mxu0
  %v672 = vpop.f32.mrb[0].mxu0
  %v673 = vadd.f32 0.0, %v672
  %v674 = vpop.f32.mrb[0].mxu0
  %675 = vdwg.mxu0
  %676 = vmatprep.subr.bf16.mxu0 0
  %677 = vmatpush1.bf16.msra.mxu0 %v498
  %678 = vmatprep.subr.bf16.mxu0 0
  %679 = vmatpush1.bf16.msra.mxu0 %v499
  %680 = vmatprep.subr.bf16.mxu0 0
  %681 = vmatpush1.bf16.msra.mxu0 %v500
  %682 = vmatprep.subr.bf16.mxu0 0
  %683 = vmatpush1.bf16.msra.mxu0 %v501
  %684 = vmatprep.subr.bf16.mxu0 0
  %685 = vmatpush1.bf16.msra.mxu0 %v502
  %686 = vmatprep.subr.bf16.mxu0 0
  %687 = vmatpush1.bf16.msra.mxu0 %v503
  %688 = vmatprep.subr.bf16.mxu0 0
  %689 = vmatpush1.bf16.msra.mxu0 %v504
  %690 = vmatprep.subr.bf16.mxu0 0
  %691 = vmatpush1.bf16.msra.mxu0 %v505
  %692 = vmatprep.subr.bf16.mxu0 0
  %693 = vmatpush1.bf16.msra.mxu0 %v506
  %694 = vmatprep.subr.bf16.mxu0 0
  %695 = vmatpush1.bf16.msra.mxu0 %v507
  %696 = vmatprep.subr.bf16.mxu0 0
  %697 = vmatpush1.bf16.msra.mxu0 %v508
  %698 = vmatprep.subr.bf16.mxu0 0
  %699 = vmatpush1.bf16.msra.mxu0 %v509
  %700 = vmatprep.subr.bf16.mxu0 0
  %701 = vmatpush1.bf16.msra.mxu0 %v510
  %702 = vmatprep.subr.bf16.mxu0 0
  %703 = vmatpush1.bf16.msra.mxu0 %v511
  %704 = vmatprep.subr.bf16.mxu0 0
  %705 = vmatpush1.bf16.msra.mxu0 %v512
  %706 = vmatprep.subr.bf16.mxu0 0
  %707 = vmatpush1.bf16.msra.mxu0 %v513
  %708 = vmatprep.mubr.bf16.mxu0 %v269
  %709 = vmatmul.mubr.bf16.gmra.mrb[0].mxu0 %v268
  %v710 = vpop.f32.mrb[0].mxu0
  %v711 = vadd.f32 %v614, %v710
  %v712 = vpop.f32.mrb[0].mxu0
  %v713 = vpop.f32.mrb[0].mxu0
  %v714 = vadd.f32 %v617, %v713
  %v715 = vpop.f32.mrb[0].mxu0
  %716 = vmatprep.mubr.bf16.mxu0 %v274
  %717 = vmatmul.mubr.bf16.gmra.mrb[0].mxu0 %v273
  %v718 = vpop.f32.mrb[0].mxu0
  %v719 = vadd.f32 %v622, %v718
  %v720 = vpop.f32.mrb[0].mxu0
  %v721 = vpop.f32.mrb[0].mxu0
  %v722 = vadd.f32 %v625, %v721
  %v723 = vpop.f32.mrb[0].mxu0
  %724 = vmatprep.mubr.bf16.mxu0 %v279
  %725 = vmatmul.mubr.bf16.gmra.mrb[0].mxu0 %v278
  %v726 = vpop.f32.mrb[0].mxu0
  %v727 = vadd.f32 %v630, %v726
  %v728 = vpop.f32.mrb[0].mxu0
  %v729 = vpop.f32.mrb[0].mxu0
  %v730 = vadd.f32 %v633, %v729
  %v731 = vpop.f32.mrb[0].mxu0
  %732 = vmatprep.mubr.bf16.mxu0 %v284
  %733 = vmatmul.mubr.bf16.gmra.mrb[0].mxu0 %v283
  %v734 = vpop.f32.mrb[0].mxu0
  %v735 = vadd.f32 %v638, %v734
  %v736 = vpop.f32.mrb[0].mxu0
  %v737 = vpop.f32.mrb[0].mxu0
  %v738 = vadd.f32 %v641, %v737
  %v739 = vpop.f32.mrb[0].mxu0
  %740 = vmatprep.mubr.bf16.mxu0 %v289
  %741 = vmatmul.mubr.bf16.gmra.mrb[0].mxu0 %v288
  %v742 = vpop.f32.mrb[0].mxu0
  %v743 = vadd.f32 %v646, %v742
  %v744 = vpop.f32.mrb[0].mxu0
  %v745 = vpop.f32.mrb[0].mxu0
  %v746 = vadd.f32 %v649, %v745
  %v747 = vpop.f32.mrb[0].mxu0
  %748 = vmatprep.mubr.bf16.mxu0 %v294
  %749 = vmatmul.mubr.bf16.gmra.mrb[0].mxu0 %v293
  %v750 = vpop.f32.mrb[0].mxu0
  %v751 = vadd.f32 %v654, %v750
  %v752 = vpop.f32.mrb[0].mxu0
  %v753 = vpop.f32.mrb[0].mxu0
  %v754 = vadd.f32 %v657, %v753
  %v755 = vpop.f32.mrb[0].mxu0
  %756 = vmatprep.mubr.bf16.mxu0 %v299
  %757 = vmatmul.mubr.bf16.gmra.mrb[0].mxu0 %v298
  %v758 = vpop.f32.mrb[0].mxu0
  %v759 = vadd.f32 %v662, %v758
  %v760 = vpop.f32.mrb[0].mxu0
  %v761 = vpop.f32.mrb[0].mxu0
  %v762 = vadd.f32 %v665, %v761
  %v763 = vpop.f32.mrb[0].mxu0
  %764 = vmatprep.mubr.bf16.mxu0 %v304
  %765 = vmatmul.mubr.bf16.gmra.mrb[0].mxu0 %v303
  %v766 = vpop.f32.mrb[0].mxu0
  %v767 = vadd.f32 %v670, %v766
  %v768 = vpop.f32.mrb[0].mxu0
  %v769 = vpop.f32.mrb[0].mxu0
  %v770 = vadd.f32 %v673, %v769
  %v771 = vpop.f32.mrb[0].mxu0
  %772 = vdwg.mxu0
  %773 = vmatprep.subr.bf16.mxu0 0
  %774 = vmatpush1.bf16.msra.mxu0 %v514
  %775 = vmatprep.subr.bf16.mxu0 0
  %776 = vmatpush1.bf16.msra.mxu0 %v515
  %777 = vmatprep.subr.bf16.mxu0 0
  %778 = vmatpush1.bf16.msra.mxu0 %v516
  %779 = vmatprep.subr.bf16.mxu0 0
  %780 = vmatpush1.bf16.msra.mxu0 %v517
  %781 = vmatprep.subr.bf16.mxu0 0
  %782 = vmatpush1.bf16.msra.mxu0 0
  %783 = vmatprep.subr.bf16.mxu0 0
  %784 = vmatpush1.bf16.msra.mxu0 0
  %785 = vmatprep.subr.bf16.mxu0 0
  %786 = vmatpush1.bf16.msra.mxu0 0
  %787 = vmatprep.subr.bf16.mxu0 0
  %788 = vmatpush1.bf16.msra.mxu0 0
  %789 = vmatprep.subr.bf16.mxu0 0
  %790 = vmatpush1.bf16.msra.mxu0 0
  %791 = vmatprep.subr.bf16.mxu0 0
  %792 = vmatpush1.bf16.msra.mxu0 0
  %793 = vmatprep.subr.bf16.mxu0 0
  %794 = vmatpush1.bf16.msra.mxu0 0
  %795 = vmatprep.subr.bf16.mxu0 0
  %796 = vmatpush1.bf16.msra.mxu0 0
  %797 = vmatprep.subr.bf16.mxu0 0
  %798 = vmatpush1.bf16.msra.mxu0 0
  %799 = vmatprep.subr.bf16.mxu0 0
  %800 = vmatpush1.bf16.msra.mxu0 0
  %801 = vmatprep.subr.bf16.mxu0 0
  %802 = vmatpush1.bf16.msra.mxu0 0
  %803 = vmatprep.subr.bf16.mxu0 0
  %804 = vmatpush1.bf16.msra.mxu0 0
  %805 = vmatprep.mubr.bf16.mxu0 0
  %806 = vmatmul.mubr.bf16.gmra.mrb[0].mxu0 %v556
  %v807 = vpop.f32.mrb[0].mxu0
  %v808 = vadd.f32 %v711, %v807
  %v809 = vpop.f32.mrb[0].mxu0
  %v810 = vpop.f32.mrb[0].mxu0
  %v811 = vadd.f32 %v714, %v810
  %v812 = vpop.f32.mrb[0].mxu0
  %813 = vmatprep.mubr.bf16.mxu0 0
  %814 = vmatmul.mubr.bf16.gmra.mrb[0].mxu0 %v559
  %v815 = vpop.f32.mrb[0].mxu0
  %v816 = vadd.f32 %v719, %v815
  %v817 = vpop.f32.mrb[0].mxu0
  %v818 = vpop.f32.mrb[0].mxu0
  %v819 = vadd.f32 %v722, %v818
  %v820 = vpop.f32.mrb[0].mxu0
  %821 = vmatprep.mubr.bf16.mxu0 0
  %822 = vmatmul.mubr.bf16.gmra.mrb[0].mxu0 %v562
  %v823 = vpop.f32.mrb[0].mxu0
  %v824 = vadd.f32 %v727, %v823
  %v825 = vpop.f32.mrb[0].mxu0
  %v826 = vpop.f32.mrb[0].mxu0
  %v827 = vadd.f32 %v730, %v826
  %v828 = vpop.f32.mrb[0].mxu0
  %829 = vmatprep.mubr.bf16.mxu0 0
  %830 = vmatmul.mubr.bf16.gmra.mrb[0].mxu0 %v565
  %v831 = vpop.f32.mrb[0].mxu0
  %v832 = vadd.f32 %v735, %v831
  %v833 = vpop.f32.mrb[0].mxu0
  %v834 = vpop.f32.mrb[0].mxu0
  %v835 = vadd.f32 %v738, %v834
  %v836 = vpop.f32.mrb[0].mxu0
  %837 = vmatprep.mubr.bf16.mxu0 0
  %838 = vmatmul.mubr.bf16.gmra.mrb[0].mxu0 %v568
  %v839 = vpop.f32.mrb[0].mxu0
  %v840 = vadd.f32 %v743, %v839
  %v841 = vpop.f32.mrb[0].mxu0
  %v842 = vpop.f32.mrb[0].mxu0
  %v843 = vadd.f32 %v746, %v842
  %v844 = vpop.f32.mrb[0].mxu0
  %845 = vmatprep.mubr.bf16.mxu0 0
  %846 = vmatmul.mubr.bf16.gmra.mrb[0].mxu0 %v571
  %v847 = vpop.f32.mrb[0].mxu0
  %v848 = vadd.f32 %v751, %v847
  %v849 = vpop.f32.mrb[0].mxu0
  %v850 = vpop.f32.mrb[0].mxu0
  %v851 = vadd.f32 %v754, %v850
  %v852 = vpop.f32.mrb[0].mxu0
  %853 = vmatprep.mubr.bf16.mxu0 0
  %854 = vmatmul.mubr.bf16.gmra.mrb[0].mxu0 %v574
  %v855 = vpop.f32.mrb[0].mxu0
  %v856 = vadd.f32 %v759, %v855
  %v857 = vpop.f32.mrb[0].mxu0
  %v858 = vpop.f32.mrb[0].mxu0
  %v859 = vadd.f32 %v762, %v858
  %v860 = vpop.f32.mrb[0].mxu0
  %861 = vmatprep.mubr.bf16.mxu0 0
  %862 = vmatmul.mubr.bf16.gmra.mrb[0].mxu0 %v577
  %v863 = vpop.f32.mrb[0].mxu0
  %v864 = vadd.f32 %v767, %v863
  %v865 = vpop.f32.mrb[0].mxu0
  %v866 = vpop.f32.mrb[0].mxu0
  %v867 = vadd.f32 %v770, %v866
  %v868 = vpop.f32.mrb[0].mxu0
  %869 = vdwg.mxu0
  %v870 = vld [vmem:[%s2] sm:$0x1]
  %v872 = vlaneseq
  %v873 = vshrl.u32 %v872, 7
  %v874 = vsub.s32 0, %v873
  %v875 = vrot.slane %v870, %v874
  %v877 = vmul.f32 %v808, %v875
  %v878 = vmul.f32 %v811, %v875
  %v879 = vmul.f32 %v816, %v875
  %v880 = vmul.f32 %v819, %v875
  %v881 = vmul.f32 %v824, %v875
  %v882 = vmul.f32 %v827, %v875
  %v883 = vmul.f32 %v832, %v875
  %v884 = vmul.f32 %v835, %v875
  %v885 = vmul.f32 %v840, %v875
  %v886 = vmul.f32 %v843, %v875
  %v887 = vmul.f32 %v848, %v875
  %v888 = vmul.f32 %v851, %v875
  %v889 = vmul.f32 %v856, %v875
  %v890 = vmul.f32 %v859, %v875
  %v891 = vmul.f32 %v864, %v875
  %v892 = vmul.f32 %v867, %v875
  %v893 = vld [vmem:[%s3] sm:$0x1]
  %v895 = vlaneseq
  %v896 = vshrl.u32 %v895, 7
  %v897 = vsub.s32 0, %v896
  %v898 = vrot.slane %v893, %v897
  %v900 = vadd.f32 %v877, %v898
  %v901 = vadd.f32 %v878, %v898
  %v902 = vadd.f32 %v879, %v898
  %v903 = vadd.f32 %v880, %v898
  %v904 = vadd.f32 %v881, %v898
  %v905 = vadd.f32 %v882, %v898
  %v906 = vadd.f32 %v883, %v898
  %v907 = vadd.f32 %v884, %v898
  %v908 = vadd.f32 %v885, %v898
  %v909 = vadd.f32 %v886, %v898
  %v910 = vadd.f32 %v887, %v898
  %v911 = vadd.f32 %v888, %v898
  %v912 = vadd.f32 %v889, %v898
  %v913 = vadd.f32 %v890, %v898
  %v914 = vadd.f32 %v891, %v898
  %v915 = vadd.f32 %v892, %v898
  %v916 = vmax.f32 %v900, 0.0
  %v917 = vmax.f32 %v901, 0.0
  %v918 = vmax.f32 %v902, 0.0
  %v919 = vmax.f32 %v903, 0.0
  %v920 = vmax.f32 %v904, 0.0
  %v921 = vmax.f32 %v905, 0.0
  %v922 = vmax.f32 %v906, 0.0
  %v923 = vmax.f32 %v907, 0.0
  %v924 = vmax.f32 %v908, 0.0
  %v925 = vmax.f32 %v909, 0.0
  %v926 = vmax.f32 %v910, 0.0
  %v927 = vmax.f32 %v911, 0.0
  %v928 = vmax.f32 %v912, 0.0
  %v929 = vmax.f32 %v913, 0.0
  %v930 = vmax.f32 %v914, 0.0
  %v931 = vmax.f32 %v915, 0.0
  %932 = vst.msk [vmem:[%s4] sm:$0xff] %vm554, %v916
  %933 = vst.msk [vmem:[%s4 + $0x8] sm:$0xff] %vm554, %v917
  %934 = vst.msk [vmem:[%s4 + $0x10] sm:$0xff] %vm554, %v918
  %935 = vst.msk [vmem:[%s4 + $0x18] sm:$0xff] %vm554, %v919
  %936 = vst.msk [vmem:[%s4 + $0x20] sm:$0xff] %vm554, %v920
  %937 = vst.msk [vmem:[%s4 + $0x28] sm:$0xff] %vm554, %v921
  %938 = vst.msk [vmem:[%s4 + $0x30] sm:$0xff] %vm554, %v922
  %939 = vst.msk [vmem:[%s4 + $0x38] sm:$0xff] %vm554, %v923
  %940 = vst.msk [vmem:[%s4 + $0x40] sm:$0xff] %vm554, %v924
  %941 = vst.msk [vmem:[%s4 + $0x48] sm:$0xff] %vm554, %v925
  %942 = vst.msk [vmem:[%s4 + $0x50] sm:$0xff] %vm554, %v926
  %943 = vst.msk [vmem:[%s4 + $0x58] sm:$0xff] %vm554, %v927
  %944 = vst.msk [vmem:[%s4 + $0x60] sm:$0xff] %vm554, %v928
  %945 = vst.msk [vmem:[%s4 + $0x68] sm:$0xff] %vm554, %v929
  %946 = vst.msk [vmem:[%s4 + $0x70] sm:$0xff] %vm554, %v930
  %947 = vst.msk [vmem:[%s4 + $0x78] sm:$0xff] %vm554, %v931
  // Predicated region
  $region18: #{ovt_forward.13} parent=0 // pred_check
    _
  $region19: #{ovt_forward.13} parent=0 // pred_check_branch
    %949 = sbr.rel (0) target = $region21
  $region20: #{ovt_forward.13} parent=0 // pred_region
    _
  $region21: #{ovt_forward.13} parent=0 // pred_fallthru
    _
  // Predicated region
  $region22: #{ovt_forward.13} parent=0 // pred_check
    _
  $region23: #{ovt_forward.13} parent=0 // pred_check_branch
    %951 = sbr.rel (0) target = $region25
  $region24: #{ovt_forward.13} parent=0 // pred_region
    _
  $region25: #{ovt_forward.13} parent=0 // pred_fallthru
    _

// kernel: ovt_forward.14
$region0: #{ovt_forward.14}
  #allocation0 [shape = 'u32[]', space=smem, size = 0x4, offset = 0x4, fixed_abs, tag = 'smem constant byte address 0x4 - core index']
  #allocation1 [shape = 'u32[144,128]{1,0:T(1,128)}', space=vmem, size = 0x12000, scoped, tag = 'internal scratch']
  %s0 = inlined_call_operand.vmem [shape: bf16[128,64], index: 0, kind: input, shape index: {}]
  %s1 = inlined_call_operand.vmem [shape: bf16[64,256], index: 1, kind: input, shape index: {}]
  %s2 = inlined_call_operand.vmem [shape: f32[1,256], index: 2, kind: input, shape index: {}]
  %s3 = inlined_call_operand.vmem [shape: f32[1,256], index: 3, kind: input, shape index: {}]
  %s4 = inlined_call_operand.vmem [shape: bf16[128,64], index: 4, kind: input, shape index: {}]
  %s5 = inlined_call_operand.vmem [shape: bf16[64,256], index: 5, kind: input, shape index: {}]
  %s6 = inlined_call_operand.vmem [shape: f32[1,256], index: 6, kind: input, shape index: {}]
  %s7 = inlined_call_operand.vmem [shape: f32[1,256], index: 7, kind: input, shape index: {}]
  %s8 = inlined_call_operand.vmem [shape: f32[128,256], index: 8, kind: output, shape index: {}]
  %s9 = sld [smem:[#allocation0]]
  $region42: #{ovt_forward.14} parent=0
    _
  %s11 = ssub.s32 1, %s9
  %s12 = scalar_select 0, %s11, %s9
  // Predicated region
  $region2: #{ovt_forward.14} parent=0 // pred_check
    _
  $region3: #{ovt_forward.14} parent=0 // pred_check_branch
    %14 = sbr.rel (0) target = $region5
  $region4: #{ovt_forward.14} parent=0 // pred_region
    _
  $region5: #{ovt_forward.14} parent=0 // pred_fallthru
    _
  // Predicated region
  $region6: #{ovt_forward.14} parent=0 // pred_check
    _
  $region7: #{ovt_forward.14} parent=0 // pred_check_branch
    %16 = sbr.rel (0) target = $region9
  $region8: #{ovt_forward.14} parent=0 // pred_region
    _
  $region9: #{ovt_forward.14} parent=0 // pred_fallthru
    _
  // Predicated region
  $region10: #{ovt_forward.14} parent=0 // pred_check
    _
  $region11: #{ovt_forward.14} parent=0 // pred_check_branch
    %18 = sbr.rel (0) target = $region13
  $region12: #{ovt_forward.14} parent=0 // pred_region
    _
  $region13: #{ovt_forward.14} parent=0 // pred_fallthru
    _
  // Predicated region
  $region14: #{ovt_forward.14} parent=0 // pred_check
    _
  $region15: #{ovt_forward.14} parent=0 // pred_check_branch
    %20 = sbr.rel (0) target = $region17
  $region16: #{ovt_forward.14} parent=0 // pred_region
    _
  $region17: #{ovt_forward.14} parent=0 // pred_fallthru
    _
  // Predicated region
  $region18: #{ovt_forward.14} parent=0 // pred_check
    _
  $region19: #{ovt_forward.14} parent=0 // pred_check_branch
    %22 = sbr.rel (0) target = $region21
  $region20: #{ovt_forward.14} parent=0 // pred_region
    _
  $region21: #{ovt_forward.14} parent=0 // pred_fallthru
    _
  // Predicated region
  $region22: #{ovt_forward.14} parent=0 // pred_check
    _
  $region23: #{ovt_forward.14} parent=0 // pred_check_branch
    %24 = sbr.rel (0) target = $region25
  $region24: #{ovt_forward.14} parent=0 // pred_region
    _
  $region25: #{ovt_forward.14} parent=0 // pred_fallthru
    _
  // Predicated region
  $region26: #{ovt_forward.14} parent=0 // pred_check
    _
  $region27: #{ovt_forward.14} parent=0 // pred_check_branch
    %26 = sbr.rel (0) target = $region29
  $region28: #{ovt_forward.14} parent=0 // pred_region
    _
  $region29: #{ovt_forward.14} parent=0 // pred_fallthru
    _
  // Predicated region
  $region30: #{ovt_forward.14} parent=0 // pred_check
    _
  $region31: #{ovt_forward.14} parent=0 // pred_check_branch
    %28 = sbr.rel (0) target = $region33
  $region32: #{ovt_forward.14} parent=0 // pred_region
    _
  $region33: #{ovt_forward.14} parent=0 // pred_fallthru
    _
  %v30 = vld [vmem:[%s0] sm:$0xf]
  %v31 = vld [vmem:[%s0 + $0x4] sm:$0xf]
  %v32 = vld [vmem:[%s0 + $0x8] sm:$0xf]
  %v33 = vld [vmem:[%s0 + $0xc] sm:$0xf]
  %v34 = vld [vmem:[%s0 + $0x10] sm:$0xf]
  %v35 = vld [vmem:[%s0 + $0x14] sm:$0xf]
  %v36 = vld [vmem:[%s0 + $0x18] sm:$0xf]
  %v37 = vld [vmem:[%s0 + $0x1c] sm:$0xf]
  %v38 = vld [vmem:[%s0 + $0x20] sm:$0xf]
  %v39 = vld [vmem:[%s0 + $0x24] sm:$0xf]
  %v40 = vld [vmem:[%s0 + $0x28] sm:$0xf]
  %v41 = vld [vmem:[%s0 + $0x2c] sm:$0xf]
  %v42 = vld [vmem:[%s0 + $0x30] sm:$0xf]
  %v43 = vld [vmem:[%s0 + $0x34] sm:$0xf]
  %v44 = vld [vmem:[%s0 + $0x38] sm:$0xf]
  %v45 = vld [vmem:[%s0 + $0x3c] sm:$0xf]
  %v46 = vld [vmem:[%s1] sm:$0xff]
  %v47 = vld [vmem:[%s1 + $0x8] sm:$0xff]
  %v48 = vld [vmem:[%s1 + $0x10] sm:$0xff]
  %v49 = vld [vmem:[%s1 + $0x18] sm:$0xff]
  %v50 = vld [vmem:[%s1 + $0x20] sm:$0xff]
  %v51 = vld [vmem:[%s1 + $0x28] sm:$0xff]
  %v52 = vld [vmem:[%s1 + $0x30] sm:$0xff]
  %v53 = vld [vmem:[%s1 + $0x38] sm:$0xff]
  %v70 = vunpack.c.l.b16 %v30
  %v71 = vunpack.c.l.b16 %v31
  %v72 = vunpack.c.l.b16 %v32
  %v73 = vunpack.c.l.b16 %v33
  %v74 = vunpack.c.l.b16 %v34
  %v75 = vunpack.c.l.b16 %v35
  %v76 = vunpack.c.l.b16 %v36
  %v77 = vunpack.c.l.b16 %v37
  %v78 = vunpack.c.l.b16 %v38
  %v79 = vunpack.c.l.b16 %v39
  %v80 = vunpack.c.l.b16 %v40
  %v81 = vunpack.c.l.b16 %v41
  %v82 = vunpack.c.l.b16 %v42
  %v83 = vunpack.c.l.b16 %v43
  %v84 = vunpack.c.l.b16 %v44
  %v85 = vunpack.c.l.b16 %v45
  %v86 = vpack.c.b16 %v71, %v70
  %v87 = vpack.c.b16 %v73, %v72
  %v88 = vpack.c.b16 %v75, %v74
  %v89 = vpack.c.b16 %v77, %v76
  %v90 = vpack.c.b16 %v79, %v78
  %v91 = vpack.c.b16 %v81, %v80
  %v92 = vpack.c.b16 %v83, %v82
  %v93 = vpack.c.b16 %v85, %v84
  %v102 = vunpack.c.l.b16 %v46
  %v103 = vunpack.c.h.b16 %v46
  %v104 = vunpack.c.l.b16 %v47
  %v105 = vunpack.c.h.b16 %v47
  %v106 = vunpack.c.l.b16 %v48
  %v107 = vunpack.c.h.b16 %v48
  %v108 = vunpack.c.l.b16 %v49
  %v109 = vunpack.c.h.b16 %v49
  %v110 = vunpack.c.l.b16 %v50
  %v111 = vunpack.c.h.b16 %v50
  %v112 = vunpack.c.l.b16 %v51
  %v113 = vunpack.c.h.b16 %v51
  %v114 = vunpack.c.l.b16 %v52
  %v115 = vunpack.c.h.b16 %v52
  %v116 = vunpack.c.l.b16 %v53
  %v117 = vunpack.c.h.b16 %v53
  %v118 = vpack.c.b16 %v104, %v102
  %v119 = vpack.c.b16 %v105, %v103
  %v120 = vpack.c.b16 %v108, %v106
  %v121 = vpack.c.b16 %v109, %v107
  %v122 = vpack.c.b16 %v112, %v110
  %v123 = vpack.c.b16 %v113, %v111
  %v124 = vpack.c.b16 %v116, %v114
  %v125 = vpack.c.b16 %v117, %v115
  %vm134 = vcmask 523264
  %v136 = vsel %vm134, %v86, 0
  %v139 = vsel %vm134, %v87, 0
  %v142 = vsel %vm134, %v88, 0
  %v145 = vsel %vm134, %v89, 0
  %v148 = vsel %vm134, %v90, 0
  %v151 = vsel %vm134, %v91, 0
  %v154 = vsel %vm134, %v92, 0
  %v157 = vsel %vm134, %v93, 0
  %159 = vmatprep.subr.bf16.mxu0 %v119
  %160 = vmatpush1.bf16.msra.mxu0 %v118
  %161 = vmatprep.subr.bf16.mxu0 %v121
  %162 = vmatpush1.bf16.msra.mxu0 %v120
  %163 = vmatprep.subr.bf16.mxu0 %v123
  %164 = vmatpush1.bf16.msra.mxu0 %v122
  %165 = vmatprep.subr.bf16.mxu0 %v125
  %166 = vmatpush1.bf16.msra.mxu0 %v124
  %167 = vmatprep.subr.bf16.mxu0 0
  %168 = vmatpush1.bf16.msra.mxu0 0
  %169 = vmatprep.subr.bf16.mxu0 0
  %170 = vmatpush1.bf16.msra.mxu0 0
  %171 = vmatprep.subr.bf16.mxu0 0
  %172 = vmatpush1.bf16.msra.mxu0 0
  %173 = vmatprep.subr.bf16.mxu0 0
  %174 = vmatpush1.bf16.msra.mxu0 0
  %175 = vmatprep.subr.bf16.mxu0 0
  %176 = vmatpush1.bf16.msra.mxu0 0
  %177 = vmatprep.subr.bf16.mxu0 0
  %178 = vmatpush1.bf16.msra.mxu0 0
  %179 = vmatprep.subr.bf16.mxu0 0
  %180 = vmatpush1.bf16.msra.mxu0 0
  %181 = vmatprep.subr.bf16.mxu0 0
  %182 = vmatpush1.bf16.msra.mxu0 0
  %183 = vmatprep.subr.bf16.mxu0 0
  %184 = vmatpush1.bf16.msra.mxu0 0
  %185 = vmatprep.subr.bf16.mxu0 0
  %186 = vmatpush1.bf16.msra.mxu0 0
  %187 = vmatprep.subr.bf16.mxu0 0
  %188 = vmatpush1.bf16.msra.mxu0 0
  %189 = vmatprep.subr.bf16.mxu0 0
  %190 = vmatpush1.bf16.msra.mxu0 0
  %191 = vmatprep.mubr.bf16.mxu0 0
  %192 = vmatmul.mubr.bf16.gmra.mrb[0].mxu0 %v136
  %v193 = vpop.f32.mrb[0].mxu0
  %v194 = vadd.f32 0.0, %v193
  %v195 = vpop.f32.mrb[0].mxu0
  %v196 = vadd.f32 0.0, %v195
  %v197 = vpop.f32.mrb[0].mxu0
  %v198 = vadd.f32 0.0, %v197
  %v199 = vpop.f32.mrb[0].mxu0
  %v200 = vadd.f32 0.0, %v199
  %201 = vmatprep.mubr.bf16.mxu0 0
  %202 = vmatmul.mubr.bf16.gmra.mrb[0].mxu0 %v139
  %v203 = vpop.f32.mrb[0].mxu0
  %v204 = vadd.f32 0.0, %v203
  %v205 = vpop.f32.mrb[0].mxu0
  %v206 = vadd.f32 0.0, %v205
  %v207 = vpop.f32.mrb[0].mxu0
  %v208 = vadd.f32 0.0, %v207
  %v209 = vpop.f32.mrb[0].mxu0
  %v210 = vadd.f32 0.0, %v209
  %211 = vmatprep.mubr.bf16.mxu0 0
  %212 = vmatmul.mubr.bf16.gmra.mrb[0].mxu0 %v142
  %v213 = vpop.f32.mrb[0].mxu0
  %v214 = vadd.f32 0.0, %v213
  %v215 = vpop.f32.mrb[0].mxu0
  %v216 = vadd.f32 0.0, %v215
  %v217 = vpop.f32.mrb[0].mxu0
  %v218 = vadd.f32 0.0, %v217
  %v219 = vpop.f32.mrb[0].mxu0
  %v220 = vadd.f32 0.0, %v219
  %221 = vmatprep.mubr.bf16.mxu0 0
  %222 = vmatmul.mubr.bf16.gmra.mrb[0].mxu0 %v145
  %v223 = vpop.f32.mrb[0].mxu0
  %v224 = vadd.f32 0.0, %v223
  %v225 = vpop.f32.mrb[0].mxu0
  %v226 = vadd.f32 0.0, %v225
  %v227 = vpop.f32.mrb[0].mxu0
  %v228 = vadd.f32 0.0, %v227
  %v229 = vpop.f32.mrb[0].mxu0
  %v230 = vadd.f32 0.0, %v229
  %231 = vmatprep.mubr.bf16.mxu0 0
  %232 = vmatmul.mubr.bf16.gmra.mrb[0].mxu0 %v148
  %v233 = vpop.f32.mrb[0].mxu0
  %v234 = vadd.f32 0.0, %v233
  %v235 = vpop.f32.mrb[0].mxu0
  %v236 = vadd.f32 0.0, %v235
  %v237 = vpop.f32.mrb[0].mxu0
  %v238 = vadd.f32 0.0, %v237
  %v239 = vpop.f32.mrb[0].mxu0
  %v240 = vadd.f32 0.0, %v239
  %241 = vmatprep.mubr.bf16.mxu0 0
  %242 = vmatmul.mubr.bf16.gmra.mrb[0].mxu0 %v151
  %v243 = vpop.f32.mrb[0].mxu0
  %v244 = vadd.f32 0.0, %v243
  %v245 = vpop.f32.mrb[0].mxu0
  %v246 = vadd.f32 0.0, %v245
  %v247 = vpop.f32.mrb[0].mxu0
  %v248 = vadd.f32 0.0, %v247
  %v249 = vpop.f32.mrb[0].mxu0
  %v250 = vadd.f32 0.0, %v249
  %251 = vmatprep.mubr.bf16.mxu0 0
  %252 = vmatmul.mubr.bf16.gmra.mrb[0].mxu0 %v154
  %v253 = vpop.f32.mrb[0].mxu0
  %v254 = vadd.f32 0.0, %v253
  %v255 = vpop.f32.mrb[0].mxu0
  %v256 = vadd.f32 0.0, %v255
  %v257 = vpop.f32.mrb[0].mxu0
  %v258 = vadd.f32 0.0, %v257
  %v259 = vpop.f32.mrb[0].mxu0
  %v260 = vadd.f32 0.0, %v259
  %261 = vmatprep.mubr.bf16.mxu0 0
  %262 = vmatmul.mubr.bf16.gmra.mrb[0].mxu0 %v157
  %v263 = vpop.f32.mrb[0].mxu0
  %v264 = vadd.f32 0.0, %v263
  %v265 = vpop.f32.mrb[0].mxu0
  %v266 = vadd.f32 0.0, %v265
  %v267 = vpop.f32.mrb[0].mxu0
  %v268 = vadd.f32 0.0, %v267
  %v269 = vpop.f32.mrb[0].mxu0
  %v270 = vadd.f32 0.0, %v269
  %271 = vdwg.mxu0
  %v272 = vld [vmem:[%s2] sm:$0x3]
  %v274 = vlaneseq
  %v275 = vshrl.u32 %v274, 7
  %v276 = vsub.s32 0, %v275
  %v277 = vrot.slane %v272, %v276
  %v278 = vlaneseq
  %v279 = vshrl.u32 %v278, 7
  %v280 = vsub.s32 1, %v279
  %v281 = vrot.slane %v272, %v280
  %v284 = vmul.f32 %v194, %v277
  %v285 = vmul.f32 %v196, %v281
  %v286 = vmul.f32 %v198, %v277
  %v287 = vmul.f32 %v200, %v281
  %v288 = vmul.f32 %v204, %v277
  %v289 = vmul.f32 %v206, %v281
  %v290 = vmul.f32 %v208, %v277
  %v291 = vmul.f32 %v210, %v281
  %v292 = vmul.f32 %v214, %v277
  %v293 = vmul.f32 %v216, %v281
  %v294 = vmul.f32 %v218, %v277
  %v295 = vmul.f32 %v220, %v281
  %v296 = vmul.f32 %v224, %v277
  %v297 = vmul.f32 %v226, %v281
  %v298 = vmul.f32 %v228, %v277
  %v299 = vmul.f32 %v230, %v281
  %v300 = vmul.f32 %v234, %v277
  %v301 = vmul.f32 %v236, %v281
  %v302 = vmul.f32 %v238, %v277
  %v303 = vmul.f32 %v240, %v281
  %v304 = vmul.f32 %v244, %v277
  %v305 = vmul.f32 %v246, %v281
  %v306 = vmul.f32 %v248, %v277
  %v307 = vmul.f32 %v250, %v281
  %v308 = vmul.f32 %v254, %v277
  %v309 = vmul.f32 %v256, %v281
  %v310 = vmul.f32 %v258, %v277
  %v311 = vmul.f32 %v260, %v281
  %v312 = vmul.f32 %v264, %v277
  %v313 = vmul.f32 %v266, %v281
  %v314 = vmul.f32 %v268, %v277
  %v315 = vmul.f32 %v270, %v281
  %v316 = vld [vmem:[%s3] sm:$0x3]
  %v318 = vlaneseq
  %v319 = vshrl.u32 %v318, 7
  %v320 = vsub.s32 0, %v319
  %v321 = vrot.slane %v316, %v320
  %v322 = vlaneseq
  %v323 = vshrl.u32 %v322, 7
  %v324 = vsub.s32 1, %v323
  %v325 = vrot.slane %v316, %v324
  %v328 = vadd.f32 %v284, %v321
  %v329 = vadd.f32 %v285, %v325
  %v330 = vadd.f32 %v286, %v321
  %v331 = vadd.f32 %v287, %v325
  %v332 = vadd.f32 %v288, %v321
  %v333 = vadd.f32 %v289, %v325
  %v334 = vadd.f32 %v290, %v321
  %v335 = vadd.f32 %v291, %v325
  %v336 = vadd.f32 %v292, %v321
  %v337 = vadd.f32 %v293, %v325
  %v338 = vadd.f32 %v294, %v321
  %v339 = vadd.f32 %v295, %v325
  %v340 = vadd.f32 %v296, %v321
  %v341 = vadd.f32 %v297, %v325
  %v342 = vadd.f32 %v298, %v321
  %v343 = vadd.f32 %v299, %v325
  %v344 = vadd.f32 %v300, %v321
  %v345 = vadd.f32 %v301, %v325
  %v346 = vadd.f32 %v302, %v321
  %v347 = vadd.f32 %v303, %v325
  %v348 = vadd.f32 %v304, %v321
  %v349 = vadd.f32 %v305, %v325
  %v350 = vadd.f32 %v306, %v321
  %v351 = vadd.f32 %v307, %v325
  %v352 = vadd.f32 %v308, %v321
  %v353 = vadd.f32 %v309, %v325
  %v354 = vadd.f32 %v310, %v321
  %v355 = vadd.f32 %v311, %v325
  %v356 = vadd.f32 %v312, %v321
  %v357 = vadd.f32 %v313, %v325
  %v358 = vadd.f32 %v314, %v321
  %v359 = vadd.f32 %v315, %v325
  %v360 = vld [vmem:[%s4] sm:$0xf]
  %v361 = vld [vmem:[%s4 + $0x4] sm:$0xf]
  %v362 = vld [vmem:[%s4 + $0x8] sm:$0xf]
  %v363 = vld [vmem:[%s4 + $0xc] sm:$0xf]
  %v364 = vld [vmem:[%s4 + $0x10] sm:$0xf]
  %v365 = vld [vmem:[%s4 + $0x14] sm:$0xf]
  %v366 = vld [vmem:[%s4 + $0x18] sm:$0xf]
  %v367 = vld [vmem:[%s4 + $0x1c] sm:$0xf]
  %v368 = vld [vmem:[%s4 + $0x20] sm:$0xf]
  %v369 = vld [vmem:[%s4 + $0x24] sm:$0xf]
  %v370 = vld [vmem:[%s4 + $0x28] sm:$0xf]
  %v371 = vld [vmem:[%s4 + $0x2c] sm:$0xf]
  %v372 = vld [vmem:[%s4 + $0x30] sm:$0xf]
  %v373 = vld [vmem:[%s4 + $0x34] sm:$0xf]
  %v374 = vld [vmem:[%s4 + $0x38] sm:$0xf]
  %v375 = vld [vmem:[%s4 + $0x3c] sm:$0xf]
  %v376 = vld [vmem:[%s5] sm:$0xff]
  %v377 = vld [vmem:[%s5 + $0x8] sm:$0xff]
  %v378 = vld [vmem:[%s5 + $0x10] sm:$0xff]
  %v379 = vld [vmem:[%s5 + $0x18] sm:$0xff]
  %v380 = vld [vmem:[%s5 + $0x20] sm:$0xff]
  %v381 = vld [vmem:[%s5 + $0x28] sm:$0xff]
  %v382 = vld [vmem:[%s5 + $0x30] sm:$0xff]
  %v383 = vld [vmem:[%s5 + $0x38] sm:$0xff]
  %v400 = vunpack.c.l.b16 %v360
  %v401 = vunpack.c.l.b16 %v361
  %v402 = vunpack.c.l.b16 %v362
  %v403 = vunpack.c.l.b16 %v363
  %v404 = vunpack.c.l.b16 %v364
  %v405 = vunpack.c.l.b16 %v365
  %v406 = vunpack.c.l.b16 %v366
  %v407 = vunpack.c.l.b16 %v367
  %v408 = vunpack.c.l.b16 %v368
  %v409 = vunpack.c.l.b16 %v369
  %v410 = vunpack.c.l.b16 %v370
  %v411 = vunpack.c.l.b16 %v371
  %v412 = vunpack.c.l.b16 %v372
  %v413 = vunpack.c.l.b16 %v373
  %v414 = vunpack.c.l.b16 %v374
  %v415 = vunpack.c.l.b16 %v375
  %v416 = vpack.c.b16 %v401, %v400
  %v417 = vpack.c.b16 %v403, %v402
  %v418 = vpack.c.b16 %v405, %v404
  %v419 = vpack.c.b16 %v407, %v406
  %v420 = vpack.c.b16 %v409, %v408
  %v421 = vpack.c.b16 %v411, %v410
  %v422 = vpack.c.b16 %v413, %v412
  %v423 = vpack.c.b16 %v415, %v414
  %v432 = vunpack.c.l.b16 %v376
  %v433 = vunpack.c.h.b16 %v376
  %v434 = vunpack.c.l.b16 %v377
  %v435 = vunpack.c.h.b16 %v377
  %v436 = vunpack.c.l.b16 %v378
  %v437 = vunpack.c.h.b16 %v378
  %v438 = vunpack.c.l.b16 %v379
  %v439 = vunpack.c.h.b16 %v379
  %v440 = vunpack.c.l.b16 %v380
  %v441 = vunpack.c.h.b16 %v380
  %v442 = vunpack.c.l.b16 %v381
  %v443 = vunpack.c.h.b16 %v381
  %v444 = vunpack.c.l.b16 %v382
  %v445 = vunpack.c.h.b16 %v382
  %v446 = vunpack.c.l.b16 %v383
  %v447 = vunpack.c.h.b16 %v383
  %v448 = vpack.c.b16 %v434, %v432
  %v449 = vpack.c.b16 %v435, %v433
  %v450 = vpack.c.b16 %v438, %v436
  %v451 = vpack.c.b16 %v439, %v437
  %v452 = vpack.c.b16 %v442, %v440
  %v453 = vpack.c.b16 %v443, %v441
  %v454 = vpack.c.b16 %v446, %v444
  %v455 = vpack.c.b16 %v447, %v445
  %v465 = vsel %vm134, %v416, 0
  %v468 = vsel %vm134, %v417, 0
  %v471 = vsel %vm134, %v418, 0
  %v474 = vsel %vm134, %v419, 0
  %v477 = vsel %vm134, %v420, 0
  %v480 = vsel %vm134, %v421, 0
  %v483 = vsel %vm134, %v422, 0
  %v486 = vsel %vm134, %v423, 0
  %488 = vmatprep.subr.bf16.mxu0 %v449
  %489 = vmatpush1.bf16.msra.mxu0 %v448
  %490 = vmatprep.subr.bf16.mxu0 %v451
  %491 = vmatpush1.bf16.msra.mxu0 %v450
  %492 = vmatprep.subr.bf16.mxu0 %v453
  %493 = vmatpush1.bf16.msra.mxu0 %v452
  %494 = vmatprep.subr.bf16.mxu0 %v455
  %495 = vmatpush1.bf16.msra.mxu0 %v454
  %496 = vmatprep.subr.bf16.mxu0 0
  %497 = vmatpush1.bf16.msra.mxu0 0
  %498 = vmatprep.subr.bf16.mxu0 0
  %499 = vmatpush1.bf16.msra.mxu0 0
  %500 = vmatprep.subr.bf16.mxu0 0
  %501 = vmatpush1.bf16.msra.mxu0 0
  %502 = vmatprep.subr.bf16.mxu0 0
  %503 = vmatpush1.bf16.msra.mxu0 0
  %504 = vmatprep.subr.bf16.mxu0 0
  %505 = vmatpush1.bf16.msra.mxu0 0
  %506 = vmatprep.subr.bf16.mxu0 0
  %507 = vmatpush1.bf16.msra.mxu0 0
  %508 = vmatprep.subr.bf16.mxu0 0
  %509 = vmatpush1.bf16.msra.mxu0 0
  %510 = vmatprep.subr.bf16.mxu0 0
  %511 = vmatpush1.bf16.msra.mxu0 0
  %512 = vmatprep.subr.bf16.mxu0 0
  %513 = vmatpush1.bf16.msra.mxu0 0
  %514 = vmatprep.subr.bf16.mxu0 0
  %515 = vmatpush1.bf16.msra.mxu0 0
  %516 = vmatprep.subr.bf16.mxu0 0
  %517 = vmatpush1.bf16.msra.mxu0 0
  %518 = vmatprep.subr.bf16.mxu0 0
  %519 = vmatpush1.bf16.msra.mxu0 0
  %520 = vmatprep.mubr.bf16.mxu0 0
  %521 = vmatmul.mubr.bf16.gmra.mrb[0].mxu0 %v465
  %v522 = vpop.f32.mrb[0].mxu0
  %v523 = vadd.f32 0.0, %v522
  %v524 = vpop.f32.mrb[0].mxu0
  %v525 = vadd.f32 0.0, %v524
  %v526 = vpop.f32.mrb[0].mxu0
  %v527 = vadd.f32 0.0, %v526
  %v528 = vpop.f32.mrb[0].mxu0
  %v529 = vadd.f32 0.0, %v528
  %530 = vmatprep.mubr.bf16.mxu0 0
  %531 = vmatmul.mubr.bf16.gmra.mrb[0].mxu0 %v468
  %v532 = vpop.f32.mrb[0].mxu0
  %v533 = vadd.f32 0.0, %v532
  %v534 = vpop.f32.mrb[0].mxu0
  %v535 = vadd.f32 0.0, %v534
  %v536 = vpop.f32.mrb[0].mxu0
  %v537 = vadd.f32 0.0, %v536
  %v538 = vpop.f32.mrb[0].mxu0
  %v539 = vadd.f32 0.0, %v538
  %540 = vmatprep.mubr.bf16.mxu0 0
  %541 = vmatmul.mubr.bf16.gmra.mrb[0].mxu0 %v471
  %v542 = vpop.f32.mrb[0].mxu0
  %v543 = vadd.f32 0.0, %v542
  %v544 = vpop.f32.mrb[0].mxu0
  %v545 = vadd.f32 0.0, %v544
  %v546 = vpop.f32.mrb[0].mxu0
  %v547 = vadd.f32 0.0, %v546
  %v548 = vpop.f32.mrb[0].mxu0
  %v549 = vadd.f32 0.0, %v548
  %550 = vmatprep.mubr.bf16.mxu0 0
  %551 = vmatmul.mubr.bf16.gmra.mrb[0].mxu0 %v474
  %v552 = vpop.f32.mrb[0].mxu0
  %v553 = vadd.f32 0.0, %v552
  %v554 = vpop.f32.mrb[0].mxu0
  %v555 = vadd.f32 0.0, %v554
  %v556 = vpop.f32.mrb[0].mxu0
  %v557 = vadd.f32 0.0, %v556
  %v558 = vpop.f32.mrb[0].mxu0
  %v559 = vadd.f32 0.0, %v558
  %560 = vmatprep.mubr.bf16.mxu0 0
  %561 = vmatmul.mubr.bf16.gmra.mrb[0].mxu0 %v477
  %v562 = vpop.f32.mrb[0].mxu0
  %v563 = vadd.f32 0.0, %v562
  %v564 = vpop.f32.mrb[0].mxu0
  %v565 = vadd.f32 0.0, %v564
  %v566 = vpop.f32.mrb[0].mxu0
  %v567 = vadd.f32 0.0, %v566
  %v568 = vpop.f32.mrb[0].mxu0
  %v569 = vadd.f32 0.0, %v568
  %570 = vmatprep.mubr.bf16.mxu0 0
  %571 = vmatmul.mubr.bf16.gmra.mrb[0].mxu0 %v480
  %v572 = vpop.f32.mrb[0].mxu0
  %v573 = vadd.f32 0.0, %v572
  %v574 = vpop.f32.mrb[0].mxu0
  %v575 = vadd.f32 0.0, %v574
  %v576 = vpop.f32.mrb[0].mxu0
  %v577 = vadd.f32 0.0, %v576
  %v578 = vpop.f32.mrb[0].mxu0
  %v579 = vadd.f32 0.0, %v578
  %580 = vmatprep.mubr.bf16.mxu0 0
  %581 = vmatmul.mubr.bf16.gmra.mrb[0].mxu0 %v483
  %v582 = vpop.f32.mrb[0].mxu0
  %v583 = vadd.f32 0.0, %v582
  %v584 = vpop.f32.mrb[0].mxu0
  %v585 = vadd.f32 0.0, %v584
  %v586 = vpop.f32.mrb[0].mxu0
  %v587 = vadd.f32 0.0, %v586
  %v588 = vpop.f32.mrb[0].mxu0
  %v589 = vadd.f32 0.0, %v588
  %590 = vmatprep.mubr.bf16.mxu0 0
  %591 = vmatmul.mubr.bf16.gmra.mrb[0].mxu0 %v486
  %v592 = vpop.f32.mrb[0].mxu0
  %v593 = vadd.f32 0.0, %v592
  %v594 = vpop.f32.mrb[0].mxu0
  %v595 = vadd.f32 0.0, %v594
  %v596 = vpop.f32.mrb[0].mxu0
  %v597 = vadd.f32 0.0, %v596
  %v598 = vpop.f32.mrb[0].mxu0
  %v599 = vadd.f32 0.0, %v598
  %600 = vdwg.mxu0
  %v601 = vld [vmem:[%s6] sm:$0x3]
  %v603 = vlaneseq
  %v604 = vshrl.u32 %v603, 7
  %v605 = vsub.s32 0, %v604
  %v606 = vrot.slane %v601, %v605
  %v607 = vlaneseq
  %v608 = vshrl.u32 %v607, 7
  %v609 = vsub.s32 1, %v608
  %v610 = vrot.slane %v601, %v609
  %v613 = vmul.f32 %v523, %v606
  %v614 = vmul.f32 %v525, %v610
  %v615 = vmul.f32 %v527, %v606
  %v616 = vmul.f32 %v529, %v610
  %v617 = vmul.f32 %v533, %v606
  %v618 = vmul.f32 %v535, %v610
  %v619 = vmul.f32 %v537, %v606
  %v620 = vmul.f32 %v539, %v610
  %v621 = vmul.f32 %v543, %v606
  %v622 = vmul.f32 %v545, %v610
  %v623 = vmul.f32 %v547, %v606
  %v624 = vmul.f32 %v549, %v610
  %v625 = vmul.f32 %v553, %v606
  %v626 = vmul.f32 %v555, %v610
  %v627 = vmul.f32 %v557, %v606
  %v628 = vmul.f32 %v559, %v610
  %v629 = vmul.f32 %v563, %v606
  %v630 = vmul.f32 %v565, %v610
  %v631 = vmul.f32 %v567, %v606
  %v632 = vmul.f32 %v569, %v610
  %v633 = vmul.f32 %v573, %v606
  %v634 = vmul.f32 %v575, %v610
  %v635 = vmul.f32 %v577, %v606
  %v636 = vmul.f32 %v579, %v610
  %v637 = vmul.f32 %v583, %v606
  %v638 = vmul.f32 %v585, %v610
  %v639 = vmul.f32 %v587, %v606
  %v640 = vmul.f32 %v589, %v610
  %v641 = vmul.f32 %v593, %v606
  %v642 = vmul.f32 %v595, %v610
  %v643 = vmul.f32 %v597, %v606
  %v644 = vmul.f32 %v599, %v610
  %v645 = vld [vmem:[%s7] sm:$0x3]
  %v647 = vlaneseq
  %v648 = vshrl.u32 %v647, 7
  %v649 = vsub.s32 0, %v648
  %v650 = vrot.slane %v645, %v649
  %v651 = vlaneseq
  %v652 = vshrl.u32 %v651, 7
  %v653 = vsub.s32 1, %v652
  %v654 = vrot.slane %v645, %v653
  %v657 = vadd.f32 %v613, %v650
  %v658 = vadd.f32 %v614, %v654
  %v659 = vadd.f32 %v615, %v650
  %v660 = vadd.f32 %v616, %v654
  %v661 = vadd.f32 %v617, %v650
  %v662 = vadd.f32 %v618, %v654
  %v663 = vadd.f32 %v619, %v650
  %v664 = vadd.f32 %v620, %v654
  %v665 = vadd.f32 %v621, %v650
  %v666 = vadd.f32 %v622, %v654
  %v667 = vadd.f32 %v623, %v650
  %v668 = vadd.f32 %v624, %v654
  %v669 = vadd.f32 %v625, %v650
  %v670 = vadd.f32 %v626, %v654
  %v671 = vadd.f32 %v627, %v650
  %v672 = vadd.f32 %v628, %v654
  %v673 = vadd.f32 %v629, %v650
  %v674 = vadd.f32 %v630, %v654
  %v675 = vadd.f32 %v631, %v650
  %v676 = vadd.f32 %v632, %v654
  %v677 = vadd.f32 %v633, %v650
  %v678 = vadd.f32 %v634, %v654
  %v679 = vadd.f32 %v635, %v650
  %v680 = vadd.f32 %v636, %v654
  %v681 = vadd.f32 %v637, %v650
  %v682 = vadd.f32 %v638, %v654
  %v683 = vadd.f32 %v639, %v650
  %v684 = vadd.f32 %v640, %v654
  %v685 = vadd.f32 %v641, %v650
  %v686 = vadd.f32 %v642, %v654
  %v687 = vadd.f32 %v643, %v650
  %v688 = vadd.f32 %v644, %v654
  %v689 = vadd.f32 %v328, %v657
  %v690 = vadd.f32 %v329, %v658
  %v691 = vadd.f32 %v330, %v659
  %v692 = vadd.f32 %v331, %v660
  %v693 = vadd.f32 %v332, %v661
  %v694 = vadd.f32 %v333, %v662
  %v695 = vadd.f32 %v334, %v663
  %v696 = vadd.f32 %v335, %v664
  %v697 = vadd.f32 %v336, %v665
  %v698 = vadd.f32 %v337, %v666
  %v699 = vadd.f32 %v338, %v667
  %v700 = vadd.f32 %v339, %v668
  %v701 = vadd.f32 %v340, %v669
  %v702 = vadd.f32 %v341, %v670
  %v703 = vadd.f32 %v342, %v671
  %v704 = vadd.f32 %v343, %v672
  %v705 = vadd.f32 %v344, %v673
  %v706 = vadd.f32 %v345, %v674
  %v707 = vadd.f32 %v346, %v675
  %v708 = vadd.f32 %v347, %v676
  %v709 = vadd.f32 %v348, %v677
  %v710 = vadd.f32 %v349, %v678
  %v711 = vadd.f32 %v350, %v679
  %v712 = vadd.f32 %v351, %v680
  %v713 = vadd.f32 %v352, %v681
  %v714 = vadd.f32 %v353, %v682
  %v715 = vadd.f32 %v354, %v683
  %v716 = vadd.f32 %v355, %v684
  %v717 = vadd.f32 %v356, %v685
  %v718 = vadd.f32 %v357, %v686
  %v719 = vadd.f32 %v358, %v687
  %v720 = vadd.f32 %v359, %v688
  %v721 = vmax.f32 %v689, 0.0
  %v722 = vmax.f32 %v690, 0.0
  %v723 = vmax.f32 %v691, 0.0
  %v724 = vmax.f32 %v692, 0.0
  %v725 = vmax.f32 %v693, 0.0
  %v726 = vmax.f32 %v694, 0.0
  %v727 = vmax.f32 %v695, 0.0
  %v728 = vmax.f32 %v696, 0.0
  %v729 = vmax.f32 %v697, 0.0
  %v730 = vmax.f32 %v698, 0.0
  %v731 = vmax.f32 %v699, 0.0
  %v732 = vmax.f32 %v700, 0.0
  %v733 = vmax.f32 %v701, 0.0
  %v734 = vmax.f32 %v702, 0.0
  %v735 = vmax.f32 %v703, 0.0
  %v736 = vmax.f32 %v704, 0.0
  %v737 = vmax.f32 %v705, 0.0
  %v738 = vmax.f32 %v706, 0.0
  %v739 = vmax.f32 %v707, 0.0
  %v740 = vmax.f32 %v708, 0.0
  %v741 = vmax.f32 %v709, 0.0
  %v742 = vmax.f32 %v710, 0.0
  %v743 = vmax.f32 %v711, 0.0
  %v744 = vmax.f32 %v712, 0.0
  %v745 = vmax.f32 %v713, 0.0
  %v746 = vmax.f32 %v714, 0.0
  %v747 = vmax.f32 %v715, 0.0
  %v748 = vmax.f32 %v716, 0.0
  %v749 = vmax.f32 %v717, 0.0
  %v750 = vmax.f32 %v718, 0.0
  %v751 = vmax.f32 %v719, 0.0
  %v752 = vmax.f32 %v720, 0.0
  %753 = vst [vmem:[%s8] sm:$0xff] %v721
  %754 = vst [vmem:[%s8 + $0x8] sm:$0xff] %v722
  %755 = vst [vmem:[%s8 + $0x10] sm:$0xff] %v723
  %756 = vst [vmem:[%s8 + $0x18] sm:$0xff] %v724
  %757 = vst [vmem:[%s8 + $0x20] sm:$0xff] %v725
  %758 = vst [vmem:[%s8 + $0x28] sm:$0xff] %v726
  %759 = vst [vmem:[%s8 + $0x30] sm:$0xff] %v727
  %760 = vst [vmem:[%s8 + $0x38] sm:$0xff] %v728
  %761 = vst [vmem:[%s8 + $0x40] sm:$0xff] %v729
  %762 = vst [vmem:[%s8 + $0x48] sm:$0xff] %v730
  %763 = vst [vmem:[%s8 + $0x50] sm:$0xff] %v731
  %764 = vst [vmem:[%s8 + $0x58] sm:$0xff] %v732
  %765 = vst [vmem:[%s8 + $0x60] sm:$0xff] %v733
  %766 = vst [vmem:[%s8 + $0x68] sm:$0xff] %v734
  %767 = vst [vmem:[%s8 + $0x70] sm:$0xff] %v735
  %768 = vst [vmem:[%s8 + $0x78] sm:$0xff] %v736
  %769 = vst [vmem:[%s8 + $0x80] sm:$0xff] %v737
  %770 = vst [vmem:[%s8 + $0x88] sm:$0xff] %v738
  %771 = vst [vmem:[%s8 + $0x90] sm:$0xff] %v739
  %772 = vst [vmem:[%s8 + $0x98] sm:$0xff] %v740
  %773 = vst [vmem:[%s8 + $0xa0] sm:$0xff] %v741
  %774 = vst [vmem:[%s8 + $0xa8] sm:$0xff] %v742
  %775 = vst [vmem:[%s8 + $0xb0] sm:$0xff] %v743
  %776 = vst [vmem:[%s8 + $0xb8] sm:$0xff] %v744
  %777 = vst [vmem:[%s8 + $0xc0] sm:$0xff] %v745
  %778 = vst [vmem:[%s8 + $0xc8] sm:$0xff] %v746
  %779 = vst [vmem:[%s8 + $0xd0] sm:$0xff] %v747
  %780 = vst [vmem:[%s8 + $0xd8] sm:$0xff] %v748
  %781 = vst [vmem:[%s8 + $0xe0] sm:$0xff] %v749
  %782 = vst [vmem:[%s8 + $0xe8] sm:$0xff] %v750
  %783 = vst [vmem:[%s8 + $0xf0] sm:$0xff] %v751
  %784 = vst [vmem:[%s8 + $0xf8] sm:$0xff] %v752
  // Predicated region
  $region34: #{ovt_forward.14} parent=0 // pred_check
    _
  $region35: #{ovt_forward.14} parent=0 // pred_check_branch
    %786 = sbr.rel (0) target = $region37
  $region36: #{ovt_forward.14} parent=0 // pred_region
    _
  $region37: #{ovt_forward.14} parent=0 // pred_fallthru
    _
  // Predicated region
  $region38: #{ovt_forward.14} parent=0 // pred_check
    _
  $region39: #{ovt_forward.14} parent=0 // pred_check_branch
    %788 = sbr.rel (0) target = $region41
  $region40: #{ovt_forward.14} parent=0 // pred_region
    _
  $region41: #{ovt_forward.14} parent=0 // pred_fallthru
    _

// kernel: ovt_forward.15
$region0: #{ovt_forward.15}
  #allocation0 [shape = 'u32[]', space=smem, size = 0x4, offset = 0x4, fixed_abs, tag = 'smem constant byte address 0x4 - core index']
  #allocation1 [shape = 'u32[144,128]{1,0:T(1,128)}', space=vmem, size = 0x12000, scoped, tag = 'internal scratch']
  %s0 = inlined_call_operand.vmem [shape: bf16[128,256], index: 0, kind: input, shape index: {}]
  %s1 = inlined_call_operand.vmem [shape: bf16[256,64], index: 1, kind: input, shape index: {}]
  %s2 = inlined_call_operand.vmem [shape: f32[1,64], index: 2, kind: input, shape index: {}]
  %s3 = inlined_call_operand.vmem [shape: f32[1,64], index: 3, kind: input, shape index: {}]
  %s4 = inlined_call_operand.vmem [shape: f32[128,64], index: 4, kind: output, shape index: {}]
  %s5 = sld [smem:[#allocation0]]
  $region26: #{ovt_forward.15} parent=0
    _
  %s7 = ssub.s32 1, %s5
  %s8 = scalar_select 0, %s7, %s5
  // Predicated region
  $region2: #{ovt_forward.15} parent=0 // pred_check
    _
  $region3: #{ovt_forward.15} parent=0 // pred_check_branch
    %10 = sbr.rel (0) target = $region5
  $region4: #{ovt_forward.15} parent=0 // pred_region
    _
  $region5: #{ovt_forward.15} parent=0 // pred_fallthru
    _
  // Predicated region
  $region6: #{ovt_forward.15} parent=0 // pred_check
    _
  $region7: #{ovt_forward.15} parent=0 // pred_check_branch
    %12 = sbr.rel (0) target = $region9
  $region8: #{ovt_forward.15} parent=0 // pred_region
    _
  $region9: #{ovt_forward.15} parent=0 // pred_fallthru
    _
  // Predicated region
  $region10: #{ovt_forward.15} parent=0 // pred_check
    _
  $region11: #{ovt_forward.15} parent=0 // pred_check_branch
    %14 = sbr.rel (0) target = $region13
  $region12: #{ovt_forward.15} parent=0 // pred_region
    _
  $region13: #{ovt_forward.15} parent=0 // pred_fallthru
    _
  // Predicated region
  $region14: #{ovt_forward.15} parent=0 // pred_check
    _
  $region15: #{ovt_forward.15} parent=0 // pred_check_branch
    %16 = sbr.rel (0) target = $region17
  $region16: #{ovt_forward.15} parent=0 // pred_region
    _
  $region17: #{ovt_forward.15} parent=0 // pred_fallthru
    _
  %v18 = vld [vmem:[%s0] sm:$0xff]
  %v19 = vld [vmem:[%s0 + $0x8] sm:$0xff]
  %v20 = vld [vmem:[%s0 + $0x10] sm:$0xff]
  %v21 = vld [vmem:[%s0 + $0x18] sm:$0xff]
  %v22 = vld [vmem:[%s0 + $0x20] sm:$0xff]
  %v23 = vld [vmem:[%s0 + $0x28] sm:$0xff]
  %v24 = vld [vmem:[%s0 + $0x30] sm:$0xff]
  %v25 = vld [vmem:[%s0 + $0x38] sm:$0xff]
  %v26 = vld [vmem:[%s0 + $0x40] sm:$0xff]
  %v27 = vld [vmem:[%s0 + $0x48] sm:$0xff]
  %v28 = vld [vmem:[%s0 + $0x50] sm:$0xff]
  %v29 = vld [vmem:[%s0 + $0x58] sm:$0xff]
  %v30 = vld [vmem:[%s0 + $0x60] sm:$0xff]
  %v31 = vld [vmem:[%s0 + $0x68] sm:$0xff]
  %v32 = vld [vmem:[%s0 + $0x70] sm:$0xff]
  %v33 = vld [vmem:[%s0 + $0x78] sm:$0xff]
  %v34 = vld [vmem:[%s1] sm:$0xf]
  %v35 = vld [vmem:[%s1 + $0x4] sm:$0xf]
  %v36 = vld [vmem:[%s1 + $0x8] sm:$0xf]
  %v37 = vld [vmem:[%s1 + $0xc] sm:$0xf]
  %v38 = vld [vmem:[%s1 + $0x10] sm:$0xf]
  %v39 = vld [vmem:[%s1 + $0x14] sm:$0xf]
  %v40 = vld [vmem:[%s1 + $0x18] sm:$0xf]
  %v41 = vld [vmem:[%s1 + $0x1c] sm:$0xf]
  %v42 = vld [vmem:[%s1 + $0x20] sm:$0xf]
  %v43 = vld [vmem:[%s1 + $0x24] sm:$0xf]
  %v44 = vld [vmem:[%s1 + $0x28] sm:$0xf]
  %v45 = vld [vmem:[%s1 + $0x2c] sm:$0xf]
  %v46 = vld [vmem:[%s1 + $0x30] sm:$0xf]
  %v47 = vld [vmem:[%s1 + $0x34] sm:$0xf]
  %v48 = vld [vmem:[%s1 + $0x38] sm:$0xf]
  %v49 = vld [vmem:[%s1 + $0x3c] sm:$0xf]
  %v50 = vld [vmem:[%s1 + $0x40] sm:$0xf]
  %v51 = vld [vmem:[%s1 + $0x44] sm:$0xf]
  %v52 = vld [vmem:[%s1 + $0x48] sm:$0xf]
  %v53 = vld [vmem:[%s1 + $0x4c] sm:$0xf]
  %v54 = vld [vmem:[%s1 + $0x50] sm:$0xf]
  %v55 = vld [vmem:[%s1 + $0x54] sm:$0xf]
  %v56 = vld [vmem:[%s1 + $0x58] sm:$0xf]
  %v57 = vld [vmem:[%s1 + $0x5c] sm:$0xf]
  %v58 = vld [vmem:[%s1 + $0x60] sm:$0xf]
  %v59 = vld [vmem:[%s1 + $0x64] sm:$0xf]
  %v60 = vld [vmem:[%s1 + $0x68] sm:$0xf]
  %v61 = vld [vmem:[%s1 + $0x6c] sm:$0xf]
  %v62 = vld [vmem:[%s1 + $0x70] sm:$0xf]
  %v63 = vld [vmem:[%s1 + $0x74] sm:$0xf]
  %v64 = vld [vmem:[%s1 + $0x78] sm:$0xf]
  %v65 = vld [vmem:[%s1 + $0x7c] sm:$0xf]
  %v82 = vunpack.c.l.b16 %v18
  %v83 = vunpack.c.h.b16 %v18
  %v84 = vunpack.c.l.b16 %v19
  %v85 = vunpack.c.h.b16 %v19
  %v86 = vunpack.c.l.b16 %v20
  %v87 = vunpack.c.h.b16 %v20
  %v88 = vunpack.c.l.b16 %v21
  %v89 = vunpack.c.h.b16 %v21
  %v90 = vunpack.c.l.b16 %v22
  %v91 = vunpack.c.h.b16 %v22
  %v92 = vunpack.c.l.b16 %v23
  %v93 = vunpack.c.h.b16 %v23
  %v94 = vunpack.c.l.b16 %v24
  %v95 = vunpack.c.h.b16 %v24
  %v96 = vunpack.c.l.b16 %v25
  %v97 = vunpack.c.h.b16 %v25
  %v98 = vunpack.c.l.b16 %v26
  %v99 = vunpack.c.h.b16 %v26
  %v100 = vunpack.c.l.b16 %v27
  %v101 = vunpack.c.h.b16 %v27
  %v102 = vunpack.c.l.b16 %v28
  %v103 = vunpack.c.h.b16 %v28
  %v104 = vunpack.c.l.b16 %v29
  %v105 = vunpack.c.h.b16 %v29
  %v106 = vunpack.c.l.b16 %v30
  %v107 = vunpack.c.h.b16 %v30
  %v108 = vunpack.c.l.b16 %v31
  %v109 = vunpack.c.h.b16 %v31
  %v110 = vunpack.c.l.b16 %v32
  %v111 = vunpack.c.h.b16 %v32
  %v112 = vunpack.c.l.b16 %v33
  %v113 = vunpack.c.h.b16 %v33
  %v114 = vpack.c.b16 %v84, %v82
  %v115 = vpack.c.b16 %v85, %v83
  %v116 = vpack.c.b16 %v88, %v86
  %v117 = vpack.c.b16 %v89, %v87
  %v118 = vpack.c.b16 %v92, %v90
  %v119 = vpack.c.b16 %v93, %v91
  %v120 = vpack.c.b16 %v96, %v94
  %v121 = vpack.c.b16 %v97, %v95
  %v122 = vpack.c.b16 %v100, %v98
  %v123 = vpack.c.b16 %v101, %v99
  %v124 = vpack.c.b16 %v104, %v102
  %v125 = vpack.c.b16 %v105, %v103
  %v126 = vpack.c.b16 %v108, %v106
  %v127 = vpack.c.b16 %v109, %v107
  %v128 = vpack.c.b16 %v112, %v110
  %v129 = vpack.c.b16 %v113, %v111
  %v178 = vunpack.c.l.b16 %v34
  %v179 = vunpack.c.l.b16 %v35
  %v180 = vunpack.c.l.b16 %v36
  %v181 = vunpack.c.l.b16 %v37
  %v182 = vunpack.c.l.b16 %v38
  %v183 = vunpack.c.l.b16 %v39
  %v184 = vunpack.c.l.b16 %v40
  %v185 = vunpack.c.l.b16 %v41
  %v186 = vunpack.c.l.b16 %v42
  %v187 = vunpack.c.l.b16 %v43
  %v188 = vunpack.c.l.b16 %v44
  %v189 = vunpack.c.l.b16 %v45
  %v190 = vunpack.c.l.b16 %v46
  %v191 = vunpack.c.l.b16 %v47
  %v192 = vunpack.c.l.b16 %v48
  %v193 = vunpack.c.l.b16 %v49
  %v194 = vunpack.c.l.b16 %v50
  %v195 = vunpack.c.l.b16 %v51
  %v196 = vunpack.c.l.b16 %v52
  %v197 = vunpack.c.l.b16 %v53
  %v198 = vunpack.c.l.b16 %v54
  %v199 = vunpack.c.l.b16 %v55
  %v200 = vunpack.c.l.b16 %v56
  %v201 = vunpack.c.l.b16 %v57
  %v202 = vunpack.c.l.b16 %v58
  %v203 = vunpack.c.l.b16 %v59
  %v204 = vunpack.c.l.b16 %v60
  %v205 = vunpack.c.l.b16 %v61
  %v206 = vunpack.c.l.b16 %v62
  %v207 = vunpack.c.l.b16 %v63
  %v208 = vunpack.c.l.b16 %v64
  %v209 = vunpack.c.l.b16 %v65
  %v210 = vpack.c.b16 %v179, %v178
  %v211 = vpack.c.b16 %v181, %v180
  %v212 = vpack.c.b16 %v183, %v182
  %v213 = vpack.c.b16 %v185, %v184
  %v214 = vpack.c.b16 %v187, %v186
  %v215 = vpack.c.b16 %v189, %v188
  %v216 = vpack.c.b16 %v191, %v190
  %v217 = vpack.c.b16 %v193, %v192
  %v218 = vpack.c.b16 %v195, %v194
  %v219 = vpack.c.b16 %v197, %v196
  %v220 = vpack.c.b16 %v199, %v198
  %v221 = vpack.c.b16 %v201, %v200
  %v222 = vpack.c.b16 %v203, %v202
  %v223 = vpack.c.b16 %v205, %v204
  %v224 = vpack.c.b16 %v207, %v206
  %v225 = vpack.c.b16 %v209, %v208
  %242 = vmatprep.subr.bf16.mxu0 0
  %243 = vmatpush1.bf16.msra.mxu0 %v210
  %244 = vmatprep.subr.bf16.mxu0 0
  %245 = vmatpush1.bf16.msra.mxu0 %v211
  %246 = vmatprep.subr.bf16.mxu0 0
  %247 = vmatpush1.bf16.msra.mxu0 %v212
  %248 = vmatprep.subr.bf16.mxu0 0
  %249 = vmatpush1.bf16.msra.mxu0 %v213
  %250 = vmatprep.subr.bf16.mxu0 0
  %251 = vmatpush1.bf16.msra.mxu0 %v214
  %252 = vmatprep.subr.bf16.mxu0 0
  %253 = vmatpush1.bf16.msra.mxu0 %v215
  %254 = vmatprep.subr.bf16.mxu0 0
  %255 = vmatpush1.bf16.msra.mxu0 %v216
  %256 = vmatprep.subr.bf16.mxu0 0
  %257 = vmatpush1.bf16.msra.mxu0 %v217
  %258 = vmatprep.subr.bf16.mxu0 0
  %259 = vmatpush1.bf16.msra.mxu0 %v218
  %260 = vmatprep.subr.bf16.mxu0 0
  %261 = vmatpush1.bf16.msra.mxu0 %v219
  %262 = vmatprep.subr.bf16.mxu0 0
  %263 = vmatpush1.bf16.msra.mxu0 %v220
  %264 = vmatprep.subr.bf16.mxu0 0
  %265 = vmatpush1.bf16.msra.mxu0 %v221
  %266 = vmatprep.subr.bf16.mxu0 0
  %267 = vmatpush1.bf16.msra.mxu0 %v222
  %268 = vmatprep.subr.bf16.mxu0 0
  %269 = vmatpush1.bf16.msra.mxu0 %v223
  %270 = vmatprep.subr.bf16.mxu0 0
  %271 = vmatpush1.bf16.msra.mxu0 %v224
  %272 = vmatprep.subr.bf16.mxu0 0
  %273 = vmatpush1.bf16.msra.mxu0 %v225
  %274 = vmatprep.mubr.bf16.mxu0 %v115
  %275 = vmatmul.mubr.bf16.gmra.mrb[0].mxu0 %v114
  %v276 = vpop.f32.mrb[0].mxu0
  %v277 = vadd.f32 0.0, %v276
  %v278 = vpop.f32.mrb[0].mxu0
  %v279 = vpop.f32.mrb[0].mxu0
  %v280 = vadd.f32 0.0, %v279
  %v281 = vpop.f32.mrb[0].mxu0
  %282 = vmatprep.mubr.bf16.mxu0 %v117
  %283 = vmatmul.mubr.bf16.gmra.mrb[0].mxu0 %v116
  %v284 = vpop.f32.mrb[0].mxu0
  %v285 = vadd.f32 0.0, %v284
  %v286 = vpop.f32.mrb[0].mxu0
  %v287 = vpop.f32.mrb[0].mxu0
  %v288 = vadd.f32 0.0, %v287
  %v289 = vpop.f32.mrb[0].mxu0
  %290 = vmatprep.mubr.bf16.mxu0 %v119
  %291 = vmatmul.mubr.bf16.gmra.mrb[0].mxu0 %v118
  %v292 = vpop.f32.mrb[0].mxu0
  %v293 = vadd.f32 0.0, %v292
  %v294 = vpop.f32.mrb[0].mxu0
  %v295 = vpop.f32.mrb[0].mxu0
  %v296 = vadd.f32 0.0, %v295
  %v297 = vpop.f32.mrb[0].mxu0
  %298 = vmatprep.mubr.bf16.mxu0 %v121
  %299 = vmatmul.mubr.bf16.gmra.mrb[0].mxu0 %v120
  %v300 = vpop.f32.mrb[0].mxu0
  %v301 = vadd.f32 0.0, %v300
  %v302 = vpop.f32.mrb[0].mxu0
  %v303 = vpop.f32.mrb[0].mxu0
  %v304 = vadd.f32 0.0, %v303
  %v305 = vpop.f32.mrb[0].mxu0
  %306 = vmatprep.mubr.bf16.mxu0 %v123
  %307 = vmatmul.mubr.bf16.gmra.mrb[0].mxu0 %v122
  %v308 = vpop.f32.mrb[0].mxu0
  %v309 = vadd.f32 0.0, %v308
  %v310 = vpop.f32.mrb[0].mxu0
  %v311 = vpop.f32.mrb[0].mxu0
  %v312 = vadd.f32 0.0, %v311
  %v313 = vpop.f32.mrb[0].mxu0
  %314 = vmatprep.mubr.bf16.mxu0 %v125
  %315 = vmatmul.mubr.bf16.gmra.mrb[0].mxu0 %v124
  %v316 = vpop.f32.mrb[0].mxu0
  %v317 = vadd.f32 0.0, %v316
  %v318 = vpop.f32.mrb[0].mxu0
  %v319 = vpop.f32.mrb[0].mxu0
  %v320 = vadd.f32 0.0, %v319
  %v321 = vpop.f32.mrb[0].mxu0
  %322 = vmatprep.mubr.bf16.mxu0 %v127
  %323 = vmatmul.mubr.bf16.gmra.mrb[0].mxu0 %v126
  %v324 = vpop.f32.mrb[0].mxu0
  %v325 = vadd.f32 0.0, %v324
  %v326 = vpop.f32.mrb[0].mxu0
  %v327 = vpop.f32.mrb[0].mxu0
  %v328 = vadd.f32 0.0, %v327
  %v329 = vpop.f32.mrb[0].mxu0
  %330 = vmatprep.mubr.bf16.mxu0 %v129
  %331 = vmatmul.mubr.bf16.gmra.mrb[0].mxu0 %v128
  %v332 = vpop.f32.mrb[0].mxu0
  %v333 = vadd.f32 0.0, %v332
  %v334 = vpop.f32.mrb[0].mxu0
  %v335 = vpop.f32.mrb[0].mxu0
  %v336 = vadd.f32 0.0, %v335
  %v337 = vpop.f32.mrb[0].mxu0
  %338 = vdwg.mxu0
  %v339 = vld [vmem:[%s2] sm:$0x1]
  %v341 = vlaneseq
  %v342 = vshrl.u32 %v341, 7
  %v343 = vsub.s32 0, %v342
  %v344 = vrot.slane %v339, %v343
  %v346 = vmul.f32 %v277, %v344
  %v347 = vmul.f32 %v280, %v344
  %v348 = vmul.f32 %v285, %v344
  %v349 = vmul.f32 %v288, %v344
  %v350 = vmul.f32 %v293, %v344
  %v351 = vmul.f32 %v296, %v344
  %v352 = vmul.f32 %v301, %v344
  %v353 = vmul.f32 %v304, %v344
  %v354 = vmul.f32 %v309, %v344
  %v355 = vmul.f32 %v312, %v344
  %v356 = vmul.f32 %v317, %v344
  %v357 = vmul.f32 %v320, %v344
  %v358 = vmul.f32 %v325, %v344
  %v359 = vmul.f32 %v328, %v344
  %v360 = vmul.f32 %v333, %v344
  %v361 = vmul.f32 %v336, %v344
  %v362 = vld [vmem:[%s3] sm:$0x1]
  %v364 = vlaneseq
  %v365 = vshrl.u32 %v364, 7
  %v366 = vsub.s32 0, %v365
  %v367 = vrot.slane %v362, %v366
  %v369 = vadd.f32 %v346, %v367
  %v370 = vadd.f32 %v347, %v367
  %v371 = vadd.f32 %v348, %v367
  %v372 = vadd.f32 %v349, %v367
  %v373 = vadd.f32 %v350, %v367
  %v374 = vadd.f32 %v351, %v367
  %v375 = vadd.f32 %v352, %v367
  %v376 = vadd.f32 %v353, %v367
  %v377 = vadd.f32 %v354, %v367
  %v378 = vadd.f32 %v355, %v367
  %v379 = vadd.f32 %v356, %v367
  %v380 = vadd.f32 %v357, %v367
  %v381 = vadd.f32 %v358, %v367
  %v382 = vadd.f32 %v359, %v367
  %v383 = vadd.f32 %v360, %v367
  %v384 = vadd.f32 %v361, %v367
  %v385 = vmax.f32 %v369, 0.0
  %v386 = vmax.f32 %v370, 0.0
  %v387 = vmax.f32 %v371, 0.0
  %v388 = vmax.f32 %v372, 0.0
  %v389 = vmax.f32 %v373, 0.0
  %v390 = vmax.f32 %v374, 0.0
  %v391 = vmax.f32 %v375, 0.0
  %v392 = vmax.f32 %v376, 0.0
  %v393 = vmax.f32 %v377, 0.0
  %v394 = vmax.f32 %v378, 0.0
  %v395 = vmax.f32 %v379, 0.0
  %v396 = vmax.f32 %v380, 0.0
  %v397 = vmax.f32 %v381, 0.0
  %v398 = vmax.f32 %v382, 0.0
  %v399 = vmax.f32 %v383, 0.0
  %v400 = vmax.f32 %v384, 0.0
  %vm401 = vcmask 523264
  %402 = vst.msk [vmem:[%s4] sm:$0xff] %vm401, %v385
  %403 = vst.msk [vmem:[%s4 + $0x8] sm:$0xff] %vm401, %v386
  %404 = vst.msk [vmem:[%s4 + $0x10] sm:$0xff] %vm401, %v387
  %405 = vst.msk [vmem:[%s4 + $0x18] sm:$0xff] %vm401, %v388
  %406 = vst.msk [vmem:[%s4 + $0x20] sm:$0xff] %vm401, %v389
  %407 = vst.msk [vmem:[%s4 + $0x28] sm:$0xff] %vm401, %v390
  %408 = vst.msk [vmem:[%s4 + $0x30] sm:$0xff] %vm401, %v391
  %409 = vst.msk [vmem:[%s4 + $0x38] sm:$0xff] %vm401, %v392
  %410 = vst.msk [vmem:[%s4 + $0x40] sm:$0xff] %vm401, %v393
  %411 = vst.msk [vmem:[%s4 + $0x48] sm:$0xff] %vm401, %v394
  %412 = vst.msk [vmem:[%s4 + $0x50] sm:$0xff] %vm401, %v395
  %413 = vst.msk [vmem:[%s4 + $0x58] sm:$0xff] %vm401, %v396
  %414 = vst.msk [vmem:[%s4 + $0x60] sm:$0xff] %vm401, %v397
  %415 = vst.msk [vmem:[%s4 + $0x68] sm:$0xff] %vm401, %v398
  %416 = vst.msk [vmem:[%s4 + $0x70] sm:$0xff] %vm401, %v399
  %417 = vst.msk [vmem:[%s4 + $0x78] sm:$0xff] %vm401, %v400
  // Predicated region
  $region18: #{ovt_forward.15} parent=0 // pred_check
    _
  $region19: #{ovt_forward.15} parent=0 // pred_check_branch
    %419 = sbr.rel (0) target = $region21
  $region20: #{ovt_forward.15} parent=0 // pred_region
    _
  $region21: #{ovt_forward.15} parent=0 // pred_fallthru
    _
  // Predicated region
  $region22: #{ovt_forward.15} parent=0 // pred_check
    _
  $region23: #{ovt_forward.15} parent=0 // pred_check_branch
    %421 = sbr.rel (0) target = $region25
  $region24: #{ovt_forward.15} parent=0 // pred_region
    _
  $region25: #{ovt_forward.15} parent=0 // pred_fallthru
    _

// kernel: ovt_forward.17
$region0: #{ovt_forward.17}
  #allocation0 [shape = 'u32[]', space=smem, size = 0x4, offset = 0x4, fixed_abs, tag = 'smem constant byte address 0x4 - core index']
  #allocation1 [shape = 'u32[144,128]{1,0:T(1,128)}', space=vmem, size = 0x12000, scoped, tag = 'internal scratch']
  %s0 = inlined_call_operand.vmem [shape: bf16[128,64], index: 0, kind: input, shape index: {}]
  %s1 = inlined_call_operand.vmem [shape: bf16[64,256], index: 1, kind: input, shape index: {}]
  %s2 = inlined_call_operand.vmem [shape: f32[1,256], index: 2, kind: input, shape index: {}]
  %s3 = inlined_call_operand.vmem [shape: f32[1,256], index: 3, kind: input, shape index: {}]
  %s4 = inlined_call_operand.vmem [shape: f32[128,256], index: 4, kind: input, shape index: {}]
  %s5 = inlined_call_operand.vmem [shape: f32[128,256], index: 5, kind: output, shape index: {}]
  %s6 = sld [smem:[#allocation0]]
  $region30: #{ovt_forward.17} parent=0
    _
  %s8 = ssub.s32 1, %s6
  %s9 = scalar_select 0, %s8, %s6
  // Predicated region
  $region2: #{ovt_forward.17} parent=0 // pred_check
    _
  $region3: #{ovt_forward.17} parent=0 // pred_check_branch
    %11 = sbr.rel (0) target = $region5
  $region4: #{ovt_forward.17} parent=0 // pred_region
    _
  $region5: #{ovt_forward.17} parent=0 // pred_fallthru
    _
  // Predicated region
  $region6: #{ovt_forward.17} parent=0 // pred_check
    _
  $region7: #{ovt_forward.17} parent=0 // pred_check_branch
    %13 = sbr.rel (0) target = $region9
  $region8: #{ovt_forward.17} parent=0 // pred_region
    _
  $region9: #{ovt_forward.17} parent=0 // pred_fallthru
    _
  // Predicated region
  $region10: #{ovt_forward.17} parent=0 // pred_check
    _
  $region11: #{ovt_forward.17} parent=0 // pred_check_branch
    %15 = sbr.rel (0) target = $region13
  $region12: #{ovt_forward.17} parent=0 // pred_region
    _
  $region13: #{ovt_forward.17} parent=0 // pred_fallthru
    _
  // Predicated region
  $region14: #{ovt_forward.17} parent=0 // pred_check
    _
  $region15: #{ovt_forward.17} parent=0 // pred_check_branch
    %17 = sbr.rel (0) target = $region17
  $region16: #{ovt_forward.17} parent=0 // pred_region
    _
  $region17: #{ovt_forward.17} parent=0 // pred_fallthru
    _
  // Predicated region
  $region18: #{ovt_forward.17} parent=0 // pred_check
    _
  $region19: #{ovt_forward.17} parent=0 // pred_check_branch
    %19 = sbr.rel (0) target = $region21
  $region20: #{ovt_forward.17} parent=0 // pred_region
    _
  $region21: #{ovt_forward.17} parent=0 // pred_fallthru
    _
  %v21 = vld [vmem:[%s0] sm:$0xf]
  %v22 = vld [vmem:[%s0 + $0x4] sm:$0xf]
  %v23 = vld [vmem:[%s0 + $0x8] sm:$0xf]
  %v24 = vld [vmem:[%s0 + $0xc] sm:$0xf]
  %v25 = vld [vmem:[%s0 + $0x10] sm:$0xf]
  %v26 = vld [vmem:[%s0 + $0x14] sm:$0xf]
  %v27 = vld [vmem:[%s0 + $0x18] sm:$0xf]
  %v28 = vld [vmem:[%s0 + $0x1c] sm:$0xf]
  %v29 = vld [vmem:[%s0 + $0x20] sm:$0xf]
  %v30 = vld [vmem:[%s0 + $0x24] sm:$0xf]
  %v31 = vld [vmem:[%s0 + $0x28] sm:$0xf]
  %v32 = vld [vmem:[%s0 + $0x2c] sm:$0xf]
  %v33 = vld [vmem:[%s0 + $0x30] sm:$0xf]
  %v34 = vld [vmem:[%s0 + $0x34] sm:$0xf]
  %v35 = vld [vmem:[%s0 + $0x38] sm:$0xf]
  %v36 = vld [vmem:[%s0 + $0x3c] sm:$0xf]
  %v37 = vld [vmem:[%s1] sm:$0xff]
  %v38 = vld [vmem:[%s1 + $0x8] sm:$0xff]
  %v39 = vld [vmem:[%s1 + $0x10] sm:$0xff]
  %v40 = vld [vmem:[%s1 + $0x18] sm:$0xff]
  %v41 = vld [vmem:[%s1 + $0x20] sm:$0xff]
  %v42 = vld [vmem:[%s1 + $0x28] sm:$0xff]
  %v43 = vld [vmem:[%s1 + $0x30] sm:$0xff]
  %v44 = vld [vmem:[%s1 + $0x38] sm:$0xff]
  %v61 = vunpack.c.l.b16 %v21
  %v62 = vunpack.c.l.b16 %v22
  %v63 = vunpack.c.l.b16 %v23
  %v64 = vunpack.c.l.b16 %v24
  %v65 = vunpack.c.l.b16 %v25
  %v66 = vunpack.c.l.b16 %v26
  %v67 = vunpack.c.l.b16 %v27
  %v68 = vunpack.c.l.b16 %v28
  %v69 = vunpack.c.l.b16 %v29
  %v70 = vunpack.c.l.b16 %v30
  %v71 = vunpack.c.l.b16 %v31
  %v72 = vunpack.c.l.b16 %v32
  %v73 = vunpack.c.l.b16 %v33
  %v74 = vunpack.c.l.b16 %v34
  %v75 = vunpack.c.l.b16 %v35
  %v76 = vunpack.c.l.b16 %v36
  %v77 = vpack.c.b16 %v62, %v61
  %v78 = vpack.c.b16 %v64, %v63
  %v79 = vpack.c.b16 %v66, %v65
  %v80 = vpack.c.b16 %v68, %v67
  %v81 = vpack.c.b16 %v70, %v69
  %v82 = vpack.c.b16 %v72, %v71
  %v83 = vpack.c.b16 %v74, %v73
  %v84 = vpack.c.b16 %v76, %v75
  %v93 = vunpack.c.l.b16 %v37
  %v94 = vunpack.c.h.b16 %v37
  %v95 = vunpack.c.l.b16 %v38
  %v96 = vunpack.c.h.b16 %v38
  %v97 = vunpack.c.l.b16 %v39
  %v98 = vunpack.c.h.b16 %v39
  %v99 = vunpack.c.l.b16 %v40
  %v100 = vunpack.c.h.b16 %v40
  %v101 = vunpack.c.l.b16 %v41
  %v102 = vunpack.c.h.b16 %v41
  %v103 = vunpack.c.l.b16 %v42
  %v104 = vunpack.c.h.b16 %v42
  %v105 = vunpack.c.l.b16 %v43
  %v106 = vunpack.c.h.b16 %v43
  %v107 = vunpack.c.l.b16 %v44
  %v108 = vunpack.c.h.b16 %v44
  %v109 = vpack.c.b16 %v95, %v93
  %v110 = vpack.c.b16 %v96, %v94
  %v111 = vpack.c.b16 %v99, %v97
  %v112 = vpack.c.b16 %v100, %v98
  %v113 = vpack.c.b16 %v103, %v101
  %v114 = vpack.c.b16 %v104, %v102
  %v115 = vpack.c.b16 %v107, %v105
  %v116 = vpack.c.b16 %v108, %v106
  %vm125 = vcmask 523264
  %v127 = vsel %vm125, %v77, 0
  %v130 = vsel %vm125, %v78, 0
  %v133 = vsel %vm125, %v79, 0
  %v136 = vsel %vm125, %v80, 0
  %v139 = vsel %vm125, %v81, 0
  %v142 = vsel %vm125, %v82, 0
  %v145 = vsel %vm125, %v83, 0
  %v148 = vsel %vm125, %v84, 0
  %150 = vmatprep.subr.bf16.mxu0 %v110
  %151 = vmatpush1.bf16.msra.mxu0 %v109
  %152 = vmatprep.subr.bf16.mxu0 %v112
  %153 = vmatpush1.bf16.msra.mxu0 %v111
  %154 = vmatprep.subr.bf16.mxu0 %v114
  %155 = vmatpush1.bf16.msra.mxu0 %v113
  %156 = vmatprep.subr.bf16.mxu0 %v116
  %157 = vmatpush1.bf16.msra.mxu0 %v115
  %158 = vmatprep.subr.bf16.mxu0 0
  %159 = vmatpush1.bf16.msra.mxu0 0
  %160 = vmatprep.subr.bf16.mxu0 0
  %161 = vmatpush1.bf16.msra.mxu0 0
  %162 = vmatprep.subr.bf16.mxu0 0
  %163 = vmatpush1.bf16.msra.mxu0 0
  %164 = vmatprep.subr.bf16.mxu0 0
  %165 = vmatpush1.bf16.msra.mxu0 0
  %166 = vmatprep.subr.bf16.mxu0 0
  %167 = vmatpush1.bf16.msra.mxu0 0
  %168 = vmatprep.subr.bf16.mxu0 0
  %169 = vmatpush1.bf16.msra.mxu0 0
  %170 = vmatprep.subr.bf16.mxu0 0
  %171 = vmatpush1.bf16.msra.mxu0 0
  %172 = vmatprep.subr.bf16.mxu0 0
  %173 = vmatpush1.bf16.msra.mxu0 0
  %174 = vmatprep.subr.bf16.mxu0 0
  %175 = vmatpush1.bf16.msra.mxu0 0
  %176 = vmatprep.subr.bf16.mxu0 0
  %177 = vmatpush1.bf16.msra.mxu0 0
  %178 = vmatprep.subr.bf16.mxu0 0
  %179 = vmatpush1.bf16.msra.mxu0 0
  %180 = vmatprep.subr.bf16.mxu0 0
  %181 = vmatpush1.bf16.msra.mxu0 0
  %182 = vmatprep.mubr.bf16.mxu0 0
  %183 = vmatmul.mubr.bf16.gmra.mrb[0].mxu0 %v127
  %v184 = vpop.f32.mrb[0].mxu0
  %v185 = vadd.f32 0.0, %v184
  %v186 = vpop.f32.mrb[0].mxu0
  %v187 = vadd.f32 0.0, %v186
  %v188 = vpop.f32.mrb[0].mxu0
  %v189 = vadd.f32 0.0, %v188
  %v190 = vpop.f32.mrb[0].mxu0
  %v191 = vadd.f32 0.0, %v190
  %192 = vmatprep.mubr.bf16.mxu0 0
  %193 = vmatmul.mubr.bf16.gmra.mrb[0].mxu0 %v130
  %v194 = vpop.f32.mrb[0].mxu0
  %v195 = vadd.f32 0.0, %v194
  %v196 = vpop.f32.mrb[0].mxu0
  %v197 = vadd.f32 0.0, %v196
  %v198 = vpop.f32.mrb[0].mxu0
  %v199 = vadd.f32 0.0, %v198
  %v200 = vpop.f32.mrb[0].mxu0
  %v201 = vadd.f32 0.0, %v200
  %202 = vmatprep.mubr.bf16.mxu0 0
  %203 = vmatmul.mubr.bf16.gmra.mrb[0].mxu0 %v133
  %v204 = vpop.f32.mrb[0].mxu0
  %v205 = vadd.f32 0.0, %v204
  %v206 = vpop.f32.mrb[0].mxu0
  %v207 = vadd.f32 0.0, %v206
  %v208 = vpop.f32.mrb[0].mxu0
  %v209 = vadd.f32 0.0, %v208
  %v210 = vpop.f32.mrb[0].mxu0
  %v211 = vadd.f32 0.0, %v210
  %212 = vmatprep.mubr.bf16.mxu0 0
  %213 = vmatmul.mubr.bf16.gmra.mrb[0].mxu0 %v136
  %v214 = vpop.f32.mrb[0].mxu0
  %v215 = vadd.f32 0.0, %v214
  %v216 = vpop.f32.mrb[0].mxu0
  %v217 = vadd.f32 0.0, %v216
  %v218 = vpop.f32.mrb[0].mxu0
  %v219 = vadd.f32 0.0, %v218
  %v220 = vpop.f32.mrb[0].mxu0
  %v221 = vadd.f32 0.0, %v220
  %222 = vmatprep.mubr.bf16.mxu0 0
  %223 = vmatmul.mubr.bf16.gmra.mrb[0].mxu0 %v139
  %v224 = vpop.f32.mrb[0].mxu0
  %v225 = vadd.f32 0.0, %v224
  %v226 = vpop.f32.mrb[0].mxu0
  %v227 = vadd.f32 0.0, %v226
  %v228 = vpop.f32.mrb[0].mxu0
  %v229 = vadd.f32 0.0, %v228
  %v230 = vpop.f32.mrb[0].mxu0
  %v231 = vadd.f32 0.0, %v230
  %232 = vmatprep.mubr.bf16.mxu0 0
  %233 = vmatmul.mubr.bf16.gmra.mrb[0].mxu0 %v142
  %v234 = vpop.f32.mrb[0].mxu0
  %v235 = vadd.f32 0.0, %v234
  %v236 = vpop.f32.mrb[0].mxu0
  %v237 = vadd.f32 0.0, %v236
  %v238 = vpop.f32.mrb[0].mxu0
  %v239 = vadd.f32 0.0, %v238
  %v240 = vpop.f32.mrb[0].mxu0
  %v241 = vadd.f32 0.0, %v240
  %242 = vmatprep.mubr.bf16.mxu0 0
  %243 = vmatmul.mubr.bf16.gmra.mrb[0].mxu0 %v145
  %v244 = vpop.f32.mrb[0].mxu0
  %v245 = vadd.f32 0.0, %v244
  %v246 = vpop.f32.mrb[0].mxu0
  %v247 = vadd.f32 0.0, %v246
  %v248 = vpop.f32.mrb[0].mxu0
  %v249 = vadd.f32 0.0, %v248
  %v250 = vpop.f32.mrb[0].mxu0
  %v251 = vadd.f32 0.0, %v250
  %252 = vmatprep.mubr.bf16.mxu0 0
  %253 = vmatmul.mubr.bf16.gmra.mrb[0].mxu0 %v148
  %v254 = vpop.f32.mrb[0].mxu0
  %v255 = vadd.f32 0.0, %v254
  %v256 = vpop.f32.mrb[0].mxu0
  %v257 = vadd.f32 0.0, %v256
  %v258 = vpop.f32.mrb[0].mxu0
  %v259 = vadd.f32 0.0, %v258
  %v260 = vpop.f32.mrb[0].mxu0
  %v261 = vadd.f32 0.0, %v260
  %262 = vdwg.mxu0
  %v263 = vld [vmem:[%s2] sm:$0x3]
  %v265 = vlaneseq
  %v266 = vshrl.u32 %v265, 7
  %v267 = vsub.s32 0, %v266
  %v268 = vrot.slane %v263, %v267
  %v269 = vlaneseq
  %v270 = vshrl.u32 %v269, 7
  %v271 = vsub.s32 1, %v270
  %v272 = vrot.slane %v263, %v271
  %v275 = vmul.f32 %v185, %v268
  %v276 = vmul.f32 %v187, %v272
  %v277 = vmul.f32 %v189, %v268
  %v278 = vmul.f32 %v191, %v272
  %v279 = vmul.f32 %v195, %v268
  %v280 = vmul.f32 %v197, %v272
  %v281 = vmul.f32 %v199, %v268
  %v282 = vmul.f32 %v201, %v272
  %v283 = vmul.f32 %v205, %v268
  %v284 = vmul.f32 %v207, %v272
  %v285 = vmul.f32 %v209, %v268
  %v286 = vmul.f32 %v211, %v272
  %v287 = vmul.f32 %v215, %v268
  %v288 = vmul.f32 %v217, %v272
  %v289 = vmul.f32 %v219, %v268
  %v290 = vmul.f32 %v221, %v272
  %v291 = vmul.f32 %v225, %v268
  %v292 = vmul.f32 %v227, %v272
  %v293 = vmul.f32 %v229, %v268
  %v294 = vmul.f32 %v231, %v272
  %v295 = vmul.f32 %v235, %v268
  %v296 = vmul.f32 %v237, %v272
  %v297 = vmul.f32 %v239, %v268
  %v298 = vmul.f32 %v241, %v272
  %v299 = vmul.f32 %v245, %v268
  %v300 = vmul.f32 %v247, %v272
  %v301 = vmul.f32 %v249, %v268
  %v302 = vmul.f32 %v251, %v272
  %v303 = vmul.f32 %v255, %v268
  %v304 = vmul.f32 %v257, %v272
  %v305 = vmul.f32 %v259, %v268
  %v306 = vmul.f32 %v261, %v272
  %v307 = vld [vmem:[%s3] sm:$0x3]
  %v309 = vlaneseq
  %v310 = vshrl.u32 %v309, 7
  %v311 = vsub.s32 0, %v310
  %v312 = vrot.slane %v307, %v311
  %v313 = vlaneseq
  %v314 = vshrl.u32 %v313, 7
  %v315 = vsub.s32 1, %v314
  %v316 = vrot.slane %v307, %v315
  %v319 = vadd.f32 %v275, %v312
  %v320 = vadd.f32 %v276, %v316
  %v321 = vadd.f32 %v277, %v312
  %v322 = vadd.f32 %v278, %v316
  %v323 = vadd.f32 %v279, %v312
  %v324 = vadd.f32 %v280, %v316
  %v325 = vadd.f32 %v281, %v312
  %v326 = vadd.f32 %v282, %v316
  %v327 = vadd.f32 %v283, %v312
  %v328 = vadd.f32 %v284, %v316
  %v329 = vadd.f32 %v285, %v312
  %v330 = vadd.f32 %v286, %v316
  %v331 = vadd.f32 %v287, %v312
  %v332 = vadd.f32 %v288, %v316
  %v333 = vadd.f32 %v289, %v312
  %v334 = vadd.f32 %v290, %v316
  %v335 = vadd.f32 %v291, %v312
  %v336 = vadd.f32 %v292, %v316
  %v337 = vadd.f32 %v293, %v312
  %v338 = vadd.f32 %v294, %v316
  %v339 = vadd.f32 %v295, %v312
  %v340 = vadd.f32 %v296, %v316
  %v341 = vadd.f32 %v297, %v312
  %v342 = vadd.f32 %v298, %v316
  %v343 = vadd.f32 %v299, %v312
  %v344 = vadd.f32 %v300, %v316
  %v345 = vadd.f32 %v301, %v312
  %v346 = vadd.f32 %v302, %v316
  %v347 = vadd.f32 %v303, %v312
  %v348 = vadd.f32 %v304, %v316
  %v349 = vadd.f32 %v305, %v312
  %v350 = vadd.f32 %v306, %v316
  %v351 = vld [vmem:[%s4] sm:$0xff]
  %v352 = vld [vmem:[%s4 + $0x8] sm:$0xff]
  %v353 = vld [vmem:[%s4 + $0x10] sm:$0xff]
  %v354 = vld [vmem:[%s4 + $0x18] sm:$0xff]
  %v355 = vld [vmem:[%s4 + $0x20] sm:$0xff]
  %v356 = vld [vmem:[%s4 + $0x28] sm:$0xff]
  %v357 = vld [vmem:[%s4 + $0x30] sm:$0xff]
  %v358 = vld [vmem:[%s4 + $0x38] sm:$0xff]
  %v359 = vld [vmem:[%s4 + $0x40] sm:$0xff]
  %v360 = vld [vmem:[%s4 + $0x48] sm:$0xff]
  %v361 = vld [vmem:[%s4 + $0x50] sm:$0xff]
  %v362 = vld [vmem:[%s4 + $0x58] sm:$0xff]
  %v363 = vld [vmem:[%s4 + $0x60] sm:$0xff]
  %v364 = vld [vmem:[%s4 + $0x68] sm:$0xff]
  %v365 = vld [vmem:[%s4 + $0x70] sm:$0xff]
  %v366 = vld [vmem:[%s4 + $0x78] sm:$0xff]
  %v367 = vld [vmem:[%s4 + $0x80] sm:$0xff]
  %v368 = vld [vmem:[%s4 + $0x88] sm:$0xff]
  %v369 = vld [vmem:[%s4 + $0x90] sm:$0xff]
  %v370 = vld [vmem:[%s4 + $0x98] sm:$0xff]
  %v371 = vld [vmem:[%s4 + $0xa0] sm:$0xff]
  %v372 = vld [vmem:[%s4 + $0xa8] sm:$0xff]
  %v373 = vld [vmem:[%s4 + $0xb0] sm:$0xff]
  %v374 = vld [vmem:[%s4 + $0xb8] sm:$0xff]
  %v375 = vld [vmem:[%s4 + $0xc0] sm:$0xff]
  %v376 = vld [vmem:[%s4 + $0xc8] sm:$0xff]
  %v377 = vld [vmem:[%s4 + $0xd0] sm:$0xff]
  %v378 = vld [vmem:[%s4 + $0xd8] sm:$0xff]
  %v379 = vld [vmem:[%s4 + $0xe0] sm:$0xff]
  %v380 = vld [vmem:[%s4 + $0xe8] sm:$0xff]
  %v381 = vld [vmem:[%s4 + $0xf0] sm:$0xff]
  %v382 = vld [vmem:[%s4 + $0xf8] sm:$0xff]
  %v383 = vadd.f32 %v319, %v351
  %v384 = vadd.f32 %v320, %v352
  %v385 = vadd.f32 %v321, %v353
  %v386 = vadd.f32 %v322, %v354
  %v387 = vadd.f32 %v323, %v355
  %v388 = vadd.f32 %v324, %v356
  %v389 = vadd.f32 %v325, %v357
  %v390 = vadd.f32 %v326, %v358
  %v391 = vadd.f32 %v327, %v359
  %v392 = vadd.f32 %v328, %v360
  %v393 = vadd.f32 %v329, %v361
  %v394 = vadd.f32 %v330, %v362
  %v395 = vadd.f32 %v331, %v363
  %v396 = vadd.f32 %v332, %v364
  %v397 = vadd.f32 %v333, %v365
  %v398 = vadd.f32 %v334, %v366
  %v399 = vadd.f32 %v335, %v367
  %v400 = vadd.f32 %v336, %v368
  %v401 = vadd.f32 %v337, %v369
  %v402 = vadd.f32 %v338, %v370
  %v403 = vadd.f32 %v339, %v371
  %v404 = vadd.f32 %v340, %v372
  %v405 = vadd.f32 %v341, %v373
  %v406 = vadd.f32 %v342, %v374
  %v407 = vadd.f32 %v343, %v375
  %v408 = vadd.f32 %v344, %v376
  %v409 = vadd.f32 %v345, %v377
  %v410 = vadd.f32 %v346, %v378
  %v411 = vadd.f32 %v347, %v379
  %v412 = vadd.f32 %v348, %v380
  %v413 = vadd.f32 %v349, %v381
  %v414 = vadd.f32 %v350, %v382
  %v415 = vmax.f32 %v383, 0.0
  %v416 = vmax.f32 %v384, 0.0
  %v417 = vmax.f32 %v385, 0.0
  %v418 = vmax.f32 %v386, 0.0
  %v419 = vmax.f32 %v387, 0.0
  %v420 = vmax.f32 %v388, 0.0
  %v421 = vmax.f32 %v389, 0.0
  %v422 = vmax.f32 %v390, 0.0
  %v423 = vmax.f32 %v391, 0.0
  %v424 = vmax.f32 %v392, 0.0
  %v425 = vmax.f32 %v393, 0.0
  %v426 = vmax.f32 %v394, 0.0
  %v427 = vmax.f32 %v395, 0.0
  %v428 = vmax.f32 %v396, 0.0
  %v429 = vmax.f32 %v397, 0.0
  %v430 = vmax.f32 %v398, 0.0
  %v431 = vmax.f32 %v399, 0.0
  %v432 = vmax.f32 %v400, 0.0
  %v433 = vmax.f32 %v401, 0.0
  %v434 = vmax.f32 %v402, 0.0
  %v435 = vmax.f32 %v403, 0.0
  %v436 = vmax.f32 %v404, 0.0
  %v437 = vmax.f32 %v405, 0.0
  %v438 = vmax.f32 %v406, 0.0
  %v439 = vmax.f32 %v407, 0.0
  %v440 = vmax.f32 %v408, 0.0
  %v441 = vmax.f32 %v409, 0.0
  %v442 = vmax.f32 %v410, 0.0
  %v443 = vmax.f32 %v411, 0.0
  %v444 = vmax.f32 %v412, 0.0
  %v445 = vmax.f32 %v413, 0.0
  %v446 = vmax.f32 %v414, 0.0
  %447 = vst [vmem:[%s5] sm:$0xff] %v415
  %448 = vst [vmem:[%s5 + $0x8] sm:$0xff] %v416
  %449 = vst [vmem:[%s5 + $0x10] sm:$0xff] %v417
  %450 = vst [vmem:[%s5 + $0x18] sm:$0xff] %v418
  %451 = vst [vmem:[%s5 + $0x20] sm:$0xff] %v419
  %452 = vst [vmem:[%s5 + $0x28] sm:$0xff] %v420
  %453 = vst [vmem:[%s5 + $0x30] sm:$0xff] %v421
  %454 = vst [vmem:[%s5 + $0x38] sm:$0xff] %v422
  %455 = vst [vmem:[%s5 + $0x40] sm:$0xff] %v423
  %456 = vst [vmem:[%s5 + $0x48] sm:$0xff] %v424
  %457 = vst [vmem:[%s5 + $0x50] sm:$0xff] %v425
  %458 = vst [vmem:[%s5 + $0x58] sm:$0xff] %v426
  %459 = vst [vmem:[%s5 + $0x60] sm:$0xff] %v427
  %460 = vst [vmem:[%s5 + $0x68] sm:$0xff] %v428
  %461 = vst [vmem:[%s5 + $0x70] sm:$0xff] %v429
  %462 = vst [vmem:[%s5 + $0x78] sm:$0xff] %v430
  %463 = vst [vmem:[%s5 + $0x80] sm:$0xff] %v431
  %464 = vst [vmem:[%s5 + $0x88] sm:$0xff] %v432
  %465 = vst [vmem:[%s5 + $0x90] sm:$0xff] %v433
  %466 = vst [vmem:[%s5 + $0x98] sm:$0xff] %v434
  %467 = vst [vmem:[%s5 + $0xa0] sm:$0xff] %v435
  %468 = vst [vmem:[%s5 + $0xa8] sm:$0xff] %v436
  %469 = vst [vmem:[%s5 + $0xb0] sm:$0xff] %v437
  %470 = vst [vmem:[%s5 + $0xb8] sm:$0xff] %v438
  %471 = vst [vmem:[%s5 + $0xc0] sm:$0xff] %v439
  %472 = vst [vmem:[%s5 + $0xc8] sm:$0xff] %v440
  %473 = vst [vmem:[%s5 + $0xd0] sm:$0xff] %v441
  %474 = vst [vmem:[%s5 + $0xd8] sm:$0xff] %v442
  %475 = vst [vmem:[%s5 + $0xe0] sm:$0xff] %v443
  %476 = vst [vmem:[%s5 + $0xe8] sm:$0xff] %v444
  %477 = vst [vmem:[%s5 + $0xf0] sm:$0xff] %v445
  %478 = vst [vmem:[%s5 + $0xf8] sm:$0xff] %v446
  // Predicated region
  $region22: #{ovt_forward.17} parent=0 // pred_check
    _
  $region23: #{ovt_forward.17} parent=0 // pred_check_branch
    %480 = sbr.rel (0) target = $region25
  $region24: #{ovt_forward.17} parent=0 // pred_region
    _
  $region25: #{ovt_forward.17} parent=0 // pred_fallthru
    _
  // Predicated region
  $region26: #{ovt_forward.17} parent=0 // pred_check
    _
  $region27: #{ovt_forward.17} parent=0 // pred_check_branch
    %482 = sbr.rel (0) target = $region29
  $region28: #{ovt_forward.17} parent=0 // pred_region
    _
  $region29: #{ovt_forward.17} parent=0 // pred_fallthru
    _

// kernel: ovt_forward.21
$region0: #{ovt_forward.21}
  #allocation0 [shape = 'u32[]', space=smem, size = 0x4, offset = 0x4, fixed_abs, tag = 'smem constant byte address 0x4 - core index']
  #allocation1 [shape = 'u32[144,128]{1,0:T(1,128)}', space=vmem, size = 0x12000, scoped, tag = 'internal scratch']
  %s0 = inlined_call_operand.vmem [shape: bf16[2,256,64], index: 0, kind: input, shape index: {}]
  %s1 = inlined_call_operand.vmem [shape: bf16[176,256], index: 1, kind: input, shape index: {}]
  %s2 = inlined_call_operand.vmem [shape: f32[176,1], index: 2, kind: input, shape index: {}]
  %s3 = inlined_call_operand.vmem [shape: bf16[256,384], index: 3, kind: input, shape index: {}]
  %s4 = inlined_call_operand.vmem [shape: f32[1,384], index: 4, kind: input, shape index: {}]
  %s5 = inlined_call_operand.vmem [shape: f32[2,176,256], index: 5, kind: output, shape index: {0}]
  %s6 = inlined_call_operand.vmem [shape: f32[2,1,384], index: 6, kind: output, shape index: {1}]
  %7 = xla_tuple %s5, %s6
  %s8 = sld [smem:[#allocation0]]
  $region61: #{ovt_forward.21} parent=0
    _
  %s10 = ssub.s32 1, %s8
  %s11 = scalar_select 0, %s10, %s8
  loop: start=0, step=1, limit=4
  $region2: #{ovt_forward.21} parent=0 // loop_pre_header
    _
  $region3: #{ovt_forward.21} parent=0 // loop_header
    %s13 = sphi 0, %s17
    %p14 = scmp.ge.s32.totalorder %s13, 4
    %s23 = sphi 0, %s25
    %s26 = sphi 0, %s23
    %s27 = sphi 0, %s26
    %s43 = sphi 0, %s27
    %s47 = sphi 0, %s47
    %s49 = sphi 0, %s47
    %s50 = sphi 0, %s49
    %s64 = sphi 0, %s50
    %s68 = sphi 0, %s68
    %s70 = sphi 0, %s68
    %s71 = sphi 0, %s70
    %s85 = sphi 0, %s71
    %s89 = sphi 0, %s89
    %s91 = sphi 0, %s89
    %s92 = sphi 0, %s91
    %s106 = sphi 0, %s92
    %s110 = sphi 0, %s110
    %s112 = sphi 0, %s110
    %s113 = sphi 0, %s112
    %s127 = sphi 0, %s113
    %s133 = sphi 0, %s135
    %s136 = sphi 0, %s133
    %s137 = sphi 0, %s136
    %s153 = sphi 0, %s137
    %s159 = sphi 0, %s161
    %s162 = sphi 0, %s159
    %s163 = sphi 0, %s162
    %s179 = sphi 0, %s163
  $region4: #{ovt_forward.21} parent=0 // loop_header_branch
    %16 = sbr.rel (%p14) target = $region8
  $region5: #{ovt_forward.21} parent=0 // loop_body
    %s18 = ssub.s32 %s13, 1
    %s19 = ssub.s32 %s13, 2
    %s20 = sadd.s32 %s13, 1
    %s21 = ssub.s32 %s13, %s20
    %p22 = scmp.eq.s32.totalorder %s21, 0
    %s24 = sadd.s32 %s23, 1
    %s25 = scalar_select %p22, %s23, %s24
    %p28 = pneg %p22
    %p29 = scmp.eq.s32.totalorder %s13, 1
    %p30 = por %p28, %p29
    %p31 = scmp.ne.s32.totalorder %s23, %s26
    %p32 = scmp.eq.s32.totalorder %s13, 0
    %p33 = por %p31, %p32
    %p34 = scmp.ne.s32.totalorder %s23, %s26
    %p35 = scmp.eq.s32.totalorder %s18, 1
    %p36 = por %p34, %p35
    %p37 = scmp.ne.s32.totalorder %s26, %s27
    %p38 = scmp.eq.s32.totalorder %s18, 0
    %p39 = por %p37, %p38
    %p40 = scmp.ne.s32.totalorder %s26, %s27
    %p41 = scmp.eq.s32.totalorder %s19, 1
    %p42 = por %p40, %p41
    %p44 = scmp.ne.s32.totalorder %s27, %s43
    %p45 = scmp.eq.s32.totalorder %s19, 0
    %p46 = por %p44, %p45
    %s48 = sadd.s32 %s47, 1
    %p51 = scmp.eq.s32.totalorder %s13, 1
    %p52 = scmp.ne.s32.totalorder %s47, %s49
    %p53 = scmp.eq.s32.totalorder %s13, 0
    %p54 = por %p52, %p53
    %p55 = scmp.ne.s32.totalorder %s47, %s49
    %p56 = scmp.eq.s32.totalorder %s18, 1
    %p57 = por %p55, %p56
    %p58 = scmp.ne.s32.totalorder %s49, %s50
    %p59 = scmp.eq.s32.totalorder %s18, 0
    %p60 = por %p58, %p59
    %p61 = scmp.ne.s32.totalorder %s49, %s50
    %p62 = scmp.eq.s32.totalorder %s19, 1
    %p63 = por %p61, %p62
    %p65 = scmp.ne.s32.totalorder %s50, %s64
    %p66 = scmp.eq.s32.totalorder %s19, 0
    %p67 = por %p65, %p66
    %s69 = sadd.s32 %s68, 1
    %p72 = scmp.eq.s32.totalorder %s13, 1
    %p73 = scmp.ne.s32.totalorder %s68, %s70
    %p74 = scmp.eq.s32.totalorder %s13, 0
    %p75 = por %p73, %p74
    %p76 = scmp.ne.s32.totalorder %s68, %s70
    %p77 = scmp.eq.s32.totalorder %s18, 1
    %p78 = por %p76, %p77
    %p79 = scmp.ne.s32.totalorder %s70, %s71
    %p80 = scmp.eq.s32.totalorder %s18, 0
    %p81 = por %p79, %p80
    %p82 = scmp.ne.s32.totalorder %s70, %s71
    %p83 = scmp.eq.s32.totalorder %s19, 1
    %p84 = por %p82, %p83
    %p86 = scmp.ne.s32.totalorder %s71, %s85
    %p87 = scmp.eq.s32.totalorder %s19, 0
    %p88 = por %p86, %p87
    %s90 = sadd.s32 %s89, 1
    %p93 = scmp.eq.s32.totalorder %s13, 1
    %p94 = scmp.ne.s32.totalorder %s89, %s91
    %p95 = scmp.eq.s32.totalorder %s13, 0
    %p96 = por %p94, %p95
    %p97 = scmp.ne.s32.totalorder %s89, %s91
    %p98 = scmp.eq.s32.totalorder %s18, 1
    %p99 = por %p97, %p98
    %p100 = scmp.ne.s32.totalorder %s91, %s92
    %p101 = scmp.eq.s32.totalorder %s18, 0
    %p102 = por %p100, %p101
    %p103 = scmp.ne.s32.totalorder %s91, %s92
    %p104 = scmp.eq.s32.totalorder %s19, 1
    %p105 = por %p103, %p104
    %p107 = scmp.ne.s32.totalorder %s92, %s106
    %p108 = scmp.eq.s32.totalorder %s19, 0
    %p109 = por %p107, %p108
    %s111 = sadd.s32 %s110, 1
    %p114 = scmp.eq.s32.totalorder %s13, 1
    %p115 = scmp.ne.s32.totalorder %s110, %s112
    %p116 = scmp.eq.s32.totalorder %s13, 0
    %p117 = por %p115, %p116
    %p118 = scmp.ne.s32.totalorder %s110, %s112
    %p119 = scmp.eq.s32.totalorder %s18, 1
    %p120 = por %p118, %p119
    %p121 = scmp.ne.s32.totalorder %s112, %s113
    %p122 = scmp.eq.s32.totalorder %s18, 0
    %p123 = por %p121, %p122
    %p124 = scmp.ne.s32.totalorder %s112, %s113
    %p125 = scmp.eq.s32.totalorder %s19, 1
    %p126 = por %p124, %p125
    %p128 = scmp.ne.s32.totalorder %s113, %s127
    %p129 = scmp.eq.s32.totalorder %s19, 0
    %p130 = por %p128, %p129
    %s131 = ssub.s32 %s13, %s20
    %p132 = scmp.eq.s32.totalorder %s131, 0
    %s134 = sadd.s32 %s133, 1
    %s135 = scalar_select %p132, %s133, %s134
    %p138 = pneg %p132
    %p139 = scmp.eq.s32.totalorder %s13, 1
    %p140 = por %p138, %p139
    %p141 = scmp.ne.s32.totalorder %s133, %s136
    %p142 = scmp.eq.s32.totalorder %s13, 0
    %p143 = por %p141, %p142
    %p144 = scmp.ne.s32.totalorder %s133, %s136
    %p145 = scmp.eq.s32.totalorder %s18, 1
    %p146 = por %p144, %p145
    %p147 = scmp.ne.s32.totalorder %s136, %s137
    %p148 = scmp.eq.s32.totalorder %s18, 0
    %p149 = por %p147, %p148
    %p150 = scmp.ne.s32.totalorder %s136, %s137
    %p151 = scmp.eq.s32.totalorder %s19, 1
    %p152 = por %p150, %p151
    %p154 = scmp.ne.s32.totalorder %s137, %s153
    %p155 = scmp.eq.s32.totalorder %s19, 0
    %p156 = por %p154, %p155
    %s157 = ssub.s32 %s13, %s20
    %p158 = scmp.eq.s32.totalorder %s157, 0
    %s160 = sadd.s32 %s159, 1
    %s161 = scalar_select %p158, %s159, %s160
    %p164 = pneg %p158
    %p165 = scmp.eq.s32.totalorder %s13, 1
    %p166 = por %p164, %p165
    %p167 = scmp.ne.s32.totalorder %s159, %s162
    %p168 = scmp.eq.s32.totalorder %s13, 0
    %p169 = por %p167, %p168
    %p170 = scmp.ne.s32.totalorder %s159, %s162
    %p171 = scmp.eq.s32.totalorder %s18, 1
    %p172 = por %p170, %p171
    %p173 = scmp.ne.s32.totalorder %s162, %s163
    %p174 = scmp.eq.s32.totalorder %s18, 0
    %p175 = por %p173, %p174
    %p176 = scmp.ne.s32.totalorder %s162, %s163
    %p177 = scmp.eq.s32.totalorder %s19, 1
    %p178 = por %p176, %p177
    %p180 = scmp.ne.s32.totalorder %s163, %s179
    %p181 = scmp.eq.s32.totalorder %s19, 0
    %p182 = por %p180, %p181
    %p183 = scmp.le.s32.totalorder 1, %s13
    %p184 = scmp.lt.s32.totalorder %s13, 3
    %p185 = pnand %p183, %p184
    %p186 = pneg %p185
    // Predicated region
    $region9: #{ovt_forward.21} parent=5 // pred_check
      _
    $region10: #{ovt_forward.21} parent=5 // pred_check_branch
      %188 = sbr.rel (%p185) target = $region12
    $region11: #{ovt_forward.21} parent=5 // pred_region
      %s189 = ssub.s32 %s13, 1
      // Predicated region
      $region13: #{ovt_forward.21} parent=11 // pred_check
        %p190 = pneg %p60
      $region14: #{ovt_forward.21} parent=11 // pred_check_branch
        %192 = sbr.rel (%p190) target = $region16
      $region15: #{ovt_forward.21} parent=11 // pred_region
        _
      $region16: #{ovt_forward.21} parent=11 // pred_fallthru
        _
      // Predicated region
      $region17: #{ovt_forward.21} parent=11 // pred_check
        %p193 = pneg %p81
      $region18: #{ovt_forward.21} parent=11 // pred_check_branch
        %195 = sbr.rel (%p193) target = $region20
      $region19: #{ovt_forward.21} parent=11 // pred_region
        _
      $region20: #{ovt_forward.21} parent=11 // pred_fallthru
        _
      // Predicated region
      $region21: #{ovt_forward.21} parent=11 // pred_check
        %p196 = pneg %p102
      $region22: #{ovt_forward.21} parent=11 // pred_check_branch
        %198 = sbr.rel (%p196) target = $region24
      $region23: #{ovt_forward.21} parent=11 // pred_region
        _
      $region24: #{ovt_forward.21} parent=11 // pred_fallthru
        _
      // Predicated region
      $region25: #{ovt_forward.21} parent=11 // pred_check
        %p199 = pneg %p123
      $region26: #{ovt_forward.21} parent=11 // pred_check_branch
        %201 = sbr.rel (%p199) target = $region28
      $region27: #{ovt_forward.21} parent=11 // pred_region
        _
      $region28: #{ovt_forward.21} parent=11 // pred_fallthru
        _
    $region12: #{ovt_forward.21} parent=5 // pred_fallthru
      _
    %p202 = scmp.lt.s32.totalorder %s13, 2
    // Predicated region
    $region29: #{ovt_forward.21} parent=5 // pred_check
      %p203 = pneg %p202
    $region30: #{ovt_forward.21} parent=5 // pred_check_branch
      %205 = sbr.rel (%p203) target = $region32
    $region31: #{ovt_forward.21} parent=5 // pred_region
      // Predicated region
      $region33: #{ovt_forward.21} parent=31 // pred_check
        %p206 = pneg %p33
      $region34: #{ovt_forward.21} parent=31 // pred_check_branch
        %208 = sbr.rel (%p206) target = $region36
      $region35: #{ovt_forward.21} parent=31 // pred_region
        %p209 = scmp.lt.s32.totalorder %s13, 1
        %s210 = scalar_select %p209, %s13, 1
        %s211 = smul.addr %s210, 32
        %s212 = smul.addr %s211, 4
        %s213 = scalar_lea.vmem %s0, %s212
      $region36: #{ovt_forward.21} parent=31 // pred_fallthru
        _
    $region32: #{ovt_forward.21} parent=5 // pred_fallthru
      _
    %p214 = scmp.le.s32.totalorder 1, %s13
    %p215 = scmp.lt.s32.totalorder %s13, 3
    %p216 = pnand %p214, %p215
    %p217 = pneg %p216
    // Predicated region
    $region37: #{ovt_forward.21} parent=5 // pred_check
      _
    $region38: #{ovt_forward.21} parent=5 // pred_check_branch
      %219 = sbr.rel (%p216) target = $region40
    $region39: #{ovt_forward.21} parent=5 // pred_region
      %s220 = ssub.s32 %s13, 1
      %p221 = scmp.lt.s32.totalorder %s18, 1
      %s222 = scalar_select %p221, %s18, 1
      %s223 = smul.addr %s222, 32
      %s224 = smul.addr %s223, 4
      %s225 = scalar_lea.vmem %s0, %s224
      %p226 = pneg %p39
      %p227 = pneg %p36
      %p228 = pneg %p60
      %p229 = pneg %p57
      %p230 = pneg %p81
      %p231 = pneg %p78
      %p232 = pneg %p102
      %p233 = pneg %p99
      %p234 = pneg %p123
      %p235 = pneg %p120
      %p236 = pneg %p149
      %p237 = pneg %p146
      %p238 = scmp.lt.s32.totalorder %s18, 1
      %s239 = scalar_select %p238, %s18, 1
      %s240 = smul.addr %s239, 44
      %s241 = smul.addr %s240, 8
      %s242 = scalar_lea.vmem %s5, %s241
      %p243 = pneg %p175
      %p244 = pneg %p172
      %p245 = scmp.lt.s32.totalorder %s18, 1
      %s246 = scalar_select %p245, %s18, 1
      %s247 = smul.addr %s246, 3
      %s248 = scalar_lea.vmem %s6, %s247
      %p249 = scmp.lt.s32.totalorder %s18, 1
      %s250 = scalar_select %p249, %s18, 1
      %s251 = smul.addr %s250, 32
      %s252 = smul.addr %s251, 4
      %s253 = scalar_lea.vmem %s0, %s252
      %p254 = scmp.lt.s32.totalorder %s18, 1
      %s255 = scalar_select %p254, %s18, 1
      %s256 = smul.addr %s255, 44
      %s257 = smul.addr %s256, 8
      %s258 = scalar_lea.vmem %s5, %s257
      %p259 = scmp.lt.s32.totalorder %s18, 1
      %s260 = scalar_select %p259, %s18, 1
      %s261 = smul.addr %s260, 3
      %s262 = scalar_lea.vmem %s6, %s261
      %v264 = vld [vmem:[%s253] sm:$0xf]
      %v265 = vld [vmem:[%s253 + $0x4] sm:$0xf]
      %v266 = vld [vmem:[%s253 + $0x8] sm:$0xf]
      %v267 = vld [vmem:[%s253 + $0xc] sm:$0xf]
      %v268 = vld [vmem:[%s253 + $0x10] sm:$0xf]
      %v269 = vld [vmem:[%s253 + $0x14] sm:$0xf]
      %v270 = vld [vmem:[%s253 + $0x18] sm:$0xf]
      %v271 = vld [vmem:[%s253 + $0x1c] sm:$0xf]
      %v272 = vld [vmem:[%s253 + $0x20] sm:$0xf]
      %v273 = vld [vmem:[%s253 + $0x24] sm:$0xf]
      %v274 = vld [vmem:[%s253 + $0x28] sm:$0xf]
      %v275 = vld [vmem:[%s253 + $0x2c] sm:$0xf]
      %v276 = vld [vmem:[%s253 + $0x30] sm:$0xf]
      %v277 = vld [vmem:[%s253 + $0x34] sm:$0xf]
      %v278 = vld [vmem:[%s253 + $0x38] sm:$0xf]
      %v279 = vld [vmem:[%s253 + $0x3c] sm:$0xf]
      %v280 = vld [vmem:[%s253 + $0x40] sm:$0xf]
      %v281 = vld [vmem:[%s253 + $0x44] sm:$0xf]
      %v282 = vld [vmem:[%s253 + $0x48] sm:$0xf]
      %v283 = vld [vmem:[%s253 + $0x4c] sm:$0xf]
      %v284 = vld [vmem:[%s253 + $0x50] sm:$0xf]
      %v285 = vld [vmem:[%s253 + $0x54] sm:$0xf]
      %v286 = vld [vmem:[%s253 + $0x58] sm:$0xf]
      %v287 = vld [vmem:[%s253 + $0x5c] sm:$0xf]
      %v288 = vld [vmem:[%s253 + $0x60] sm:$0xf]
      %v289 = vld [vmem:[%s253 + $0x64] sm:$0xf]
      %v290 = vld [vmem:[%s253 + $0x68] sm:$0xf]
      %v291 = vld [vmem:[%s253 + $0x6c] sm:$0xf]
      %v292 = vld [vmem:[%s253 + $0x70] sm:$0xf]
      %v293 = vld [vmem:[%s253 + $0x74] sm:$0xf]
      %v294 = vld [vmem:[%s253 + $0x78] sm:$0xf]
      %v295 = vld [vmem:[%s253 + $0x7c] sm:$0xf]
      %v328 = vunpack.c.l.b16 %v264
      %v329 = vunpack.c.l.b16 %v265
      %v330 = vunpack.c.l.b16 %v266
      %v331 = vunpack.c.l.b16 %v267
      %v332 = vunpack.c.l.b16 %v268
      %v333 = vunpack.c.l.b16 %v269
      %v334 = vunpack.c.l.b16 %v270
      %v335 = vunpack.c.l.b16 %v271
      %v336 = vunpack.c.l.b16 %v272
      %v337 = vunpack.c.l.b16 %v273
      %v338 = vunpack.c.l.b16 %v274
      %v339 = vunpack.c.l.b16 %v275
      %v340 = vunpack.c.l.b16 %v276
      %v341 = vunpack.c.l.b16 %v277
      %v342 = vunpack.c.l.b16 %v278
      %v343 = vunpack.c.l.b16 %v279
      %v344 = vunpack.c.l.b16 %v280
      %v345 = vunpack.c.l.b16 %v281
      %v346 = vunpack.c.l.b16 %v282
      %v347 = vunpack.c.l.b16 %v283
      %v348 = vunpack.c.l.b16 %v284
      %v349 = vunpack.c.l.b16 %v285
      %v350 = vunpack.c.l.b16 %v286
      %v351 = vunpack.c.l.b16 %v287
      %v352 = vunpack.c.l.b16 %v288
      %v353 = vunpack.c.l.b16 %v289
      %v354 = vunpack.c.l.b16 %v290
      %v355 = vunpack.c.l.b16 %v291
      %v356 = vunpack.c.l.b16 %v292
      %v357 = vunpack.c.l.b16 %v293
      %v358 = vunpack.c.l.b16 %v294
      %v359 = vunpack.c.l.b16 %v295
      %v360 = vpack.c.b16 %v329, %v328
      %v361 = vpack.c.b16 %v331, %v330
      %v362 = vpack.c.b16 %v333, %v332
      %v363 = vpack.c.b16 %v335, %v334
      %v364 = vpack.c.b16 %v337, %v336
      %v365 = vpack.c.b16 %v339, %v338
      %v366 = vpack.c.b16 %v341, %v340
      %v367 = vpack.c.b16 %v343, %v342
      %v368 = vpack.c.b16 %v345, %v344
      %v369 = vpack.c.b16 %v347, %v346
      %v370 = vpack.c.b16 %v349, %v348
      %v371 = vpack.c.b16 %v351, %v350
      %v372 = vpack.c.b16 %v353, %v352
      %v373 = vpack.c.b16 %v355, %v354
      %v374 = vpack.c.b16 %v357, %v356
      %v375 = vpack.c.b16 %v359, %v358
      %vm376 = vcmask 523264
      %v378 = vsel %vm376, %v360, 0
      %v381 = vsel %vm376, %v361, 0
      %v384 = vsel %vm376, %v362, 0
      %v387 = vsel %vm376, %v363, 0
      %v390 = vsel %vm376, %v364, 0
      %v393 = vsel %vm376, %v365, 0
      %v396 = vsel %vm376, %v366, 0
      %v399 = vsel %vm376, %v367, 0
      %v402 = vsel %vm376, %v368, 0
      %v405 = vsel %vm376, %v369, 0
      %v408 = vsel %vm376, %v370, 0
      %v411 = vsel %vm376, %v371, 0
      %v414 = vsel %vm376, %v372, 0
      %v417 = vsel %vm376, %v373, 0
      %v420 = vsel %vm376, %v374, 0
      %v423 = vsel %vm376, %v375, 0
      %425 = vmatprep.subr.bf16.mxu0 0
      %426 = vmatpush1.bf16.xpose.msra.mxu0 %v378
      %427 = vmatprep.subr.bf16.mxu0 0
      %428 = vmatpush1.bf16.xpose.msra.mxu0 %v381
      %429 = vmatprep.subr.bf16.mxu0 0
      %430 = vmatpush1.bf16.xpose.msra.mxu0 %v384
      %431 = vmatprep.subr.bf16.mxu0 0
      %432 = vmatpush1.bf16.xpose.msra.mxu0 %v387
      %433 = vmatprep.subr.bf16.mxu0 0
      %434 = vmatpush1.bf16.xpose.msra.mxu0 %v390
      %435 = vmatprep.subr.bf16.mxu0 0
      %436 = vmatpush1.bf16.xpose.msra.mxu0 %v393
      %437 = vmatprep.subr.bf16.mxu0 0
      %438 = vmatpush1.bf16.xpose.msra.mxu0 %v396
      %439 = vmatprep.subr.bf16.mxu0 0
      %440 = vmatpush1.bf16.xpose.msra.mxu0 %v399
      %441 = vmatprep.subr.bf16.mxu0 0
      %442 = vmatpush1.bf16.xpose.msra.mxu0 %v402
      %443 = vmatprep.subr.bf16.mxu0 0
      %444 = vmatpush1.bf16.xpose.msra.mxu0 %v405
      %445 = vmatprep.subr.bf16.mxu0 0
      %446 = vmatpush1.bf16.xpose.msra.mxu0 %v408
      %447 = vmatprep.subr.bf16.mxu0 0
      %448 = vmatpush1.bf16.xpose.msra.mxu0 %v411
      %449 = vmatprep.subr.bf16.mxu0 0
      %450 = vmatpush1.bf16.xpose.msra.mxu0 %v414
      %451 = vmatprep.subr.bf16.mxu0 0
      %452 = vmatpush1.bf16.xpose.msra.mxu0 %v417
      %453 = vmatprep.subr.bf16.mxu0 0
      %454 = vmatpush1.bf16.xpose.msra.mxu0 %v420
      %455 = vmatprep.subr.bf16.mxu0 0
      %456 = vmatpush1.bf16.xpose.msra.mxu0 %v423
      %457 = vmatprep.mubr.bf16.mxu0 0
      %458 = vmatmul.mubr.bf16.gmra.mrb[0].mxu0 %v378
      %v459 = vpop.f32.mrb[0].mxu0
      %v460 = vadd.f32 0.0, %v459
      %v461 = vpop.f32.mrb[0].mxu0
      %v462 = vadd.f32 0.0, %v461
      %v463 = vpop.f32.mrb[0].mxu0
      %v464 = vadd.f32 0.0, %v463
      %v465 = vpop.f32.mrb[0].mxu0
      %v466 = vadd.f32 0.0, %v465
      %467 = vmatprep.mubr.bf16.mxu0 0
      %468 = vmatmul.mubr.bf16.gmra.mrb[0].mxu0 %v381
      %v469 = vpop.f32.mrb[0].mxu0
      %v470 = vadd.f32 0.0, %v469
      %v471 = vpop.f32.mrb[0].mxu0
      %v472 = vadd.f32 0.0, %v471
      %v473 = vpop.f32.mrb[0].mxu0
      %v474 = vadd.f32 0.0, %v473
      %v475 = vpop.f32.mrb[0].mxu0
      %v476 = vadd.f32 0.0, %v475
      %477 = vmatprep.mubr.bf16.mxu0 0
      %478 = vmatmul.mubr.bf16.gmra.mrb[0].mxu0 %v384
      %v479 = vpop.f32.mrb[0].mxu0
      %v480 = vadd.f32 0.0, %v479
      %v481 = vpop.f32.mrb[0].mxu0
      %v482 = vadd.f32 0.0, %v481
      %v483 = vpop.f32.mrb[0].mxu0
      %v484 = vadd.f32 0.0, %v483
      %v485 = vpop.f32.mrb[0].mxu0
      %v486 = vadd.f32 0.0, %v485
      %487 = vmatprep.mubr.bf16.mxu0 0
      %488 = vmatmul.mubr.bf16.gmra.mrb[0].mxu0 %v387
      %v489 = vpop.f32.mrb[0].mxu0
      %v490 = vadd.f32 0.0, %v489
      %v491 = vpop.f32.mrb[0].mxu0
      %v492 = vadd.f32 0.0, %v491
      %v493 = vpop.f32.mrb[0].mxu0
      %v494 = vadd.f32 0.0, %v493
      %v495 = vpop.f32.mrb[0].mxu0
      %v496 = vadd.f32 0.0, %v495
      %497 = vmatprep.mubr.bf16.mxu0 0
      %498 = vmatmul.mubr.bf16.gmra.mrb[0].mxu0 %v390
      %v499 = vpop.f32.mrb[0].mxu0
      %v500 = vadd.f32 0.0, %v499
      %v501 = vpop.f32.mrb[0].mxu0
      %v502 = vadd.f32 0.0, %v501
      %v503 = vpop.f32.mrb[0].mxu0
      %v504 = vadd.f32 0.0, %v503
      %v505 = vpop.f32.mrb[0].mxu0
      %v506 = vadd.f32 0.0, %v505
      %507 = vmatprep.mubr.bf16.mxu0 0
      %508 = vmatmul.mubr.bf16.gmra.mrb[0].mxu0 %v393
      %v509 = vpop.f32.mrb[0].mxu0
      %v510 = vadd.f32 0.0, %v509
      %v511 = vpop.f32.mrb[0].mxu0
      %v512 = vadd.f32 0.0, %v511
      %v513 = vpop.f32.mrb[0].mxu0
      %v514 = vadd.f32 0.0, %v513
      %v515 = vpop.f32.mrb[0].mxu0
      %v516 = vadd.f32 0.0, %v515
      %517 = vmatprep.mubr.bf16.mxu0 0
      %518 = vmatmul.mubr.bf16.gmra.mrb[0].mxu0 %v396
      %v519 = vpop.f32.mrb[0].mxu0
      %v520 = vadd.f32 0.0, %v519
      %v521 = vpop.f32.mrb[0].mxu0
      %v522 = vadd.f32 0.0, %v521
      %v523 = vpop.f32.mrb[0].mxu0
      %v524 = vadd.f32 0.0, %v523
      %v525 = vpop.f32.mrb[0].mxu0
      %v526 = vadd.f32 0.0, %v525
      %527 = vmatprep.mubr.bf16.mxu0 0
      %528 = vmatmul.mubr.bf16.gmra.mrb[0].mxu0 %v399
      %v529 = vpop.f32.mrb[0].mxu0
      %v530 = vadd.f32 0.0, %v529
      %v531 = vpop.f32.mrb[0].mxu0
      %v532 = vadd.f32 0.0, %v531
      %v533 = vpop.f32.mrb[0].mxu0
      %v534 = vadd.f32 0.0, %v533
      %v535 = vpop.f32.mrb[0].mxu0
      %v536 = vadd.f32 0.0, %v535
      %537 = vmatprep.mubr.bf16.mxu0 0
      %538 = vmatmul.mubr.bf16.gmra.mrb[0].mxu0 %v402
      %v539 = vpop.f32.mrb[0].mxu0
      %v540 = vadd.f32 0.0, %v539
      %v541 = vpop.f32.mrb[0].mxu0
      %v542 = vadd.f32 0.0, %v541
      %v543 = vpop.f32.mrb[0].mxu0
      %v544 = vadd.f32 0.0, %v543
      %v545 = vpop.f32.mrb[0].mxu0
      %v546 = vadd.f32 0.0, %v545
      %547 = vmatprep.mubr.bf16.mxu0 0
      %548 = vmatmul.mubr.bf16.gmra.mrb[0].mxu0 %v405
      %v549 = vpop.f32.mrb[0].mxu0
      %v550 = vadd.f32 0.0, %v549
      %v551 = vpop.f32.mrb[0].mxu0
      %v552 = vadd.f32 0.0, %v551
      %v553 = vpop.f32.mrb[0].mxu0
      %v554 = vadd.f32 0.0, %v553
      %v555 = vpop.f32.mrb[0].mxu0
      %v556 = vadd.f32 0.0, %v555
      %557 = vmatprep.mubr.bf16.mxu0 0
      %558 = vmatmul.mubr.bf16.gmra.mrb[0].mxu0 %v408
      %v559 = vpop.f32.mrb[0].mxu0
      %v560 = vadd.f32 0.0, %v559
      %v561 = vpop.f32.mrb[0].mxu0
      %v562 = vadd.f32 0.0, %v561
      %v563 = vpop.f32.mrb[0].mxu0
      %v564 = vadd.f32 0.0, %v563
      %v565 = vpop.f32.mrb[0].mxu0
      %v566 = vadd.f32 0.0, %v565
      %567 = vmatprep.mubr.bf16.mxu0 0
      %568 = vmatmul.mubr.bf16.gmra.mrb[0].mxu0 %v411
      %v569 = vpop.f32.mrb[0].mxu0
      %v570 = vadd.f32 0.0, %v569
      %v571 = vpop.f32.mrb[0].mxu0
      %v572 = vadd.f32 0.0, %v571
      %v573 = vpop.f32.mrb[0].mxu0
      %v574 = vadd.f32 0.0, %v573
      %v575 = vpop.f32.mrb[0].mxu0
      %v576 = vadd.f32 0.0, %v575
      %577 = vmatprep.mubr.bf16.mxu0 0
      %578 = vmatmul.mubr.bf16.gmra.mrb[0].mxu0 %v414
      %v579 = vpop.f32.mrb[0].mxu0
      %v580 = vadd.f32 0.0, %v579
      %v581 = vpop.f32.mrb[0].mxu0
      %v582 = vadd.f32 0.0, %v581
      %v583 = vpop.f32.mrb[0].mxu0
      %v584 = vadd.f32 0.0, %v583
      %v585 = vpop.f32.mrb[0].mxu0
      %v586 = vadd.f32 0.0, %v585
      %587 = vmatprep.mubr.bf16.mxu0 0
      %588 = vmatmul.mubr.bf16.gmra.mrb[0].mxu0 %v417
      %v589 = vpop.f32.mrb[0].mxu0
      %v590 = vadd.f32 0.0, %v589
      %v591 = vpop.f32.mrb[0].mxu0
      %v592 = vadd.f32 0.0, %v591
      %v593 = vpop.f32.mrb[0].mxu0
      %v594 = vadd.f32 0.0, %v593
      %v595 = vpop.f32.mrb[0].mxu0
      %v596 = vadd.f32 0.0, %v595
      %597 = vmatprep.mubr.bf16.mxu0 0
      %598 = vmatmul.mubr.bf16.gmra.mrb[0].mxu0 %v420
      %v599 = vpop.f32.mrb[0].mxu0
      %v600 = vadd.f32 0.0, %v599
      %v601 = vpop.f32.mrb[0].mxu0
      %v602 = vadd.f32 0.0, %v601
      %v603 = vpop.f32.mrb[0].mxu0
      %v604 = vadd.f32 0.0, %v603
      %v605 = vpop.f32.mrb[0].mxu0
      %v606 = vadd.f32 0.0, %v605
      %607 = vmatprep.mubr.bf16.mxu0 0
      %608 = vmatmul.mubr.bf16.gmra.mrb[0].mxu0 %v423
      %v609 = vpop.f32.mrb[0].mxu0
      %v610 = vadd.f32 0.0, %v609
      %v611 = vpop.f32.mrb[0].mxu0
      %v612 = vadd.f32 0.0, %v611
      %v613 = vpop.f32.mrb[0].mxu0
      %v614 = vadd.f32 0.0, %v613
      %v615 = vpop.f32.mrb[0].mxu0
      %v616 = vadd.f32 0.0, %v615
      %617 = vdwg.mxu0
      %v618 = vmul.f32 %v460, 0.015625
      %v619 = vmul.f32 %v462, 0.015625
      %v620 = vmul.f32 %v464, 0.015625
      %v621 = vmul.f32 %v466, 0.015625
      %v622 = vmul.f32 %v470, 0.015625
      %v623 = vmul.f32 %v472, 0.015625
      %v624 = vmul.f32 %v474, 0.015625
      %v625 = vmul.f32 %v476, 0.015625
      %v626 = vmul.f32 %v480, 0.015625
      %v627 = vmul.f32 %v482, 0.015625
      %v628 = vmul.f32 %v484, 0.015625
      %v629 = vmul.f32 %v486, 0.015625
      %v630 = vmul.f32 %v490, 0.015625
      %v631 = vmul.f32 %v492, 0.015625
      %v632 = vmul.f32 %v494, 0.015625
      %v633 = vmul.f32 %v496, 0.015625
      %v634 = vmul.f32 %v500, 0.015625
      %v635 = vmul.f32 %v502, 0.015625
      %v636 = vmul.f32 %v504, 0.015625
      %v637 = vmul.f32 %v506, 0.015625
      %v638 = vmul.f32 %v510, 0.015625
      %v639 = vmul.f32 %v512, 0.015625
      %v640 = vmul.f32 %v514, 0.015625
      %v641 = vmul.f32 %v516, 0.015625
      %v642 = vmul.f32 %v520, 0.015625
      %v643 = vmul.f32 %v522, 0.015625
      %v644 = vmul.f32 %v524, 0.015625
      %v645 = vmul.f32 %v526, 0.015625
      %v646 = vmul.f32 %v530, 0.015625
      %v647 = vmul.f32 %v532, 0.015625
      %v648 = vmul.f32 %v534, 0.015625
      %v649 = vmul.f32 %v536, 0.015625
      %v650 = vmul.f32 %v540, 0.015625
      %v651 = vmul.f32 %v542, 0.015625
      %v652 = vmul.f32 %v544, 0.015625
      %v653 = vmul.f32 %v546, 0.015625
      %v654 = vmul.f32 %v550, 0.015625
      %v655 = vmul.f32 %v552, 0.015625
      %v656 = vmul.f32 %v554, 0.015625
      %v657 = vmul.f32 %v556, 0.015625
      %v658 = vmul.f32 %v560, 0.015625
      %v659 = vmul.f32 %v562, 0.015625
      %v660 = vmul.f32 %v564, 0.015625
      %v661 = vmul.f32 %v566, 0.015625
      %v662 = vmul.f32 %v570, 0.015625
      %v663 = vmul.f32 %v572, 0.015625
      %v664 = vmul.f32 %v574, 0.015625
      %v665 = vmul.f32 %v576, 0.015625
      %v666 = vmul.f32 %v580, 0.015625
      %v667 = vmul.f32 %v582, 0.015625
      %v668 = vmul.f32 %v584, 0.015625
      %v669 = vmul.f32 %v586, 0.015625
      %v670 = vmul.f32 %v590, 0.015625
      %v671 = vmul.f32 %v592, 0.015625
      %v672 = vmul.f32 %v594, 0.015625
      %v673 = vmul.f32 %v596, 0.015625
      %v674 = vmul.f32 %v600, 0.015625
      %v675 = vmul.f32 %v602, 0.015625
      %v676 = vmul.f32 %v604, 0.015625
      %v677 = vmul.f32 %v606, 0.015625
      %v678 = vmul.f32 %v610, 0.015625
      %v679 = vmul.f32 %v612, 0.015625
      %v680 = vmul.f32 %v614, 0.015625
      %v681 = vmul.f32 %v616, 0.015625
      %v682 = vpack.c.bf16 %v620, %v618
      %v683 = vpack.c.bf16 %v621, %v619
      %v684 = vpack.c.bf16 %v624, %v622
      %v685 = vpack.c.bf16 %v625, %v623
      %v686 = vpack.c.bf16 %v628, %v626
      %v687 = vpack.c.bf16 %v629, %v627
      %v688 = vpack.c.bf16 %v632, %v630
      %v689 = vpack.c.bf16 %v633, %v631
      %v690 = vpack.c.bf16 %v636, %v634
      %v691 = vpack.c.bf16 %v637, %v635
      %v692 = vpack.c.bf16 %v640, %v638
      %v693 = vpack.c.bf16 %v641, %v639
      %v694 = vpack.c.bf16 %v644, %v642
      %v695 = vpack.c.bf16 %v645, %v643
      %v696 = vpack.c.bf16 %v648, %v646
      %v697 = vpack.c.bf16 %v649, %v647
      %v698 = vpack.c.bf16 %v652, %v650
      %v699 = vpack.c.bf16 %v653, %v651
      %v700 = vpack.c.bf16 %v656, %v654
      %v701 = vpack.c.bf16 %v657, %v655
      %v702 = vpack.c.bf16 %v660, %v658
      %v703 = vpack.c.bf16 %v661, %v659
      %v704 = vpack.c.bf16 %v664, %v662
      %v705 = vpack.c.bf16 %v665, %v663
      %v706 = vpack.c.bf16 %v668, %v666
      %v707 = vpack.c.bf16 %v669, %v667
      %v708 = vpack.c.bf16 %v672, %v670
      %v709 = vpack.c.bf16 %v673, %v671
      %v710 = vpack.c.bf16 %v676, %v674
      %v711 = vpack.c.bf16 %v677, %v675
      %v712 = vpack.c.bf16 %v680, %v678
      %v713 = vpack.c.bf16 %v681, %v679
      %v714 = vld [vmem:[%s1] sm:$0xff]
      %v715 = vld [vmem:[%s1 + $0x8] sm:$0xff]
      %v716 = vld [vmem:[%s1 + $0x10] sm:$0xff]
      %v717 = vld [vmem:[%s1 + $0x18] sm:$0xff]
      %v718 = vld [vmem:[%s1 + $0x20] sm:$0xff]
      %v719 = vld [vmem:[%s1 + $0x28] sm:$0xff]
      %v720 = vld [vmem:[%s1 + $0x30] sm:$0xff]
      %v721 = vld [vmem:[%s1 + $0x38] sm:$0xff]
      %v722 = vld [vmem:[%s1 + $0x40] sm:$0xff]
      %v723 = vld [vmem:[%s1 + $0x48] sm:$0xff]
      %v724 = vld [vmem:[%s1 + $0x50] sm:$0xff]
      %v725 = vld [vmem:[%s1 + $0x58] sm:$0xff]
      %v726 = vld [vmem:[%s1 + $0x60] sm:$0xff]
      %v727 = vld [vmem:[%s1 + $0x68] sm:$0xff]
      %v728 = vld [vmem:[%s1 + $0x70] sm:$0xff]
      %v729 = vld [vmem:[%s1 + $0x78] sm:$0xff]
      %v730 = vld [vmem:[%s1 + $0x80] sm:$0xff]
      %v731 = vld [vmem:[%s1 + $0x88] sm:$0xff]
      %v732 = vld [vmem:[%s1 + $0x90] sm:$0xff]
      %v733 = vld [vmem:[%s1 + $0x98] sm:$0xff]
      %v734 = vld [vmem:[%s1 + $0xa0] sm:$0xff]
      %v735 = vld [vmem:[%s1 + $0xa8] sm:$0xff]
      %v736 = vld [vmem:[%s2] sm:$0xff]
      %v737 = vld [vmem:[%s2 + $0x8] sm:$0xff]
      %v738 = vld [vmem:[%s2 + $0x10] sm:$0xff]
      %v739 = vld [vmem:[%s2 + $0x18] sm:$0xff]
      %v740 = vld [vmem:[%s2 + $0x20] sm:$0xff]
      %v741 = vld [vmem:[%s2 + $0x28] sm:$0xff]
      %v742 = vld [vmem:[%s2 + $0x30] sm:$0xff]
      %v743 = vld [vmem:[%s2 + $0x38] sm:$0xff]
      %v744 = vld [vmem:[%s2 + $0x40] sm:$0xff]
      %v745 = vld [vmem:[%s2 + $0x48] sm:$0xff]
      %v746 = vld [vmem:[%s2 + $0x50] sm:$0xff]
      %v747 = vld [vmem:[%s2 + $0x58] sm:$0xff]
      %v748 = vld [vmem:[%s2 + $0x60] sm:$0xff]
      %v749 = vld [vmem:[%s2 + $0x68] sm:$0xff]
      %v750 = vld [vmem:[%s2 + $0x70] sm:$0xff]
      %v751 = vld [vmem:[%s2 + $0x78] sm:$0xff]
      %v752 = vld [vmem:[%s2 + $0x80] sm:$0xff]
      %v753 = vld [vmem:[%s2 + $0x88] sm:$0xff]
      %v754 = vld [vmem:[%s2 + $0x90] sm:$0xff]
      %v755 = vld [vmem:[%s2 + $0x98] sm:$0xff]
      %v756 = vld [vmem:[%s2 + $0xa0] sm:$0xff]
      %v757 = vld [vmem:[%s2 + $0xa8] sm:$0xff]
      %759 = vset.pattern.permute.xlu0 0
      %760 = vperm.xlu0 %759, %v736
      %v761 = vpop.permute.xlu0 %760
      %764 = vset.pattern.permute.xlu0 0
      %765 = vperm.xlu0 %764, %v737
      %v766 = vpop.permute.xlu0 %765
      %769 = vset.pattern.permute.xlu0 0
      %770 = vperm.xlu0 %769, %v738
      %v771 = vpop.permute.xlu0 %770
      %774 = vset.pattern.permute.xlu0 0
      %775 = vperm.xlu0 %774, %v739
      %v776 = vpop.permute.xlu0 %775
      %779 = vset.pattern.permute.xlu0 0
      %780 = vperm.xlu0 %779, %v740
      %v781 = vpop.permute.xlu0 %780
      %784 = vset.pattern.permute.xlu0 0
      %785 = vperm.xlu0 %784, %v741
      %v786 = vpop.permute.xlu0 %785
      %789 = vset.pattern.permute.xlu0 0
      %790 = vperm.xlu0 %789, %v742
      %v791 = vpop.permute.xlu0 %790
      %794 = vset.pattern.permute.xlu0 0
      %795 = vperm.xlu0 %794, %v743
      %v796 = vpop.permute.xlu0 %795
      %799 = vset.pattern.permute.xlu0 0
      %800 = vperm.xlu0 %799, %v744
      %v801 = vpop.permute.xlu0 %800
      %804 = vset.pattern.permute.xlu0 0
      %805 = vperm.xlu0 %804, %v745
      %v806 = vpop.permute.xlu0 %805
      %809 = vset.pattern.permute.xlu0 0
      %810 = vperm.xlu0 %809, %v746
      %v811 = vpop.permute.xlu0 %810
      %814 = vset.pattern.permute.xlu0 0
      %815 = vperm.xlu0 %814, %v747
      %v816 = vpop.permute.xlu0 %815
      %819 = vset.pattern.permute.xlu0 0
      %820 = vperm.xlu0 %819, %v748
      %v821 = vpop.permute.xlu0 %820
      %824 = vset.pattern.permute.xlu0 0
      %825 = vperm.xlu0 %824, %v749
      %v826 = vpop.permute.xlu0 %825
      %829 = vset.pattern.permute.xlu0 0
      %830 = vperm.xlu0 %829, %v750
      %v831 = vpop.permute.xlu0 %830
      %834 = vset.pattern.permute.xlu0 0
      %835 = vperm.xlu0 %834, %v751
      %v836 = vpop.permute.xlu0 %835
      %839 = vset.pattern.permute.xlu0 0
      %840 = vperm.xlu0 %839, %v752
      %v841 = vpop.permute.xlu0 %840
      %844 = vset.pattern.permute.xlu0 0
      %845 = vperm.xlu0 %844, %v753
      %v846 = vpop.permute.xlu0 %845
      %849 = vset.pattern.permute.xlu0 0
      %850 = vperm.xlu0 %849, %v754
      %v851 = vpop.permute.xlu0 %850
      %854 = vset.pattern.permute.xlu0 0
      %855 = vperm.xlu0 %854, %v755
      %v856 = vpop.permute.xlu0 %855
      %859 = vset.pattern.permute.xlu0 0
      %860 = vperm.xlu0 %859, %v756
      %v861 = vpop.permute.xlu0 %860
      %864 = vset.pattern.permute.xlu0 0
      %865 = vperm.xlu0 %864, %v757
      %v866 = vpop.permute.xlu0 %865
      %v890 = vunpack.c.l.b16 %v714
      %v891 = vunpack.c.h.b16 %v714
      %v892 = vunpack.c.l.b16 %v715
      %v893 = vunpack.c.h.b16 %v715
      %v894 = vunpack.c.l.b16 %v716
      %v895 = vunpack.c.h.b16 %v716
      %v896 = vunpack.c.l.b16 %v717
      %v897 = vunpack.c.h.b16 %v717
      %v898 = vunpack.c.l.b16 %v718
      %v899 = vunpack.c.h.b16 %v718
      %v900 = vunpack.c.l.b16 %v719
      %v901 = vunpack.c.h.b16 %v719
      %v902 = vunpack.c.l.b16 %v720
      %v903 = vunpack.c.h.b16 %v720
      %v904 = vunpack.c.l.b16 %v721
      %v905 = vunpack.c.h.b16 %v721
      %v906 = vunpack.c.l.b16 %v722
      %v907 = vunpack.c.h.b16 %v722
      %v908 = vunpack.c.l.b16 %v723
      %v909 = vunpack.c.h.b16 %v723
      %v910 = vunpack.c.l.b16 %v724
      %v911 = vunpack.c.h.b16 %v724
      %v912 = vunpack.c.l.b16 %v725
      %v913 = vunpack.c.h.b16 %v725
      %v914 = vunpack.c.l.b16 %v726
      %v915 = vunpack.c.h.b16 %v726
      %v916 = vunpack.c.l.b16 %v727
      %v917 = vunpack.c.h.b16 %v727
      %v918 = vunpack.c.l.b16 %v728
      %v919 = vunpack.c.h.b16 %v728
      %v920 = vunpack.c.l.b16 %v729
      %v921 = vunpack.c.h.b16 %v729
      %v922 = vunpack.c.l.b16 %v730
      %v923 = vunpack.c.h.b16 %v730
      %v924 = vunpack.c.l.b16 %v731
      %v925 = vunpack.c.h.b16 %v731
      %v926 = vunpack.c.l.b16 %v732
      %v927 = vunpack.c.h.b16 %v732
      %v928 = vunpack.c.l.b16 %v733
      %v929 = vunpack.c.h.b16 %v733
      %v930 = vunpack.c.l.b16 %v734
      %v931 = vunpack.c.h.b16 %v734
      %v932 = vunpack.c.l.b16 %v735
      %v933 = vunpack.c.h.b16 %v735
      %v934 = vpack.c.b16 %v892, %v890
      %v935 = vpack.c.b16 %v893, %v891
      %v936 = vpack.c.b16 %v896, %v894
      %v937 = vpack.c.b16 %v897, %v895
      %v938 = vpack.c.b16 %v900, %v898
      %v939 = vpack.c.b16 %v901, %v899
      %v940 = vpack.c.b16 %v904, %v902
      %v941 = vpack.c.b16 %v905, %v903
      %v942 = vpack.c.b16 %v908, %v906
      %v943 = vpack.c.b16 %v909, %v907
      %v944 = vpack.c.b16 %v912, %v910
      %v945 = vpack.c.b16 %v913, %v911
      %v946 = vpack.c.b16 %v916, %v914
      %v947 = vpack.c.b16 %v917, %v915
      %v948 = vpack.c.b16 %v920, %v918
      %v949 = vpack.c.b16 %v921, %v919
      %v950 = vpack.c.b16 %v924, %v922
      %v951 = vpack.c.b16 %v925, %v923
      %v952 = vpack.c.b16 %v928, %v926
      %v953 = vpack.c.b16 %v929, %v927
      %v954 = vpack.c.b16 %v932, %v930
      %v955 = vpack.c.b16 %v933, %v931
      %978 = vmatprep.subr.bf16.mxu0 %v683
      %979 = vmatpush1.bf16.msra.mxu0 %v682
      %980 = vmatprep.subr.bf16.mxu0 %v685
      %981 = vmatpush1.bf16.msra.mxu0 %v684
      %982 = vmatprep.subr.bf16.mxu0 %v687
      %983 = vmatpush1.bf16.msra.mxu0 %v686
      %984 = vmatprep.subr.bf16.mxu0 %v689
      %985 = vmatpush1.bf16.msra.mxu0 %v688
      %986 = vmatprep.subr.bf16.mxu0 %v691
      %987 = vmatpush1.bf16.msra.mxu0 %v690
      %988 = vmatprep.subr.bf16.mxu0 %v693
      %989 = vmatpush1.bf16.msra.mxu0 %v692
      %990 = vmatprep.subr.bf16.mxu0 %v695
      %991 = vmatpush1.bf16.msra.mxu0 %v694
      %992 = vmatprep.subr.bf16.mxu0 %v697
      %993 = vmatpush1.bf16.msra.mxu0 %v696
      %994 = vmatprep.subr.bf16.mxu0 %v699
      %995 = vmatpush1.bf16.msra.mxu0 %v698
      %996 = vmatprep.subr.bf16.mxu0 %v701
      %997 = vmatpush1.bf16.msra.mxu0 %v700
      %998 = vmatprep.subr.bf16.mxu0 %v703
      %999 = vmatpush1.bf16.msra.mxu0 %v702
      %1000 = vmatprep.subr.bf16.mxu0 %v705
      %1001 = vmatpush1.bf16.msra.mxu0 %v704
      %1002 = vmatprep.subr.bf16.mxu0 %v707
      %1003 = vmatpush1.bf16.msra.mxu0 %v706
      %1004 = vmatprep.subr.bf16.mxu0 %v709
      %1005 = vmatpush1.bf16.msra.mxu0 %v708
      %1006 = vmatprep.subr.bf16.mxu0 %v711
      %1007 = vmatpush1.bf16.msra.mxu0 %v710
      %1008 = vmatprep.subr.bf16.mxu0 %v713
      %1009 = vmatpush1.bf16.msra.mxu0 %v712
      %1010 = vmatprep.mubr.bf16.mxu0 %v935
      %1011 = vmatmul.mubr.bf16.gmra.mrb[0].mxu0 %v934
      %v1012 = vpop.f32.mrb[0].mxu0
      %v1013 = vadd.f32 %v761, %v1012
      %v1014 = vpop.f32.mrb[0].mxu0
      %v1015 = vadd.f32 %v761, %v1014
      %v1016 = vpop.f32.mrb[0].mxu0
      %v1017 = vadd.f32 %v766, %v1016
      %v1018 = vpop.f32.mrb[0].mxu0
      %v1019 = vadd.f32 %v766, %v1018
      %1020 = vmatprep.mubr.bf16.mxu0 %v937
      %1021 = vmatmul.mubr.bf16.gmra.mrb[0].mxu0 %v936
      %v1022 = vpop.f32.mrb[0].mxu0
      %v1023 = vadd.f32 %v771, %v1022
      %v1024 = vpop.f32.mrb[0].mxu0
      %v1025 = vadd.f32 %v771, %v1024
      %v1026 = vpop.f32.mrb[0].mxu0
      %v1027 = vadd.f32 %v776, %v1026
      %v1028 = vpop.f32.mrb[0].mxu0
      %v1029 = vadd.f32 %v776, %v1028
      %1030 = vmatprep.mubr.bf16.mxu0 %v939
      %1031 = vmatmul.mubr.bf16.gmra.mrb[0].mxu0 %v938
      %v1032 = vpop.f32.mrb[0].mxu0
      %v1033 = vadd.f32 %v781, %v1032
      %v1034 = vpop.f32.mrb[0].mxu0
      %v1035 = vadd.f32 %v781, %v1034
      %v1036 = vpop.f32.mrb[0].mxu0
      %v1037 = vadd.f32 %v786, %v1036
      %v1038 = vpop.f32.mrb[0].mxu0
      %v1039 = vadd.f32 %v786, %v1038
      %1040 = vmatprep.mubr.bf16.mxu0 %v941
      %1041 = vmatmul.mubr.bf16.gmra.mrb[0].mxu0 %v940
      %v1042 = vpop.f32.mrb[0].mxu0
      %v1043 = vadd.f32 %v791, %v1042
      %v1044 = vpop.f32.mrb[0].mxu0
      %v1045 = vadd.f32 %v791, %v1044
      %v1046 = vpop.f32.mrb[0].mxu0
      %v1047 = vadd.f32 %v796, %v1046
      %v1048 = vpop.f32.mrb[0].mxu0
      %v1049 = vadd.f32 %v796, %v1048
      %1050 = vmatprep.mubr.bf16.mxu0 %v943
      %1051 = vmatmul.mubr.bf16.gmra.mrb[0].mxu0 %v942
      %v1052 = vpop.f32.mrb[0].mxu0
      %v1053 = vadd.f32 %v801, %v1052
      %v1054 = vpop.f32.mrb[0].mxu0
      %v1055 = vadd.f32 %v801, %v1054
      %v1056 = vpop.f32.mrb[0].mxu0
      %v1057 = vadd.f32 %v806, %v1056
      %v1058 = vpop.f32.mrb[0].mxu0
      %v1059 = vadd.f32 %v806, %v1058
      %1060 = vmatprep.mubr.bf16.mxu0 %v945
      %1061 = vmatmul.mubr.bf16.gmra.mrb[0].mxu0 %v944
      %v1062 = vpop.f32.mrb[0].mxu0
      %v1063 = vadd.f32 %v811, %v1062
      %v1064 = vpop.f32.mrb[0].mxu0
      %v1065 = vadd.f32 %v811, %v1064
      %v1066 = vpop.f32.mrb[0].mxu0
      %v1067 = vadd.f32 %v816, %v1066
      %v1068 = vpop.f32.mrb[0].mxu0
      %v1069 = vadd.f32 %v816, %v1068
      %1070 = vmatprep.mubr.bf16.mxu0 %v947
      %1071 = vmatmul.mubr.bf16.gmra.mrb[0].mxu0 %v946
      %v1072 = vpop.f32.mrb[0].mxu0
      %v1073 = vadd.f32 %v821, %v1072
      %v1074 = vpop.f32.mrb[0].mxu0
      %v1075 = vadd.f32 %v821, %v1074
      %v1076 = vpop.f32.mrb[0].mxu0
      %v1077 = vadd.f32 %v826, %v1076
      %v1078 = vpop.f32.mrb[0].mxu0
      %v1079 = vadd.f32 %v826, %v1078
      %1080 = vmatprep.mubr.bf16.mxu0 %v949
      %1081 = vmatmul.mubr.bf16.gmra.mrb[0].mxu0 %v948
      %v1082 = vpop.f32.mrb[0].mxu0
      %v1083 = vadd.f32 %v831, %v1082
      %v1084 = vpop.f32.mrb[0].mxu0
      %v1085 = vadd.f32 %v831, %v1084
      %v1086 = vpop.f32.mrb[0].mxu0
      %v1087 = vadd.f32 %v836, %v1086
      %v1088 = vpop.f32.mrb[0].mxu0
      %v1089 = vadd.f32 %v836, %v1088
      %1090 = vmatprep.mubr.bf16.mxu0 %v951
      %1091 = vmatmul.mubr.bf16.gmra.mrb[0].mxu0 %v950
      %v1092 = vpop.f32.mrb[0].mxu0
      %v1093 = vadd.f32 %v841, %v1092
      %v1094 = vpop.f32.mrb[0].mxu0
      %v1095 = vadd.f32 %v841, %v1094
      %v1096 = vpop.f32.mrb[0].mxu0
      %v1097 = vadd.f32 %v846, %v1096
      %v1098 = vpop.f32.mrb[0].mxu0
      %v1099 = vadd.f32 %v846, %v1098
      %1100 = vmatprep.mubr.bf16.mxu0 %v953
      %1101 = vmatmul.mubr.bf16.gmra.mrb[0].mxu0 %v952
      %v1102 = vpop.f32.mrb[0].mxu0
      %v1103 = vadd.f32 %v851, %v1102
      %v1104 = vpop.f32.mrb[0].mxu0
      %v1105 = vadd.f32 %v851, %v1104
      %v1106 = vpop.f32.mrb[0].mxu0
      %v1107 = vadd.f32 %v856, %v1106
      %v1108 = vpop.f32.mrb[0].mxu0
      %v1109 = vadd.f32 %v856, %v1108
      %1110 = vmatprep.mubr.bf16.mxu0 %v955
      %1111 = vmatmul.mubr.bf16.gmra.mrb[0].mxu0 %v954
      %v1112 = vpop.f32.mrb[0].mxu0
      %v1113 = vadd.f32 %v861, %v1112
      %v1114 = vpop.f32.mrb[0].mxu0
      %v1115 = vadd.f32 %v861, %v1114
      %v1116 = vpop.f32.mrb[0].mxu0
      %v1117 = vadd.f32 %v866, %v1116
      %v1118 = vpop.f32.mrb[0].mxu0
      %v1119 = vadd.f32 %v866, %v1118
      %1120 = vdwg.mxu0
      %1121 = vst [vmem:[%s258] sm:$0xff] %v1013
      %1122 = vst [vmem:[%s258 + $0x8] sm:$0xff] %v1015
      %1123 = vst [vmem:[%s258 + $0x10] sm:$0xff] %v1017
      %1124 = vst [vmem:[%s258 + $0x18] sm:$0xff] %v1019
      %1125 = vst [vmem:[%s258 + $0x20] sm:$0xff] %v1023
      %1126 = vst [vmem:[%s258 + $0x28] sm:$0xff] %v1025
      %1127 = vst [vmem:[%s258 + $0x30] sm:$0xff] %v1027
      %1128 = vst [vmem:[%s258 + $0x38] sm:$0xff] %v1029
      %1129 = vst [vmem:[%s258 + $0x40] sm:$0xff] %v1033
      %1130 = vst [vmem:[%s258 + $0x48] sm:$0xff] %v1035
      %1131 = vst [vmem:[%s258 + $0x50] sm:$0xff] %v1037
      %1132 = vst [vmem:[%s258 + $0x58] sm:$0xff] %v1039
      %1133 = vst [vmem:[%s258 + $0x60] sm:$0xff] %v1043
      %1134 = vst [vmem:[%s258 + $0x68] sm:$0xff] %v1045
      %1135 = vst [vmem:[%s258 + $0x70] sm:$0xff] %v1047
      %1136 = vst [vmem:[%s258 + $0x78] sm:$0xff] %v1049
      %1137 = vst [vmem:[%s258 + $0x80] sm:$0xff] %v1053
      %1138 = vst [vmem:[%s258 + $0x88] sm:$0xff] %v1055
      %1139 = vst [vmem:[%s258 + $0x90] sm:$0xff] %v1057
      %1140 = vst [vmem:[%s258 + $0x98] sm:$0xff] %v1059
      %1141 = vst [vmem:[%s258 + $0xa0] sm:$0xff] %v1063
      %1142 = vst [vmem:[%s258 + $0xa8] sm:$0xff] %v1065
      %1143 = vst [vmem:[%s258 + $0xb0] sm:$0xff] %v1067
      %1144 = vst [vmem:[%s258 + $0xb8] sm:$0xff] %v1069
      %1145 = vst [vmem:[%s258 + $0xc0] sm:$0xff] %v1073
      %1146 = vst [vmem:[%s258 + $0xc8] sm:$0xff] %v1075
      %1147 = vst [vmem:[%s258 + $0xd0] sm:$0xff] %v1077
      %1148 = vst [vmem:[%s258 + $0xd8] sm:$0xff] %v1079
      %1149 = vst [vmem:[%s258 + $0xe0] sm:$0xff] %v1083
      %1150 = vst [vmem:[%s258 + $0xe8] sm:$0xff] %v1085
      %1151 = vst [vmem:[%s258 + $0xf0] sm:$0xff] %v1087
      %1152 = vst [vmem:[%s258 + $0xf8] sm:$0xff] %v1089
      %1153 = vst [vmem:[%s258 + $0x100] sm:$0xff] %v1093
      %1154 = vst [vmem:[%s258 + $0x108] sm:$0xff] %v1095
      %1155 = vst [vmem:[%s258 + $0x110] sm:$0xff] %v1097
      %1156 = vst [vmem:[%s258 + $0x118] sm:$0xff] %v1099
      %1157 = vst [vmem:[%s258 + $0x120] sm:$0xff] %v1103
      %1158 = vst [vmem:[%s258 + $0x128] sm:$0xff] %v1105
      %1159 = vst [vmem:[%s258 + $0x130] sm:$0xff] %v1107
      %1160 = vst [vmem:[%s258 + $0x138] sm:$0xff] %v1109
      %1161 = vst [vmem:[%s258 + $0x140] sm:$0xff] %v1113
      %1162 = vst [vmem:[%s258 + $0x148] sm:$0xff] %v1115
      %1163 = vst [vmem:[%s258 + $0x150] sm:$0xff] %v1117
      %1164 = vst [vmem:[%s258 + $0x158] sm:$0xff] %v1119
      %v1165 = vadd.f32 %v618, %v620
      %v1166 = vadd.f32 %v1165, %v622
      %v1167 = vadd.f32 %v1166, %v624
      %v1168 = vadd.f32 %v1167, %v626
      %v1169 = vadd.f32 %v1168, %v628
      %v1170 = vadd.f32 %v1169, %v630
      %v1171 = vadd.f32 %v1170, %v632
      %v1172 = vadd.f32 %v1171, %v634
      %v1173 = vadd.f32 %v1172, %v636
      %v1174 = vadd.f32 %v1173, %v638
      %v1175 = vadd.f32 %v1174, %v640
      %v1176 = vadd.f32 %v1175, %v642
      %v1177 = vadd.f32 %v1176, %v644
      %v1178 = vadd.f32 %v1177, %v646
      %v1179 = vadd.f32 %v1178, %v648
      %v1180 = vadd.f32 %v1179, %v650
      %v1181 = vadd.f32 %v1180, %v652
      %v1182 = vadd.f32 %v1181, %v654
      %v1183 = vadd.f32 %v1182, %v656
      %v1184 = vadd.f32 %v1183, %v658
      %v1185 = vadd.f32 %v1184, %v660
      %v1186 = vadd.f32 %v1185, %v662
      %v1187 = vadd.f32 %v1186, %v664
      %v1188 = vadd.f32 %v1187, %v666
      %v1189 = vadd.f32 %v1188, %v668
      %v1190 = vadd.f32 %v1189, %v670
      %v1191 = vadd.f32 %v1190, %v672
      %v1192 = vadd.f32 %v1191, %v674
      %v1193 = vadd.f32 %v1192, %v676
      %v1194 = vadd.f32 %v1193, %v678
      %v1195 = vadd.f32 %v1194, %v680
      %v1196 = vrot.slane %v1195, 4
      %v1197 = vadd.f32 %v1195, %v1196
      %v1198 = vrot.slane %v1197, 2
      %v1199 = vadd.f32 %v1197, %v1198
      %v1200 = vrot.slane %v1199, 1
      %v1201 = vadd.f32 %v1199, %v1200
      %v1202 = vadd.f32 %v619, %v621
      %v1203 = vadd.f32 %v1202, %v623
      %v1204 = vadd.f32 %v1203, %v625
      %v1205 = vadd.f32 %v1204, %v627
      %v1206 = vadd.f32 %v1205, %v629
      %v1207 = vadd.f32 %v1206, %v631
      %v1208 = vadd.f32 %v1207, %v633
      %v1209 = vadd.f32 %v1208, %v635
      %v1210 = vadd.f32 %v1209, %v637
      %v1211 = vadd.f32 %v1210, %v639
      %v1212 = vadd.f32 %v1211, %v641
      %v1213 = vadd.f32 %v1212, %v643
      %v1214 = vadd.f32 %v1213, %v645
      %v1215 = vadd.f32 %v1214, %v647
      %v1216 = vadd.f32 %v1215, %v649
      %v1217 = vadd.f32 %v1216, %v651
      %v1218 = vadd.f32 %v1217, %v653
      %v1219 = vadd.f32 %v1218, %v655
      %v1220 = vadd.f32 %v1219, %v657
      %v1221 = vadd.f32 %v1220, %v659
      %v1222 = vadd.f32 %v1221, %v661
      %v1223 = vadd.f32 %v1222, %v663
      %v1224 = vadd.f32 %v1223, %v665
      %v1225 = vadd.f32 %v1224, %v667
      %v1226 = vadd.f32 %v1225, %v669
      %v1227 = vadd.f32 %v1226, %v671
      %v1228 = vadd.f32 %v1227, %v673
      %v1229 = vadd.f32 %v1228, %v675
      %v1230 = vadd.f32 %v1229, %v677
      %v1231 = vadd.f32 %v1230, %v679
      %v1232 = vadd.f32 %v1231, %v681
      %v1233 = vrot.slane %v1232, 4
      %v1234 = vadd.f32 %v1232, %v1233
      %v1235 = vrot.slane %v1234, 2
      %v1236 = vadd.f32 %v1234, %v1235
      %v1237 = vrot.slane %v1236, 1
      %v1238 = vadd.f32 %v1236, %v1237
      %v1239 = vrcp.pop 256.0
      %v1240 = vmul.f32 %v1201, %v1239
      %v1241 = vmul.f32 %v1238, %v1239
      %v1242 = vpack.c.bf16 %v1240, %v1240
      %v1243 = vpack.c.bf16 %v1241, %v1241
      %v1244 = vld [vmem:[%s3] sm:$0xff]
      %v1245 = vld [vmem:[%s3 + $0x8] sm:$0xf]
      %v1246 = vld [vmem:[%s3 + $0xc] sm:$0xff]
      %v1247 = vld [vmem:[%s3 + $0x14] sm:$0xf]
      %v1248 = vld [vmem:[%s3 + $0x18] sm:$0xff]
      %v1249 = vld [vmem:[%s3 + $0x20] sm:$0xf]
      %v1250 = vld [vmem:[%s3 + $0x24] sm:$0xff]
      %v1251 = vld [vmem:[%s3 + $0x2c] sm:$0xf]
      %v1252 = vld [vmem:[%s3 + $0x30] sm:$0xff]
      %v1253 = vld [vmem:[%s3 + $0x38] sm:$0xf]
      %v1254 = vld [vmem:[%s3 + $0x3c] sm:$0xff]
      %v1255 = vld [vmem:[%s3 + $0x44] sm:$0xf]
      %v1256 = vld [vmem:[%s3 + $0x48] sm:$0xff]
      %v1257 = vld [vmem:[%s3 + $0x50] sm:$0xf]
      %v1258 = vld [vmem:[%s3 + $0x54] sm:$0xff]
      %v1259 = vld [vmem:[%s3 + $0x5c] sm:$0xf]
      %v1260 = vld [vmem:[%s3 + $0x60] sm:$0xff]
      %v1261 = vld [vmem:[%s3 + $0x68] sm:$0xf]
      %v1262 = vld [vmem:[%s3 + $0x6c] sm:$0xff]
      %v1263 = vld [vmem:[%s3 + $0x74] sm:$0xf]
      %v1264 = vld [vmem:[%s3 + $0x78] sm:$0xff]
      %v1265 = vld [vmem:[%s3 + $0x80] sm:$0xf]
      %v1266 = vld [vmem:[%s3 + $0x84] sm:$0xff]
      %v1267 = vld [vmem:[%s3 + $0x8c] sm:$0xf]
      %v1268 = vld [vmem:[%s3 + $0x90] sm:$0xff]
      %v1269 = vld [vmem:[%s3 + $0x98] sm:$0xf]
      %v1270 = vld [vmem:[%s3 + $0x9c] sm:$0xff]
      %v1271 = vld [vmem:[%s3 + $0xa4] sm:$0xf]
      %v1272 = vld [vmem:[%s3 + $0xa8] sm:$0xff]
      %v1273 = vld [vmem:[%s3 + $0xb0] sm:$0xf]
      %v1274 = vld [vmem:[%s3 + $0xb4] sm:$0xff]
      %v1275 = vld [vmem:[%s3 + $0xbc] sm:$0xf]
      %v1276 = vld [vmem:[%s3 + $0xc0] sm:$0xff]
      %v1277 = vld [vmem:[%s3 + $0xc8] sm:$0xf]
      %v1278 = vld [vmem:[%s3 + $0xcc] sm:$0xff]
      %v1279 = vld [vmem:[%s3 + $0xd4] sm:$0xf]
      %v1280 = vld [vmem:[%s3 + $0xd8] sm:$0xff]
      %v1281 = vld [vmem:[%s3 + $0xe0] sm:$0xf]
      %v1282 = vld [vmem:[%s3 + $0xe4] sm:$0xff]
      %v1283 = vld [vmem:[%s3 + $0xec] sm:$0xf]
      %v1284 = vld [vmem:[%s3 + $0xf0] sm:$0xff]
      %v1285 = vld [vmem:[%s3 + $0xf8] sm:$0xf]
      %v1286 = vld [vmem:[%s3 + $0xfc] sm:$0xff]
      %v1287 = vld [vmem:[%s3 + $0x104] sm:$0xf]
      %v1288 = vld [vmem:[%s3 + $0x108] sm:$0xff]
      %v1289 = vld [vmem:[%s3 + $0x110] sm:$0xf]
      %v1290 = vld [vmem:[%s3 + $0x114] sm:$0xff]
      %v1291 = vld [vmem:[%s3 + $0x11c] sm:$0xf]
      %v1292 = vld [vmem:[%s3 + $0x120] sm:$0xff]
      %v1293 = vld [vmem:[%s3 + $0x128] sm:$0xf]
      %v1294 = vld [vmem:[%s3 + $0x12c] sm:$0xff]
      %v1295 = vld [vmem:[%s3 + $0x134] sm:$0xf]
      %v1296 = vld [vmem:[%s3 + $0x138] sm:$0xff]
      %v1297 = vld [vmem:[%s3 + $0x140] sm:$0xf]
      %v1298 = vld [vmem:[%s3 + $0x144] sm:$0xff]
      %v1299 = vld [vmem:[%s3 + $0x14c] sm:$0xf]
      %v1300 = vld [vmem:[%s3 + $0x150] sm:$0xff]
      %v1301 = vld [vmem:[%s3 + $0x158] sm:$0xf]
      %v1302 = vld [vmem:[%s3 + $0x15c] sm:$0xff]
      %v1303 = vld [vmem:[%s3 + $0x164] sm:$0xf]
      %v1304 = vld [vmem:[%s3 + $0x168] sm:$0xff]
      %v1305 = vld [vmem:[%s3 + $0x170] sm:$0xf]
      %v1306 = vld [vmem:[%s3 + $0x174] sm:$0xff]
      %v1307 = vld [vmem:[%s3 + $0x17c] sm:$0xf]
      %v1308 = vld [vmem:[%s4] sm:$0x7]
      %v1373 = vunpack.c.l.b16 %v1244
      %v1374 = vunpack.c.h.b16 %v1244
      %v1375 = vunpack.c.l.b16 %v1245
      %v1376 = vunpack.c.l.b16 %v1246
      %v1377 = vunpack.c.h.b16 %v1246
      %v1378 = vunpack.c.l.b16 %v1247
      %v1379 = vunpack.c.l.b16 %v1248
      %v1380 = vunpack.c.h.b16 %v1248
      %v1381 = vunpack.c.l.b16 %v1249
      %v1382 = vunpack.c.l.b16 %v1250
      %v1383 = vunpack.c.h.b16 %v1250
      %v1384 = vunpack.c.l.b16 %v1251
      %v1385 = vunpack.c.l.b16 %v1252
      %v1386 = vunpack.c.h.b16 %v1252
      %v1387 = vunpack.c.l.b16 %v1253
      %v1388 = vunpack.c.l.b16 %v1254
      %v1389 = vunpack.c.h.b16 %v1254
      %v1390 = vunpack.c.l.b16 %v1255
      %v1391 = vunpack.c.l.b16 %v1256
      %v1392 = vunpack.c.h.b16 %v1256
      %v1393 = vunpack.c.l.b16 %v1257
      %v1394 = vunpack.c.l.b16 %v1258
      %v1395 = vunpack.c.h.b16 %v1258
      %v1396 = vunpack.c.l.b16 %v1259
      %v1397 = vunpack.c.l.b16 %v1260
      %v1398 = vunpack.c.h.b16 %v1260
      %v1399 = vunpack.c.l.b16 %v1261
      %v1400 = vunpack.c.l.b16 %v1262
      %v1401 = vunpack.c.h.b16 %v1262
      %v1402 = vunpack.c.l.b16 %v1263
      %v1403 = vunpack.c.l.b16 %v1264
      %v1404 = vunpack.c.h.b16 %v1264
      %v1405 = vunpack.c.l.b16 %v1265
      %v1406 = vunpack.c.l.b16 %v1266
      %v1407 = vunpack.c.h.b16 %v1266
      %v1408 = vunpack.c.l.b16 %v1267
      %v1409 = vunpack.c.l.b16 %v1268
      %v1410 = vunpack.c.h.b16 %v1268
      %v1411 = vunpack.c.l.b16 %v1269
      %v1412 = vunpack.c.l.b16 %v1270
      %v1413 = vunpack.c.h.b16 %v1270
      %v1414 = vunpack.c.l.b16 %v1271
      %v1415 = vunpack.c.l.b16 %v1272
      %v1416 = vunpack.c.h.b16 %v1272
      %v1417 = vunpack.c.l.b16 %v1273
      %v1418 = vunpack.c.l.b16 %v1274
      %v1419 = vunpack.c.h.b16 %v1274
      %v1420 = vunpack.c.l.b16 %v1275
      %v1421 = vunpack.c.l.b16 %v1276
      %v1422 = vunpack.c.h.b16 %v1276
      %v1423 = vunpack.c.l.b16 %v1277
      %v1424 = vunpack.c.l.b16 %v1278
      %v1425 = vunpack.c.h.b16 %v1278
      %v1426 = vunpack.c.l.b16 %v1279
      %v1427 = vunpack.c.l.b16 %v1280
      %v1428 = vunpack.c.h.b16 %v1280
      %v1429 = vunpack.c.l.b16 %v1281
      %v1430 = vunpack.c.l.b16 %v1282
      %v1431 = vunpack.c.h.b16 %v1282
      %v1432 = vunpack.c.l.b16 %v1283
      %v1433 = vunpack.c.l.b16 %v1284
      %v1434 = vunpack.c.h.b16 %v1284
      %v1435 = vunpack.c.l.b16 %v1285
      %v1436 = vunpack.c.l.b16 %v1286
      %v1437 = vunpack.c.h.b16 %v1286
      %v1438 = vunpack.c.l.b16 %v1287
      %v1439 = vunpack.c.l.b16 %v1288
      %v1440 = vunpack.c.h.b16 %v1288
      %v1441 = vunpack.c.l.b16 %v1289
      %v1442 = vunpack.c.l.b16 %v1290
      %v1443 = vunpack.c.h.b16 %v1290
      %v1444 = vunpack.c.l.b16 %v1291
      %v1445 = vunpack.c.l.b16 %v1292
      %v1446 = vunpack.c.h.b16 %v1292
      %v1447 = vunpack.c.l.b16 %v1293
      %v1448 = vunpack.c.l.b16 %v1294
      %v1449 = vunpack.c.h.b16 %v1294
      %v1450 = vunpack.c.l.b16 %v1295
      %v1451 = vunpack.c.l.b16 %v1296
      %v1452 = vunpack.c.h.b16 %v1296
      %v1453 = vunpack.c.l.b16 %v1297
      %v1454 = vunpack.c.l.b16 %v1298
      %v1455 = vunpack.c.h.b16 %v1298
      %v1456 = vunpack.c.l.b16 %v1299
      %v1457 = vunpack.c.l.b16 %v1300
      %v1458 = vunpack.c.h.b16 %v1300
      %v1459 = vunpack.c.l.b16 %v1301
      %v1460 = vunpack.c.l.b16 %v1302
      %v1461 = vunpack.c.h.b16 %v1302
      %v1462 = vunpack.c.l.b16 %v1303
      %v1463 = vunpack.c.l.b16 %v1304
      %v1464 = vunpack.c.h.b16 %v1304
      %v1465 = vunpack.c.l.b16 %v1305
      %v1466 = vunpack.c.l.b16 %v1306
      %v1467 = vunpack.c.h.b16 %v1306
      %v1468 = vunpack.c.l.b16 %v1307
      %v1469 = vpack.c.b16 %v1376, %v1373
      %v1470 = vpack.c.b16 %v1377, %v1374
      %v1471 = vpack.c.b16 %v1378, %v1375
      %v1472 = vpack.c.b16 %v1382, %v1379
      %v1473 = vpack.c.b16 %v1383, %v1380
      %v1474 = vpack.c.b16 %v1384, %v1381
      %v1475 = vpack.c.b16 %v1388, %v1385
      %v1476 = vpack.c.b16 %v1389, %v1386
      %v1477 = vpack.c.b16 %v1390, %v1387
      %v1478 = vpack.c.b16 %v1394, %v1391
      %v1479 = vpack.c.b16 %v1395, %v1392
      %v1480 = vpack.c.b16 %v1396, %v1393
      %v1481 = vpack.c.b16 %v1400, %v1397
      %v1482 = vpack.c.b16 %v1401, %v1398
      %v1483 = vpack.c.b16 %v1402, %v1399
      %v1484 = vpack.c.b16 %v1406, %v1403
      %v1485 = vpack.c.b16 %v1407, %v1404
      %v1486 = vpack.c.b16 %v1408, %v1405
      %v1487 = vpack.c.b16 %v1412, %v1409
      %v1488 = vpack.c.b16 %v1413, %v1410
      %v1489 = vpack.c.b16 %v1414, %v1411
      %v1490 = vpack.c.b16 %v1418, %v1415
      %v1491 = vpack.c.b16 %v1419, %v1416
      %v1492 = vpack.c.b16 %v1420, %v1417
      %v1493 = vpack.c.b16 %v1424, %v1421
      %v1494 = vpack.c.b16 %v1425, %v1422
      %v1495 = vpack.c.b16 %v1426, %v1423
      %v1496 = vpack.c.b16 %v1430, %v1427
      %v1497 = vpack.c.b16 %v1431, %v1428
      %v1498 = vpack.c.b16 %v1432, %v1429
      %v1499 = vpack.c.b16 %v1436, %v1433
      %v1500 = vpack.c.b16 %v1437, %v1434
      %v1501 = vpack.c.b16 %v1438, %v1435
      %v1502 = vpack.c.b16 %v1442, %v1439
      %v1503 = vpack.c.b16 %v1443, %v1440
      %v1504 = vpack.c.b16 %v1444, %v1441
      %v1505 = vpack.c.b16 %v1448, %v1445
      %v1506 = vpack.c.b16 %v1449, %v1446
      %v1507 = vpack.c.b16 %v1450, %v1447
      %v1508 = vpack.c.b16 %v1454, %v1451
      %v1509 = vpack.c.b16 %v1455, %v1452
      %v1510 = vpack.c.b16 %v1456, %v1453
      %v1511 = vpack.c.b16 %v1460, %v1457
      %v1512 = vpack.c.b16 %v1461, %v1458
      %v1513 = vpack.c.b16 %v1462, %v1459
      %v1514 = vpack.c.b16 %v1466, %v1463
      %v1515 = vpack.c.b16 %v1467, %v1464
      %v1516 = vpack.c.b16 %v1468, %v1465
      %v1566 = vlaneseq
      %v1567 = vshrl.u32 %v1566, 7
      %v1568 = vsub.s32 0, %v1567
      %v1569 = vrot.slane %v1308, %v1568
      %v1570 = vlaneseq
      %v1571 = vshrl.u32 %v1570, 7
      %v1572 = vsub.s32 1, %v1571
      %v1573 = vrot.slane %v1308, %v1572
      %v1574 = vlaneseq
      %v1575 = vshrl.u32 %v1574, 7
      %v1576 = vsub.s32 2, %v1575
      %v1577 = vrot.slane %v1308, %v1576
      %1581 = vmatprep.subr.bf16.mxu0 %v1470
      %1582 = vmatpush1.bf16.msra.mxu0 %v1469
      %1583 = vmatprep.subr.bf16.mxu0 %v1473
      %1584 = vmatpush1.bf16.msra.mxu0 %v1472
      %1585 = vmatprep.subr.bf16.mxu0 %v1476
      %1586 = vmatpush1.bf16.msra.mxu0 %v1475
      %1587 = vmatprep.subr.bf16.mxu0 %v1479
      %1588 = vmatpush1.bf16.msra.mxu0 %v1478
      %1589 = vmatprep.subr.bf16.mxu0 %v1482
      %1590 = vmatpush1.bf16.msra.mxu0 %v1481
      %1591 = vmatprep.subr.bf16.mxu0 %v1485
      %1592 = vmatpush1.bf16.msra.mxu0 %v1484
      %1593 = vmatprep.subr.bf16.mxu0 %v1488
      %1594 = vmatpush1.bf16.msra.mxu0 %v1487
      %1595 = vmatprep.subr.bf16.mxu0 %v1491
      %1596 = vmatpush1.bf16.msra.mxu0 %v1490
      %1597 = vmatprep.subr.bf16.mxu0 %v1494
      %1598 = vmatpush1.bf16.msra.mxu0 %v1493
      %1599 = vmatprep.subr.bf16.mxu0 %v1497
      %1600 = vmatpush1.bf16.msra.mxu0 %v1496
      %1601 = vmatprep.subr.bf16.mxu0 %v1500
      %1602 = vmatpush1.bf16.msra.mxu0 %v1499
      %1603 = vmatprep.subr.bf16.mxu0 %v1503
      %1604 = vmatpush1.bf16.msra.mxu0 %v1502
      %1605 = vmatprep.subr.bf16.mxu0 %v1506
      %1606 = vmatpush1.bf16.msra.mxu0 %v1505
      %1607 = vmatprep.subr.bf16.mxu0 %v1509
      %1608 = vmatpush1.bf16.msra.mxu0 %v1508
      %1609 = vmatprep.subr.bf16.mxu0 %v1512
      %1610 = vmatpush1.bf16.msra.mxu0 %v1511
      %1611 = vmatprep.subr.bf16.mxu0 %v1515
      %1612 = vmatpush1.bf16.msra.mxu0 %v1514
      %1613 = vmatprep.mubr.bf16.mxu0 %v1243
      %1614 = vmatmul.mubr.bf16.gmra.mrb[0].mxu0 %v1242
      %v1615 = vpop.f32.mrb[0].mxu0
      %v1616 = vadd.f32 %v1569, %v1615
      %v1617 = vpop.f32.mrb[0].mxu0
      %v1618 = vadd.f32 %v1573, %v1617
      %v1619 = vpop.f32.mrb[0].mxu0
      %v1620 = vpop.f32.mrb[0].mxu0
      %1621 = vdwg.mxu0
      %1622 = vmatprep.subr.bf16.mxu0 0
      %1623 = vmatpush1.bf16.msra.mxu0 %v1471
      %1624 = vmatprep.subr.bf16.mxu0 0
      %1625 = vmatpush1.bf16.msra.mxu0 %v1474
      %1626 = vmatprep.subr.bf16.mxu0 0
      %1627 = vmatpush1.bf16.msra.mxu0 %v1477
      %1628 = vmatprep.subr.bf16.mxu0 0
      %1629 = vmatpush1.bf16.msra.mxu0 %v1480
      %1630 = vmatprep.subr.bf16.mxu0 0
      %1631 = vmatpush1.bf16.msra.mxu0 %v1483
      %1632 = vmatprep.subr.bf16.mxu0 0
      %1633 = vmatpush1.bf16.msra.mxu0 %v1486
      %1634 = vmatprep.subr.bf16.mxu0 0
      %1635 = vmatpush1.bf16.msra.mxu0 %v1489
      %1636 = vmatprep.subr.bf16.mxu0 0
      %1637 = vmatpush1.bf16.msra.mxu0 %v1492
      %1638 = vmatprep.subr.bf16.mxu0 0
      %1639 = vmatpush1.bf16.msra.mxu0 %v1495
      %1640 = vmatprep.subr.bf16.mxu0 0
      %1641 = vmatpush1.bf16.msra.mxu0 %v1498
      %1642 = vmatprep.subr.bf16.mxu0 0
      %1643 = vmatpush1.bf16.msra.mxu0 %v1501
      %1644 = vmatprep.subr.bf16.mxu0 0
      %1645 = vmatpush1.bf16.msra.mxu0 %v1504
      %1646 = vmatprep.subr.bf16.mxu0 0
      %1647 = vmatpush1.bf16.msra.mxu0 %v1507
      %1648 = vmatprep.subr.bf16.mxu0 0
      %1649 = vmatpush1.bf16.msra.mxu0 %v1510
      %1650 = vmatprep.subr.bf16.mxu0 0
      %1651 = vmatpush1.bf16.msra.mxu0 %v1513
      %1652 = vmatprep.subr.bf16.mxu0 0
      %1653 = vmatpush1.bf16.msra.mxu0 %v1516
      %1654 = vmatprep.mubr.bf16.mxu0 %v1243
      %1655 = vmatmul.mubr.bf16.gmra.mrb[0].mxu0 %v1242
      %v1656 = vpop.f32.mrb[0].mxu0
      %v1657 = vadd.f32 %v1577, %v1656
      %v1658 = vpop.f32.mrb[0].mxu0
      %v1659 = vpop.f32.mrb[0].mxu0
      %v1660 = vpop.f32.mrb[0].mxu0
      %1661 = vdwg.mxu0
      %v1665 = vcombine.low %v1616, %v1618
      %v1667 = vunpack.c.l.s4 1966171168
      %v1668 = vunpack.c.0.s8 %v1667
      %v1669 = vlaneseq
      %v1670 = vshrl.u32 %v1669, 7
      %v1671 = vsub.s32 %v1668, %v1670
      %v1672 = vrot.slane %v1665, %v1671
      %v1674 = vunpack.c.l.s4 1966171168
      %v1675 = vunpack.c.0.s8 %v1674
      %v1676 = vlaneseq
      %v1677 = vshrl.u32 %v1676, 7
      %v1678 = vsub.s32 %v1675, %v1677
      %v1679 = vrot.slane %v1657, %v1678
      %v1680 = vcombine.low %v1672, %v1679
      %v1682 = vunpack.c.l.s4 1966171168
      %v1683 = vunpack.c.0.s8 %v1682
      %v1684 = vlaneseq
      %v1685 = vshrl.u32 %v1684, 7
      %v1686 = vsub.s32 %v1683, %v1685
      %v1687 = vrot.slane %v1680, %v1686
      %v1689 = vlaneseq
      %vm1690 = vcmp.ge.s32.totalorder %v1689, 0
      %vm1691 = vcmp.lt.s32.totalorder %v1689, 384
      %vm1692 = vmand %vm1690, %vm1691
      %1693 = vst.msk [vmem:[%s262] sm:$0x7] %vm1692, %v1687
      %p1694 = scmp.lt.s32.totalorder %s18, 1
      %s1695 = scalar_select %p1694, %s18, 1
      %s1696 = smul.addr %s1695, 44
      %s1697 = smul.addr %s1696, 8
      %s1698 = scalar_lea.vmem %s5, %s1697
      %p1699 = scmp.lt.s32.totalorder %s18, 1
      %s1700 = scalar_select %p1699, %s18, 1
      %s1701 = smul.addr %s1700, 3
      %s1702 = scalar_lea.vmem %s6, %s1701
      // Predicated region
      $region41: #{ovt_forward.21} parent=39 // pred_check
        %p1703 = pneg %p146
      $region42: #{ovt_forward.21} parent=39 // pred_check_branch
        %1705 = sbr.rel (%p1703) target = $region44
      $region43: #{ovt_forward.21} parent=39 // pred_region
        _
      $region44: #{ovt_forward.21} parent=39 // pred_fallthru
        _
      // Predicated region
      $region45: #{ovt_forward.21} parent=39 // pred_check
        %p1706 = pneg %p172
      $region46: #{ovt_forward.21} parent=39 // pred_check_branch
        %1708 = sbr.rel (%p1706) target = $region48
      $region47: #{ovt_forward.21} parent=39 // pred_region
        _
      $region48: #{ovt_forward.21} parent=39 // pred_fallthru
        _
    $region40: #{ovt_forward.21} parent=5 // pred_fallthru
      _
    %p1709 = scmp.le.s32.totalorder 2, %s13
    // Predicated region
    $region49: #{ovt_forward.21} parent=5 // pred_check
      %p1710 = pneg %p1709
    $region50: #{ovt_forward.21} parent=5 // pred_check_branch
      %1712 = sbr.rel (%p1710) target = $region52
    $region51: #{ovt_forward.21} parent=5 // pred_region
      %s1713 = ssub.s32 %s13, 2
      // Predicated region
      $region53: #{ovt_forward.21} parent=51 // pred_check
        %p1714 = pneg %p152
      $region54: #{ovt_forward.21} parent=51 // pred_check_branch
        %1716 = sbr.rel (%p1714) target = $region56
      $region55: #{ovt_forward.21} parent=51 // pred_region
        %p1717 = scmp.lt.s32.totalorder %s19, 1
        %s1718 = scalar_select %p1717, %s19, 1
        %s1719 = smul.addr %s1718, 44
        %s1720 = smul.addr %s1719, 8
        %s1721 = scalar_lea.vmem %s5, %s1720
      $region56: #{ovt_forward.21} parent=51 // pred_fallthru
        _
      // Predicated region
      $region57: #{ovt_forward.21} parent=51 // pred_check
        %p1722 = pneg %p178
      $region58: #{ovt_forward.21} parent=51 // pred_check_branch
        %1724 = sbr.rel (%p1722) target = $region60
      $region59: #{ovt_forward.21} parent=51 // pred_region
        %p1725 = scmp.lt.s32.totalorder %s19, 1
        %s1726 = scalar_select %p1725, %s19, 1
        %s1727 = smul.addr %s1726, 3
        %s1728 = scalar_lea.vmem %s6, %s1727
      $region60: #{ovt_forward.21} parent=51 // pred_fallthru
        _
    $region52: #{ovt_forward.21} parent=5 // pred_fallthru
      _
  $region6: #{ovt_forward.21} parent=0 // loop_footer
    %s17 = sadd.s32 1, %s13
  $region7: #{ovt_forward.21} parent=0 // loop_footer_branch
    %12 = sbr.rel target = $region3
  $region8: #{ovt_forward.21} parent=0 // loop_exit
    _

</llo_original>
